<compile_context>
chip_gen: v7x
topology: tpu7x:2x2x1
jax: 0.10.0
libtpu: 0.0.40
codegen_flags: <defaults>
</compile_context>

<pallas_src>
import functools

import jax
import jax.numpy as jnp
from jax.experimental import pallas as pl
from jax.experimental.pallas import tpu as pltpu

NUM_CLASSES = 4
C1, C2, C3 = 32, 64, 128          # conv channel widths
FCH = 64                          # fc1 hidden width


def _ecg_kernel(s1_ref, w1_ref, cb1_ref, w2_ref, cb2_ref, w3_ref, cb3_ref,
                fw1_ref, fb1_ref, fw2_ref, fb2_ref,
                o_ref,
                pad2, pad3, slab2, slab3, cp1, cp2, cp3,
                *, H, W, BB):
    """Whole ECG_CNN forward for one batch block (BB images), all in VMEM."""
    H2, W2 = H // 2, W // 2       # conv2 input spatial dims
    H3, W3 = H2 // 2, W2 // 2     # conv3 input spatial dims
    H4, W4 = H3 // 2, W3 // 2     # post-pool3 spatial dims

    # Zero the padded-input scratches.  The zero borders implement 'same'
    # padding; interiors are fully rewritten each step.  This is re-done every
    # step (not only on program_id==0) because with "parallel" batch sharding
    # each core owns its own scratch and may never see step 0; the memset is a
    # few hundred cycles, i.e. free.
    pad2[...] = jnp.zeros_like(pad2)
    pad3[...] = jnp.zeros_like(pad3)

    def relu_pool(conv, bias_ref, Hin, Win, cp_ref):
        """bias + ReLU + 2x2/2 max-pool on a (BB*Hin*Win, Cout) conv result
        whose rows are ordered (b, h, w).  Returns (BB*Hin/2*Win/2, Cout) with
        rows ordered (b, h2, w2)."""
        cout = conv.shape[-1]
        a = jnp.maximum(conv + bias_ref[...], 0.0)
        # max over row pairs: leading-dim reshape + elementwise max (registers)
        r = a.reshape(BB * (Hin // 2), 2, Win, cout)
        rows = jnp.maximum(r[:, 0], r[:, 1])            # (BB*Hin/2, Win, Cout)
        # max over column pairs: VMEM scratch + stride-2 reads (proven path).
        # Win is even, so pairs never straddle a row/image boundary.
        cp_ref[...] = rows.reshape(BB * (Hin // 2) * Win, cout)
        n = BB * (Hin // 2) * (Win // 2)
        return jnp.maximum(cp_ref[pl.ds(0, n, stride=2), :],
                           cp_ref[pl.ds(1, n, stride=2), :])

    # ---- layer 1: im2col slab comes pre-built from the wrapper -------------
    c1 = jnp.dot(s1_ref[...], w1_ref[...],
                 preferred_element_type=jnp.float32)       # (BB*H*W, C1)
    p1 = relu_pool(c1, cb1_ref, H, W, cp1)                 # (BB*H2*W2, C1)
    pad2[:, 1:H2 + 1, 1:W2 + 1, :] = p1.reshape(BB, H2, W2, C1)

    # ---- layer 2: batched im2col, K = 9*32 = 288 ----------------------------
    for dh in range(3):
        for dw in range(3):
            k0 = (dh * 3 + dw) * C1
            slab2[:, k0:k0 + C1] = (
                pad2[:, dh:dh + H2, dw:dw + W2, :].reshape(BB * H2 * W2, C1))
    c2 = jnp.dot(slab2[...], w2_ref[...],
                 preferred_element_type=jnp.float32)       # (BB*H2*W2, C2)
    p2 = relu_pool(c2, cb2_ref, H2, W2, cp2)               # (BB*H3*W3, C2)
    pad3[:, 1:H3 + 1, 1:W3 + 1, :] = p2.reshape(BB, H3, W3, C2)

    # ---- layer 3: batched im2col, K = 9*64 = 576 ----------------------------
    for dh in range(3):
        for dw in range(3):
            k0 = (dh * 3 + dw) * C2
            slab3[:, k0:k0 + C2] = (
                pad3[:, dh:dh + H3, dw:dw + W3, :].reshape(BB * H3 * W3, C2))
    c3 = jnp.dot(slab3[...], w3_ref[...],
                 preferred_element_type=jnp.float32)       # (BB*H3*W3, C3)
    p3 = relu_pool(c3, cb3_ref, H3, W3, cp3)               # (BB*H4*W4, C3)

    # ---- head: global average pool + fc1(ReLU) + fc2 ------------------------
    g = jnp.mean(p3.reshape(BB, H4 * W4, C3), axis=1)      # (BB, C3)
    h = jnp.maximum(
        jnp.dot(g, fw1_ref[...], preferred_element_type=jnp.float32)
        + fb1_ref[...], 0.0)
    logits = (jnp.dot(h, fw2_ref[...], preferred_element_type=jnp.float32)
              + fb2_ref[...])
    o_ref[...] = logits.reshape(1, BB, NUM_CLASSES)


def _prep_params(params):
    """Host-side glue: reshape parameters into the kernel's layouts."""
    (cw1, cb1), (cw2, cb2), (cw3, cb3) = params["convs"]
    return dict(
        w1=cw1.reshape(9, C1),        cb1=cb1.reshape(1, C1),
        w2=cw2.reshape(9 * C1, C2),   cb2=cb2.reshape(1, C2),
        w3=cw3.reshape(9 * C2, C3),   cb3=cb3.reshape(1, C3),
        fw1=params["w1"],             fb1=params["b1"].reshape(1, FCH),
        fw2=params["w2"],             fb2=params["b2"].reshape(1, NUM_CLASSES),
    )


def _im2col_conv1(x_bhw):
    """(B, H, W) -> (B*H*W, 9) 'same'-padded 3x3 patch slab (layout plumbing,
    done wrapper-side so conv1 is a single lane-dense MXU matmul in-kernel)."""
    B, H, W = x_bhw.shape
    xp = jnp.pad(x_bhw, ((0, 0), (1, 1), (1, 1)))
    cols = [xp[:, dh:dh + H, dw:dw + W] for dh in range(3) for dw in range(3)]
    return jnp.stack(cols, axis=-1).reshape(B * H * W, 9)


def _pick_bb(B):
    """Largest batch block <= 8 that divides B while leaving >= 2 grid steps
    (so the 'parallel' grid axis can use both TensorCores on v7x)."""
    if B <= 1:
        return 1
    for bb in (8, 4, 2, 1):
        if B % bb == 0 and B // bb >= 2:
            return bb
    return 1


def ecg_cnn_forward(x_nchw, params):
    B, Cin, H, W = x_nchw.shape
    assert Cin == 1 and H % 8 == 0 and W % 8 == 0, "kernel tiling assumptions"
    BB = _pick_bb(B)
    nsteps = B // BB
    H2, W2, H3, W3 = H // 2, W // 2, H // 4, W // 4
    H4, W4 = H // 8, W // 8

    x = x_nchw.reshape(B, H, W).astype(jnp.float32)
    s1 = _im2col_conv1(x)                                   # (B*H*W, 9)
    p = _prep_params(params)

    def full2d(a):  # fully-resident 2-D parameter
        return pl.BlockSpec(a.shape, lambda i: (0, 0))

    out = pl.pallas_call(
        functools.partial(_ecg_kernel, H=H, W=W, BB=BB),
        # 3-D output so the block's last two dims equal the full array dims
        # even when BB is 1/2/4 (keeps the (8,128) block rule satisfied).
        out_shape=jax.ShapeDtypeStruct((nsteps, BB, NUM_CLASSES), jnp.float32),
        grid=(nsteps,),
        in_specs=[
            pl.BlockSpec((BB * H * W, 9), lambda i: (i, 0)),
            full2d(p["w1"]), full2d(p["cb1"]),
            full2d(p["w2"]), full2d(p["cb2"]),
            full2d(p["w3"]), full2d(p["cb3"]),
            full2d(p["fw1"]), full2d(p["fb1"]),
            full2d(p["fw2"]), full2d(p["fb2"]),
        ],
        out_specs=pl.BlockSpec((1, BB, NUM_CLASSES), lambda i: (i, 0, 0)),
        scratch_shapes=[
            pltpu.VMEM((BB, H2 + 2, W2 + 2, C1), jnp.float32),   # pad2
            pltpu.VMEM((BB, H3 + 2, W3 + 2, C2), jnp.float32),   # pad3
            pltpu.VMEM((BB * H2 * W2, 9 * C1), jnp.float32),     # slab2 (im2col)
            pltpu.VMEM((BB * H3 * W3, 9 * C2), jnp.float32),     # slab3 (im2col)
            pltpu.VMEM((BB * H2 * W, C1), jnp.float32),          # cp1
            pltpu.VMEM((BB * H3 * W2, C2), jnp.float32),         # cp2
            pltpu.VMEM((BB * H4 * W3, C3), jnp.float32),         # cp3
        ],
        compiler_params=pltpu.CompilerParams(
            dimension_semantics=("parallel",),
            vmem_limit_bytes=48 * 1024 * 1024),
    )(s1, p["w1"], p["cb1"], p["w2"], p["cb2"], p["w3"], p["cb3"],
      p["fw1"], p["fb1"], p["fw2"], p["fb2"])
    return out.reshape(B, NUM_CLASSES)


def init_params(key):
    ks = jax.random.split(key, 10)

    def conv_init(kw, kb, cin, cout):
        scale = (cin * 9) ** -0.5
        w = scale * jax.random.normal(kw, (3, 3, cin, cout), jnp.float32)  # HWIO
        b = 0.1 * jax.random.normal(kb, (cout,), jnp.float32)
        return w, b

    convs = [conv_init(ks[0], ks[1], 1, C1),
             conv_init(ks[2], ks[3], C1, C2),
             conv_init(ks[4], ks[5], C2, C3)]
    w1 = (C3 ** -0.5) * jax.random.normal(ks[6], (C3, FCH), jnp.float32)
    b1 = 0.1 * jax.random.normal(ks[7], (FCH,), jnp.float32)
    w2 = (FCH ** -0.5) * jax.random.normal(ks[8], (FCH, NUM_CLASSES), jnp.float32)
    b2 = 0.1 * jax.random.normal(ks[9], (NUM_CLASSES,), jnp.float32)
    return {"convs": convs, "w1": w1, "b1": b1, "w2": w2, "b2": b2}


def reference_forward(x_nchw, params):
    """Pure-JAX reference reproducing the PyTorch forward."""
    x = jnp.transpose(x_nchw, (0, 2, 3, 1)).astype(jnp.float32)
    for (w, b) in params["convs"]:
        x = jax.lax.conv_general_dilated(
            x, w, window_strides=(1, 1), padding="SAME",
            dimension_numbers=("NHWC", "HWIO", "NHWC"))
        x = jnp.maximum(x + b, 0.0)
        x = jax.lax.reduce_window(x, -jnp.inf, jax.lax.max,
                                  (1, 2, 2, 1), (1, 2, 2, 1), "VALID")
    g = jnp.mean(x, axis=(1, 2))
    h = jnp.maximum(g @ params["w1"] + params["b1"], 0.0)
    return h @ params["w2"] + params["b2"]


if __name__ == "__main__":
    key = jax.random.PRNGKey(0)
    kx, kp = jax.random.split(key)

    # Shapes consistent with the module: batch=2, 1 input channel, 32x32.
    x = jax.random.normal(kx, (2, 1, 32, 32), jnp.float32)
    params = init_params(kp)

    out = jax.block_until_ready(jax.jit(ecg_cnn_forward)(x, params))
    assert out.shape == (2, NUM_CLASSES)

    ref = reference_forward(x, params)
    assert jnp.allclose(out, ref, rtol=1e-2, atol=1e-2), (out, ref)

    print("KERNEL_OK")
</pallas_src>

<mosaic_0001>
module attributes {stable_mosaic.version = 11 : i64} {
  func.func @_ecg_kernel(%arg0: i32, %arg1: memref<1024x9xf32, #tpu.memory_space<vmem>>, %arg2: memref<9x32xf32, #tpu.memory_space<vmem>>, %arg3: memref<1x32xf32, #tpu.memory_space<vmem>>, %arg4: memref<288x64xf32, #tpu.memory_space<vmem>>, %arg5: memref<1x64xf32, #tpu.memory_space<vmem>>, %arg6: memref<576x128xf32, #tpu.memory_space<vmem>>, %arg7: memref<1x128xf32, #tpu.memory_space<vmem>>, %arg8: memref<128x64xf32, #tpu.memory_space<vmem>>, %arg9: memref<1x64xf32, #tpu.memory_space<vmem>>, %arg10: memref<64x4xf32, #tpu.memory_space<vmem>>, %arg11: memref<1x4xf32, #tpu.memory_space<vmem>>, %arg12: memref<1x1x4xf32, #tpu.memory_space<vmem>>, %arg13: memref<1x18x18x32xf32, #tpu.memory_space<vmem>>, %arg14: memref<1x10x10x64xf32, #tpu.memory_space<vmem>>, %arg15: memref<256x288xf32, #tpu.memory_space<vmem>>, %arg16: memref<64x576xf32, #tpu.memory_space<vmem>>, %arg17: memref<512x32xf32, #tpu.memory_space<vmem>>, %arg18: memref<128x64xf32, #tpu.memory_space<vmem>>, %arg19: memref<32x128xf32, #tpu.memory_space<vmem>>) attributes {dimension_semantics = [#tpu.dimension_semantics<parallel>], iteration_bounds = array<i64: 2>, scalar_prefetch = 0 : i64, scratch_operands = 7 : i64, tpu.core_type = #tpu.core_type<tc>, window_params = [{transform_indices = @transform_0, window_bounds = array<i64: 1024, 9>}, {pipeline_mode = #tpu.pipeline_mode<synchronous>, transform_indices = @transform_1, window_bounds = array<i64: 9, 32>}, {pipeline_mode = #tpu.pipeline_mode<synchronous>, transform_indices = @transform_2, window_bounds = array<i64: 1, 32>}, {pipeline_mode = #tpu.pipeline_mode<synchronous>, transform_indices = @transform_3, window_bounds = array<i64: 288, 64>}, {pipeline_mode = #tpu.pipeline_mode<synchronous>, transform_indices = @transform_4, window_bounds = array<i64: 1, 64>}, {pipeline_mode = #tpu.pipeline_mode<synchronous>, transform_indices = @transform_5, window_bounds = array<i64: 576, 128>}, {pipeline_mode = #tpu.pipeline_mode<synchronous>, transform_indices = @transform_6, window_bounds = array<i64: 1, 128>}, {pipeline_mode = #tpu.pipeline_mode<synchronous>, transform_indices = @transform_7, window_bounds = array<i64: 128, 64>}, {pipeline_mode = #tpu.pipeline_mode<synchronous>, transform_indices = @transform_8, window_bounds = array<i64: 1, 64>}, {pipeline_mode = #tpu.pipeline_mode<synchronous>, transform_indices = @transform_9, window_bounds = array<i64: 64, 4>}, {pipeline_mode = #tpu.pipeline_mode<synchronous>, transform_indices = @transform_10, window_bounds = array<i64: 1, 4>}, {transform_indices = @transform_11, window_bounds = array<i64: 1, 1, 4>}]} {
    %cst = arith.constant 0.000000e+00 : f32
    %0 = vector.broadcast %cst : f32 to vector<1x18x18x32xf32>
    %c0 = arith.constant 0 : index
    %c0_0 = arith.constant 0 : index
    %c0_1 = arith.constant 0 : index
    %c0_2 = arith.constant 0 : index
    %1 = vector.load %arg13[%c0, %c0_0, %c0_1, %c0_2] : memref<1x18x18x32xf32, #tpu.memory_space<vmem>>, vector<1x18x18x32xf32>
    tpu.vector_store %arg13[%c0, %c0_0, %c0_1, %c0_2], %0 {strides = array<i32>} : memref<1x18x18x32xf32, #tpu.memory_space<vmem>>, vector<1x18x18x32xf32>,
    %cst_3 = arith.constant 0.000000e+00 : f32
    %2 = vector.broadcast %cst_3 : f32 to vector<1x10x10x64xf32>
    %c0_4 = arith.constant 0 : index
    %c0_5 = arith.constant 0 : index
    %c0_6 = arith.constant 0 : index
    %c0_7 = arith.constant 0 : index
    %3 = vector.load %arg14[%c0_4, %c0_5, %c0_6, %c0_7] : memref<1x10x10x64xf32, #tpu.memory_space<vmem>>, vector<1x10x10x64xf32>
    tpu.vector_store %arg14[%c0_4, %c0_5, %c0_6, %c0_7], %2 {strides = array<i32>} : memref<1x10x10x64xf32, #tpu.memory_space<vmem>>, vector<1x10x10x64xf32>,
    %c0_8 = arith.constant 0 : index
    %c0_9 = arith.constant 0 : index
    %4 = vector.load %arg1[%c0_8, %c0_9] : memref<1024x9xf32, #tpu.memory_space<vmem>>, vector<1024x9xf32>
    %c0_10 = arith.constant 0 : index
    %c0_11 = arith.constant 0 : index
    %5 = vector.load %arg2[%c0_10, %c0_11] : memref<9x32xf32, #tpu.memory_space<vmem>>, vector<9x32xf32>
    %cst_12 = arith.constant dense<0.000000e+00> : vector<1024x32xf32>
    %6 = tpu.matmul %4, %5, %cst_12 {dimension_numbers = #tpu.dot_dimension_numbers<[1], [0], [0], [1], [0, 0, 1, 1], [], []>} : vector<1024x9xf32>, vector<9x32xf32>, vector<1024x32xf32> -> vector<1024x32xf32>
    %c0_13 = arith.constant 0 : index
    %c0_14 = arith.constant 0 : index
    %7 = vector.load %arg3[%c0_13, %c0_14] : memref<1x32xf32, #tpu.memory_space<vmem>>, vector<1x32xf32>
    %8 = vector.broadcast %7 : vector<1x32xf32> to vector<1024x32xf32>
    %9 = arith.addf %6, %8 : vector<1024x32xf32>
    %cst_15 = arith.constant 0.000000e+00 : f32
    %10 = vector.broadcast %cst_15 : f32 to vector<1024x32xf32>
    %11 = arith.maximumf %9, %10 : vector<1024x32xf32>
    %12 = vector.shape_cast %11 : vector<1024x32xf32> to vector<16x2x32x32xf32>
    %13 = vector.extract_strided_slice %12 {offsets = [0, 0, 0, 0], sizes = [16, 1, 32, 32], strides = [1, 1, 1, 1]} : vector<16x2x32x32xf32> to vector<16x1x32x32xf32>
    %14 = vector.shape_cast %13 : vector<16x1x32x32xf32> to vector<16x32x32xf32>
    %15 = vector.extract_strided_slice %12 {offsets = [0, 1, 0, 0], sizes = [16, 1, 32, 32], strides = [1, 1, 1, 1]} : vector<16x2x32x32xf32> to vector<16x1x32x32xf32>
    %16 = vector.shape_cast %15 : vector<16x1x32x32xf32> to vector<16x32x32xf32>
    %17 = arith.maximumf %14, %16 : vector<16x32x32xf32>
    %18 = vector.shape_cast %17 : vector<16x32x32xf32> to vector<512x32xf32>
    %c0_16 = arith.constant 0 : index
    %c0_17 = arith.constant 0 : index
    %19 = vector.load %arg17[%c0_16, %c0_17] : memref<512x32xf32, #tpu.memory_space<vmem>>, vector<512x32xf32>
    tpu.vector_store %arg17[%c0_16, %c0_17], %18 {strides = array<i32>} : memref<512x32xf32, #tpu.memory_space<vmem>>, vector<512x32xf32>,
    %c0_18 = arith.constant 0 : index
    %c0_19 = arith.constant 0 : index
    %20 = tpu.strided_load %arg17[%c0_18, %c0_19] {strides = array<i32: 2, 1>} : memref<512x32xf32, #tpu.memory_space<vmem>>, vector<256x32xf32>
    %c1 = arith.constant 1 : index
    %c0_20 = arith.constant 0 : index
    %21 = tpu.strided_load %arg17[%c1, %c0_20] {strides = array<i32: 2, 1>} : memref<512x32xf32, #tpu.memory_space<vmem>>, vector<256x32xf32>
    %22 = arith.maximumf %20, %21 : vector<256x32xf32>
    %23 = vector.shape_cast %22 : vector<256x32xf32> to vector<1x16x16x32xf32>
    %c0_21 = arith.constant 0 : index
    %c1_22 = arith.constant 1 : index
    %c1_23 = arith.constant 1 : index
    %c0_24 = arith.constant 0 : index
    %24 = vector.load %arg13[%c0_21, %c1_22, %c1_23, %c0_24] : memref<1x18x18x32xf32, #tpu.memory_space<vmem>>, vector<1x16x16x32xf32>
    tpu.vector_store %arg13[%c0_21, %c1_22, %c1_23, %c0_24], %23 {strides = array<i32>} : memref<1x18x18x32xf32, #tpu.memory_space<vmem>>, vector<1x16x16x32xf32>,
    %c0_25 = arith.constant 0 : index
    %c0_26 = arith.constant 0 : index
    %c0_27 = arith.constant 0 : index
    %c0_28 = arith.constant 0 : index
    %25 = vector.load %arg13[%c0_25, %c0_26, %c0_27, %c0_28] : memref<1x18x18x32xf32, #tpu.memory_space<vmem>>, vector<1x16x16x32xf32>
    %26 = vector.shape_cast %25 : vector<1x16x16x32xf32> to vector<256x32xf32>
    %c0_29 = arith.constant 0 : index
    %c0_30 = arith.constant 0 : index
    %27 = vector.load %arg15[%c0_29, %c0_30] : memref<256x288xf32, #tpu.memory_space<vmem>>, vector<256x32xf32>
    tpu.vector_store %arg15[%c0_29, %c0_30], %26 {strides = array<i32>} : memref<256x288xf32, #tpu.memory_space<vmem>>, vector<256x32xf32>,
    %c0_31 = arith.constant 0 : index
    %c0_32 = arith.constant 0 : index
    %c1_33 = arith.constant 1 : index
    %c0_34 = arith.constant 0 : index
    %28 = vector.load %arg13[%c0_31, %c0_32, %c1_33, %c0_34] : memref<1x18x18x32xf32, #tpu.memory_space<vmem>>, vector<1x16x16x32xf32>
    %29 = vector.shape_cast %28 : vector<1x16x16x32xf32> to vector<256x32xf32>
    %c0_35 = arith.constant 0 : index
    %c32 = arith.constant 32 : index
    %30 = vector.load %arg15[%c0_35, %c32] : memref<256x288xf32, #tpu.memory_space<vmem>>, vector<256x32xf32>
    tpu.vector_store %arg15[%c0_35, %c32], %29 {strides = array<i32>} : memref<256x288xf32, #tpu.memory_space<vmem>>, vector<256x32xf32>,
    %c0_36 = arith.constant 0 : index
    %c0_37 = arith.constant 0 : index
    %c2 = arith.constant 2 : index
    %c0_38 = arith.constant 0 : index
    %31 = vector.load %arg13[%c0_36, %c0_37, %c2, %c0_38] : memref<1x18x18x32xf32, #tpu.memory_space<vmem>>, vector<1x16x16x32xf32>
    %32 = vector.shape_cast %31 : vector<1x16x16x32xf32> to vector<256x32xf32>
    %c0_39 = arith.constant 0 : index
    %c64 = arith.constant 64 : index
    %33 = vector.load %arg15[%c0_39, %c64] : memref<256x288xf32, #tpu.memory_space<vmem>>, vector<256x32xf32>
    tpu.vector_store %arg15[%c0_39, %c64], %32 {strides = array<i32>} : memref<256x288xf32, #tpu.memory_space<vmem>>, vector<256x32xf32>,
    %c0_40 = arith.constant 0 : index
    %c1_41 = arith.constant 1 : index
    %c0_42 = arith.constant 0 : index
    %c0_43 = arith.constant 0 : index
    %34 = vector.load %arg13[%c0_40, %c1_41, %c0_42, %c0_43] : memref<1x18x18x32xf32, #tpu.memory_space<vmem>>, vector<1x16x16x32xf32>
    %35 = vector.shape_cast %34 : vector<1x16x16x32xf32> to vector<256x32xf32>
    %c0_44 = arith.constant 0 : index
    %c96 = arith.constant 96 : index
    %36 = vector.load %arg15[%c0_44, %c96] : memref<256x288xf32, #tpu.memory_space<vmem>>, vector<256x32xf32>
    tpu.vector_store %arg15[%c0_44, %c96], %35 {strides = array<i32>} : memref<256x288xf32, #tpu.memory_space<vmem>>, vector<256x32xf32>,
    %c0_45 = arith.constant 0 : index
    %c1_46 = arith.constant 1 : index
    %c1_47 = arith.constant 1 : index
    %c0_48 = arith.constant 0 : index
    %37 = vector.load %arg13[%c0_45, %c1_46, %c1_47, %c0_48] : memref<1x18x18x32xf32, #tpu.memory_space<vmem>>, vector<1x16x16x32xf32>
    %38 = vector.shape_cast %37 : vector<1x16x16x32xf32> to vector<256x32xf32>
    %c0_49 = arith.constant 0 : index
    %c128 = arith.constant 128 : index
    %39 = vector.load %arg15[%c0_49, %c128] : memref<256x288xf32, #tpu.memory_space<vmem>>, vector<256x32xf32>
    tpu.vector_store %arg15[%c0_49, %c128], %38 {strides = array<i32>} : memref<256x288xf32, #tpu.memory_space<vmem>>, vector<256x32xf32>,
    %c0_50 = arith.constant 0 : index
    %c1_51 = arith.constant 1 : index
    %c2_52 = arith.constant 2 : index
    %c0_53 = arith.constant 0 : index
    %40 = vector.load %arg13[%c0_50, %c1_51, %c2_52, %c0_53] : memref<1x18x18x32xf32, #tpu.memory_space<vmem>>, vector<1x16x16x32xf32>
    %41 = vector.shape_cast %40 : vector<1x16x16x32xf32> to vector<256x32xf32>
    %c0_54 = arith.constant 0 : index
    %c160 = arith.constant 160 : index
    %42 = vector.load %arg15[%c0_54, %c160] : memref<256x288xf32, #tpu.memory_space<vmem>>, vector<256x32xf32>
    tpu.vector_store %arg15[%c0_54, %c160], %41 {strides = array<i32>} : memref<256x288xf32, #tpu.memory_space<vmem>>, vector<256x32xf32>,
    %c0_55 = arith.constant 0 : index
    %c2_56 = arith.constant 2 : index
    %c0_57 = arith.constant 0 : index
    %c0_58 = arith.constant 0 : index
    %43 = vector.load %arg13[%c0_55, %c2_56, %c0_57, %c0_58] : memref<1x18x18x32xf32, #tpu.memory_space<vmem>>, vector<1x16x16x32xf32>
    %44 = vector.shape_cast %43 : vector<1x16x16x32xf32> to vector<256x32xf32>
    %c0_59 = arith.constant 0 : index
    %c192 = arith.constant 192 : index
    %45 = vector.load %arg15[%c0_59, %c192] : memref<256x288xf32, #tpu.memory_space<vmem>>, vector<256x32xf32>
    tpu.vector_store %arg15[%c0_59, %c192], %44 {strides = array<i32>} : memref<256x288xf32, #tpu.memory_space<vmem>>, vector<256x32xf32>,
    %c0_60 = arith.constant 0 : index
    %c2_61 = arith.constant 2 : index
    %c1_62 = arith.constant 1 : index
    %c0_63 = arith.constant 0 : index
    %46 = vector.load %arg13[%c0_60, %c2_61, %c1_62, %c0_63] : memref<1x18x18x32xf32, #tpu.memory_space<vmem>>, vector<1x16x16x32xf32>
    %47 = vector.shape_cast %46 : vector<1x16x16x32xf32> to vector<256x32xf32>
    %c0_64 = arith.constant 0 : index
    %c224 = arith.constant 224 : index
    %48 = vector.load %arg15[%c0_64, %c224] : memref<256x288xf32, #tpu.memory_space<vmem>>, vector<256x32xf32>
    tpu.vector_store %arg15[%c0_64, %c224], %47 {strides = array<i32>} : memref<256x288xf32, #tpu.memory_space<vmem>>, vector<256x32xf32>,
    %c0_65 = arith.constant 0 : index
    %c2_66 = arith.constant 2 : index
    %c2_67 = arith.constant 2 : index
    %c0_68 = arith.constant 0 : index
    %49 = vector.load %arg13[%c0_65, %c2_66, %c2_67, %c0_68] : memref<1x18x18x32xf32, #tpu.memory_space<vmem>>, vector<1x16x16x32xf32>
    %50 = vector.shape_cast %49 : vector<1x16x16x32xf32> to vector<256x32xf32>
    %c0_69 = arith.constant 0 : index
    %c256 = arith.constant 256 : index
    %51 = vector.load %arg15[%c0_69, %c256] : memref<256x288xf32, #tpu.memory_space<vmem>>, vector<256x32xf32>
    tpu.vector_store %arg15[%c0_69, %c256], %50 {strides = array<i32>} : memref<256x288xf32, #tpu.memory_space<vmem>>, vector<256x32xf32>,
    %c0_70 = arith.constant 0 : index
    %c0_71 = arith.constant 0 : index
    %52 = vector.load %arg15[%c0_70, %c0_71] : memref<256x288xf32, #tpu.memory_space<vmem>>, vector<256x288xf32>
    %c0_72 = arith.constant 0 : index
    %c0_73 = arith.constant 0 : index
    %53 = vector.load %arg4[%c0_72, %c0_73] : memref<288x64xf32, #tpu.memory_space<vmem>>, vector<288x64xf32>
    %cst_74 = arith.constant dense<0.000000e+00> : vector<256x64xf32>
    %54 = tpu.matmul %52, %53, %cst_74 {dimension_numbers = #tpu.dot_dimension_numbers<[1], [0], [0], [1], [0, 0, 1, 1], [], []>} : vector<256x288xf32>, vector<288x64xf32>, vector<256x64xf32> -> vector<256x64xf32>
    %c0_75 = arith.constant 0 : index
    %c0_76 = arith.constant 0 : index
    %55 = vector.load %arg5[%c0_75, %c0_76] : memref<1x64xf32, #tpu.memory_space<vmem>>, vector<1x64xf32>
    %56 = vector.broadcast %55 : vector<1x64xf32> to vector<256x64xf32>
    %57 = arith.addf %54, %56 : vector<256x64xf32>
    %cst_77 = arith.constant 0.000000e+00 : f32
    %58 = vector.broadcast %cst_77 : f32 to vector<256x64xf32>
    %59 = arith.maximumf %57, %58 : vector<256x64xf32>
    %60 = vector.shape_cast %59 : vector<256x64xf32> to vector<8x2x16x64xf32>
    %61 = vector.extract_strided_slice %60 {offsets = [0, 0, 0, 0], sizes = [8, 1, 16, 64], strides = [1, 1, 1, 1]} : vector<8x2x16x64xf32> to vector<8x1x16x64xf32>
    %62 = vector.shape_cast %61 : vector<8x1x16x64xf32> to vector<8x16x64xf32>
    %63 = vector.extract_strided_slice %60 {offsets = [0, 1, 0, 0], sizes = [8, 1, 16, 64], strides = [1, 1, 1, 1]} : vector<8x2x16x64xf32> to vector<8x1x16x64xf32>
    %64 = vector.shape_cast %63 : vector<8x1x16x64xf32> to vector<8x16x64xf32>
    %65 = arith.maximumf %62, %64 : vector<8x16x64xf32>
    %66 = vector.shape_cast %65 : vector<8x16x64xf32> to vector<128x64xf32>
    %c0_78 = arith.constant 0 : index
    %c0_79 = arith.constant 0 : index
    %67 = vector.load %arg18[%c0_78, %c0_79] : memref<128x64xf32, #tpu.memory_space<vmem>>, vector<128x64xf32>
    tpu.vector_store %arg18[%c0_78, %c0_79], %66 {strides = array<i32>} : memref<128x64xf32, #tpu.memory_space<vmem>>, vector<128x64xf32>,
    %c0_80 = arith.constant 0 : index
    %c0_81 = arith.constant 0 : index
    %68 = tpu.strided_load %arg18[%c0_80, %c0_81] {strides = array<i32: 2, 1>} : memref<128x64xf32, #tpu.memory_space<vmem>>, vector<64x64xf32>
    %c1_82 = arith.constant 1 : index
    %c0_83 = arith.constant 0 : index
    %69 = tpu.strided_load %arg18[%c1_82, %c0_83] {strides = array<i32: 2, 1>} : memref<128x64xf32, #tpu.memory_space<vmem>>, vector<64x64xf32>
    %70 = arith.maximumf %68, %69 : vector<64x64xf32>
    %71 = vector.shape_cast %70 : vector<64x64xf32> to vector<1x8x8x64xf32>
    %c0_84 = arith.constant 0 : index
    %c1_85 = arith.constant 1 : index
    %c1_86 = arith.constant 1 : index
    %c0_87 = arith.constant 0 : index
    %72 = vector.load %arg14[%c0_84, %c1_85, %c1_86, %c0_87] : memref<1x10x10x64xf32, #tpu.memory_space<vmem>>, vector<1x8x8x64xf32>
    tpu.vector_store %arg14[%c0_84, %c1_85, %c1_86, %c0_87], %71 {strides = array<i32>} : memref<1x10x10x64xf32, #tpu.memory_space<vmem>>, vector<1x8x8x64xf32>,
    %c0_88 = arith.constant 0 : index
    %c0_89 = arith.constant 0 : index
    %c0_90 = arith.constant 0 : index
    %c0_91 = arith.constant 0 : index
    %73 = vector.load %arg14[%c0_88, %c0_89, %c0_90, %c0_91] : memref<1x10x10x64xf32, #tpu.memory_space<vmem>>, vector<1x8x8x64xf32>
    %74 = vector.shape_cast %73 : vector<1x8x8x64xf32> to vector<64x64xf32>
    %c0_92 = arith.constant 0 : index
    %c0_93 = arith.constant 0 : index
    %75 = vector.load %arg16[%c0_92, %c0_93] : memref<64x576xf32, #tpu.memory_space<vmem>>, vector<64x64xf32>
    tpu.vector_store %arg16[%c0_92, %c0_93], %74 {strides = array<i32>} : memref<64x576xf32, #tpu.memory_space<vmem>>, vector<64x64xf32>,
    %c0_94 = arith.constant 0 : index
    %c0_95 = arith.constant 0 : index
    %c1_96 = arith.constant 1 : index
    %c0_97 = arith.constant 0 : index
    %76 = vector.load %arg14[%c0_94, %c0_95, %c1_96, %c0_97] : memref<1x10x10x64xf32, #tpu.memory_space<vmem>>, vector<1x8x8x64xf32>
    %77 = vector.shape_cast %76 : vector<1x8x8x64xf32> to vector<64x64xf32>
    %c0_98 = arith.constant 0 : index
    %c64_99 = arith.constant 64 : index
    %78 = vector.load %arg16[%c0_98, %c64_99] : memref<64x576xf32, #tpu.memory_space<vmem>>, vector<64x64xf32>
    tpu.vector_store %arg16[%c0_98, %c64_99], %77 {strides = array<i32>} : memref<64x576xf32, #tpu.memory_space<vmem>>, vector<64x64xf32>,
    %c0_100 = arith.constant 0 : index
    %c0_101 = arith.constant 0 : index
    %c2_102 = arith.constant 2 : index
    %c0_103 = arith.constant 0 : index
    %79 = vector.load %arg14[%c0_100, %c0_101, %c2_102, %c0_103] : memref<1x10x10x64xf32, #tpu.memory_space<vmem>>, vector<1x8x8x64xf32>
    %80 = vector.shape_cast %79 : vector<1x8x8x64xf32> to vector<64x64xf32>
    %c0_104 = arith.constant 0 : index
    %c128_105 = arith.constant 128 : index
    %81 = vector.load %arg16[%c0_104, %c128_105] : memref<64x576xf32, #tpu.memory_space<vmem>>, vector<64x64xf32>
    tpu.vector_store %arg16[%c0_104, %c128_105], %80 {strides = array<i32>} : memref<64x576xf32, #tpu.memory_space<vmem>>, vector<64x64xf32>,
    %c0_106 = arith.constant 0 : index
    %c1_107 = arith.constant 1 : index
    %c0_108 = arith.constant 0 : index
    %c0_109 = arith.constant 0 : index
    %82 = vector.load %arg14[%c0_106, %c1_107, %c0_108, %c0_109] : memref<1x10x10x64xf32, #tpu.memory_space<vmem>>, vector<1x8x8x64xf32>
    %83 = vector.shape_cast %82 : vector<1x8x8x64xf32> to vector<64x64xf32>
    %c0_110 = arith.constant 0 : index
    %c192_111 = arith.constant 192 : index
    %84 = vector.load %arg16[%c0_110, %c192_111] : memref<64x576xf32, #tpu.memory_space<vmem>>, vector<64x64xf32>
    tpu.vector_store %arg16[%c0_110, %c192_111], %83 {strides = array<i32>} : memref<64x576xf32, #tpu.memory_space<vmem>>, vector<64x64xf32>,
    %c0_112 = arith.constant 0 : index
    %c1_113 = arith.constant 1 : index
    %c1_114 = arith.constant 1 : index
    %c0_115 = arith.constant 0 : index
    %85 = vector.load %arg14[%c0_112, %c1_113, %c1_114, %c0_115] : memref<1x10x10x64xf32, #tpu.memory_space<vmem>>, vector<1x8x8x64xf32>
    %86 = vector.shape_cast %85 : vector<1x8x8x64xf32> to vector<64x64xf32>
    %c0_116 = arith.constant 0 : index
    %c256_117 = arith.constant 256 : index
    %87 = vector.load %arg16[%c0_116, %c256_117] : memref<64x576xf32, #tpu.memory_space<vmem>>, vector<64x64xf32>
    tpu.vector_store %arg16[%c0_116, %c256_117], %86 {strides = array<i32>} : memref<64x576xf32, #tpu.memory_space<vmem>>, vector<64x64xf32>,
    %c0_118 = arith.constant 0 : index
    %c1_119 = arith.constant 1 : index
    %c2_120 = arith.constant 2 : index
    %c0_121 = arith.constant 0 : index
    %88 = vector.load %arg14[%c0_118, %c1_119, %c2_120, %c0_121] : memref<1x10x10x64xf32, #tpu.memory_space<vmem>>, vector<1x8x8x64xf32>
    %89 = vector.shape_cast %88 : vector<1x8x8x64xf32> to vector<64x64xf32>
    %c0_122 = arith.constant 0 : index
    %c320 = arith.constant 320 : index
    %90 = vector.load %arg16[%c0_122, %c320] : memref<64x576xf32, #tpu.memory_space<vmem>>, vector<64x64xf32>
    tpu.vector_store %arg16[%c0_122, %c320], %89 {strides = array<i32>} : memref<64x576xf32, #tpu.memory_space<vmem>>, vector<64x64xf32>,
    %c0_123 = arith.constant 0 : index
    %c2_124 = arith.constant 2 : index
    %c0_125 = arith.constant 0 : index
    %c0_126 = arith.constant 0 : index
    %91 = vector.load %arg14[%c0_123, %c2_124, %c0_125, %c0_126] : memref<1x10x10x64xf32, #tpu.memory_space<vmem>>, vector<1x8x8x64xf32>
    %92 = vector.shape_cast %91 : vector<1x8x8x64xf32> to vector<64x64xf32>
    %c0_127 = arith.constant 0 : index
    %c384 = arith.constant 384 : index
    %93 = vector.load %arg16[%c0_127, %c384] : memref<64x576xf32, #tpu.memory_space<vmem>>, vector<64x64xf32>
    tpu.vector_store %arg16[%c0_127, %c384], %92 {strides = array<i32>} : memref<64x576xf32, #tpu.memory_space<vmem>>, vector<64x64xf32>,
    %c0_128 = arith.constant 0 : index
    %c2_129 = arith.constant 2 : index
    %c1_130 = arith.constant 1 : index
    %c0_131 = arith.constant 0 : index
    %94 = vector.load %arg14[%c0_128, %c2_129, %c1_130, %c0_131] : memref<1x10x10x64xf32, #tpu.memory_space<vmem>>, vector<1x8x8x64xf32>
    %95 = vector.shape_cast %94 : vector<1x8x8x64xf32> to vector<64x64xf32>
    %c0_132 = arith.constant 0 : index
    %c448 = arith.constant 448 : index
    %96 = vector.load %arg16[%c0_132, %c448] : memref<64x576xf32, #tpu.memory_space<vmem>>, vector<64x64xf32>
    tpu.vector_store %arg16[%c0_132, %c448], %95 {strides = array<i32>} : memref<64x576xf32, #tpu.memory_space<vmem>>, vector<64x64xf32>,
    %c0_133 = arith.constant 0 : index
    %c2_134 = arith.constant 2 : index
    %c2_135 = arith.constant 2 : index
    %c0_136 = arith.constant 0 : index
    %97 = vector.load %arg14[%c0_133, %c2_134, %c2_135, %c0_136] : memref<1x10x10x64xf32, #tpu.memory_space<vmem>>, vector<1x8x8x64xf32>
    %98 = vector.shape_cast %97 : vector<1x8x8x64xf32> to vector<64x64xf32>
    %c0_137 = arith.constant 0 : index
    %c512 = arith.constant 512 : index
    %99 = vector.load %arg16[%c0_137, %c512] : memref<64x576xf32, #tpu.memory_space<vmem>>, vector<64x64xf32>
    tpu.vector_store %arg16[%c0_137, %c512], %98 {strides = array<i32>} : memref<64x576xf32, #tpu.memory_space<vmem>>, vector<64x64xf32>,
    %c0_138 = arith.constant 0 : index
    %c0_139 = arith.constant 0 : index
    %100 = vector.load %arg16[%c0_138, %c0_139] : memref<64x576xf32, #tpu.memory_space<vmem>>, vector<64x576xf32>
    %c0_140 = arith.constant 0 : index
    %c0_141 = arith.constant 0 : index
    %101 = vector.load %arg6[%c0_140, %c0_141] : memref<576x128xf32, #tpu.memory_space<vmem>>, vector<576x128xf32>
    %cst_142 = arith.constant dense<0.000000e+00> : vector<64x128xf32>
    %102 = tpu.matmul %100, %101, %cst_142 {dimension_numbers = #tpu.dot_dimension_numbers<[1], [0], [0], [1], [0, 0, 1, 1], [], []>} : vector<64x576xf32>, vector<576x128xf32>, vector<64x128xf32> -> vector<64x128xf32>
    %c0_143 = arith.constant 0 : index
    %c0_144 = arith.constant 0 : index
    %103 = vector.load %arg7[%c0_143, %c0_144] : memref<1x128xf32, #tpu.memory_space<vmem>>, vector<1x128xf32>
    %104 = vector.broadcast %103 : vector<1x128xf32> to vector<64x128xf32>
    %105 = arith.addf %102, %104 : vector<64x128xf32>
    %cst_145 = arith.constant 0.000000e+00 : f32
    %106 = vector.broadcast %cst_145 : f32 to vector<64x128xf32>
    %107 = arith.maximumf %105, %106 : vector<64x128xf32>
    %108 = vector.shape_cast %107 : vector<64x128xf32> to vector<4x2x8x128xf32>
    %109 = vector.extract_strided_slice %108 {offsets = [0, 0, 0, 0], sizes = [4, 1, 8, 128], strides = [1, 1, 1, 1]} : vector<4x2x8x128xf32> to vector<4x1x8x128xf32>
    %110 = vector.shape_cast %109 : vector<4x1x8x128xf32> to vector<4x8x128xf32>
    %111 = vector.extract_strided_slice %108 {offsets = [0, 1, 0, 0], sizes = [4, 1, 8, 128], strides = [1, 1, 1, 1]} : vector<4x2x8x128xf32> to vector<4x1x8x128xf32>
    %112 = vector.shape_cast %111 : vector<4x1x8x128xf32> to vector<4x8x128xf32>
    %113 = arith.maximumf %110, %112 : vector<4x8x128xf32>
    %114 = vector.shape_cast %113 : vector<4x8x128xf32> to vector<32x128xf32>
    %c0_146 = arith.constant 0 : index
    %c0_147 = arith.constant 0 : index
    %115 = vector.load %arg19[%c0_146, %c0_147] : memref<32x128xf32, #tpu.memory_space<vmem>>, vector<32x128xf32>
    tpu.vector_store %arg19[%c0_146, %c0_147], %114 {strides = array<i32>} : memref<32x128xf32, #tpu.memory_space<vmem>>, vector<32x128xf32>,
    %c0_148 = arith.constant 0 : index
    %c0_149 = arith.constant 0 : index
    %116 = tpu.strided_load %arg19[%c0_148, %c0_149] {strides = array<i32: 2, 1>} : memref<32x128xf32, #tpu.memory_space<vmem>>, vector<16x128xf32>
    %c1_150 = arith.constant 1 : index
    %c0_151 = arith.constant 0 : index
    %117 = tpu.strided_load %arg19[%c1_150, %c0_151] {strides = array<i32: 2, 1>} : memref<32x128xf32, #tpu.memory_space<vmem>>, vector<16x128xf32>
    %118 = arith.maximumf %116, %117 : vector<16x128xf32>
    %119 = vector.shape_cast %118 : vector<16x128xf32> to vector<1x16x128xf32>
    %cst_152 = arith.constant dense<0.000000e+00> : vector<1x128xf32>
    %120 = vector.multi_reduction <add>, %119, %cst_152 [1] : vector<1x16x128xf32> to vector<1x128xf32>
    %cst_153 = arith.constant 1.600000e+01 : f32
    %121 = vector.broadcast %cst_153 : f32 to vector<1x128xf32>
    %122 = arith.divf %120, %121 : vector<1x128xf32>
    %c0_154 = arith.constant 0 : index
    %c0_155 = arith.constant 0 : index
    %123 = vector.load %arg8[%c0_154, %c0_155] : memref<128x64xf32, #tpu.memory_space<vmem>>, vector<128x64xf32>
    %cst_156 = arith.constant dense<0.000000e+00> : vector<1x64xf32>
    %124 = tpu.matmul %122, %123, %cst_156 {dimension_numbers = #tpu.dot_dimension_numbers<[1], [0], [0], [1], [0, 0, 1, 1], [], []>} : vector<1x128xf32>, vector<128x64xf32>, vector<1x64xf32> -> vector<1x64xf32>
    %c0_157 = arith.constant 0 : index
    %c0_158 = arith.constant 0 : index
    %125 = vector.load %arg9[%c0_157, %c0_158] : memref<1x64xf32, #tpu.memory_space<vmem>>, vector<1x64xf32>
    %126 = arith.addf %124, %125 : vector<1x64xf32>
    %cst_159 = arith.constant 0.000000e+00 : f32
    %127 = vector.broadcast %cst_159 : f32 to vector<1x64xf32>
    %128 = arith.maximumf %126, %127 : vector<1x64xf32>
    %c0_160 = arith.constant 0 : index
    %c0_161 = arith.constant 0 : index
    %129 = vector.load %arg10[%c0_160, %c0_161] : memref<64x4xf32, #tpu.memory_space<vmem>>, vector<64x4xf32>
    %cst_162 = arith.constant dense<0.000000e+00> : vector<1x4xf32>
    %130 = tpu.matmul %128, %129, %cst_162 {dimension_numbers = #tpu.dot_dimension_numbers<[1], [0], [0], [1], [0, 0, 1, 1], [], []>} : vector<1x64xf32>, vector<64x4xf32>, vector<1x4xf32> -> vector<1x4xf32>
    %c0_163 = arith.constant 0 : index
    %c0_164 = arith.constant 0 : index
    %131 = vector.load %arg11[%c0_163, %c0_164] : memref<1x4xf32, #tpu.memory_space<vmem>>, vector<1x4xf32>
    %132 = arith.addf %130, %131 : vector<1x4xf32>
    %133 = vector.shape_cast %132 : vector<1x4xf32> to vector<1x1x4xf32>
    %c0_165 = arith.constant 0 : index
    %c0_166 = arith.constant 0 : index
    %c0_167 = arith.constant 0 : index
    %134 = vector.load %arg12[%c0_165, %c0_166, %c0_167] : memref<1x1x4xf32, #tpu.memory_space<vmem>>, vector<1x1x4xf32>
    tpu.vector_store %arg12[%c0_165, %c0_166, %c0_167], %133 {strides = array<i32>} : memref<1x1x4xf32, #tpu.memory_space<vmem>>, vector<1x1x4xf32>,
    return
  }
  func.func @transform_0(%arg0: i32) -> (i32, i32) {
    %c0_i32 = arith.constant 0 : i32
    %c0_i32_0 = arith.constant 0 : i32
    return %arg0, %c0_i32 : i32, i32
  }
  func.func @transform_1(%arg0: i32) -> (i32, i32) {
    %c0_i32 = arith.constant 0 : i32
    %c0_i32_0 = arith.constant 0 : i32
    %c0_i32_1 = arith.constant 0 : i32
    return %c0_i32, %c0_i32_0 : i32, i32
  }
  func.func @transform_2(%arg0: i32) -> (i32, i32) {
    %c0_i32 = arith.constant 0 : i32
    %c0_i32_0 = arith.constant 0 : i32
    %c0_i32_1 = arith.constant 0 : i32
    return %c0_i32, %c0_i32_0 : i32, i32
  }
  func.func @transform_3(%arg0: i32) -> (i32, i32) {
    %c0_i32 = arith.constant 0 : i32
    %c0_i32_0 = arith.constant 0 : i32
    %c0_i32_1 = arith.constant 0 : i32
    return %c0_i32, %c0_i32_0 : i32, i32
  }
  func.func @transform_4(%arg0: i32) -> (i32, i32) {
    %c0_i32 = arith.constant 0 : i32
    %c0_i32_0 = arith.constant 0 : i32
    %c0_i32_1 = arith.constant 0 : i32
    return %c0_i32, %c0_i32_0 : i32, i32
  }
  func.func @transform_5(%arg0: i32) -> (i32, i32) {
    %c0_i32 = arith.constant 0 : i32
    %c0_i32_0 = arith.constant 0 : i32
    %c0_i32_1 = arith.constant 0 : i32
    return %c0_i32, %c0_i32_0 : i32, i32
  }
  func.func @transform_6(%arg0: i32) -> (i32, i32) {
    %c0_i32 = arith.constant 0 : i32
    %c0_i32_0 = arith.constant 0 : i32
    %c0_i32_1 = arith.constant 0 : i32
    return %c0_i32, %c0_i32_0 : i32, i32
  }
  func.func @transform_7(%arg0: i32) -> (i32, i32) {
    %c0_i32 = arith.constant 0 : i32
    %c0_i32_0 = arith.constant 0 : i32
    %c0_i32_1 = arith.constant 0 : i32
    return %c0_i32, %c0_i32_0 : i32, i32
  }
  func.func @transform_8(%arg0: i32) -> (i32, i32) {
    %c0_i32 = arith.constant 0 : i32
    %c0_i32_0 = arith.constant 0 : i32
    %c0_i32_1 = arith.constant 0 : i32
    return %c0_i32, %c0_i32_0 : i32, i32
  }
  func.func @transform_9(%arg0: i32) -> (i32, i32) {
    %c0_i32 = arith.constant 0 : i32
    %c0_i32_0 = arith.constant 0 : i32
    %c0_i32_1 = arith.constant 0 : i32
    return %c0_i32, %c0_i32_0 : i32, i32
  }
  func.func @transform_10(%arg0: i32) -> (i32, i32) {
    %c0_i32 = arith.constant 0 : i32
    %c0_i32_0 = arith.constant 0 : i32
    %c0_i32_1 = arith.constant 0 : i32
    return %c0_i32, %c0_i32_0 : i32, i32
  }
  func.func @transform_11(%arg0: i32) -> (i32, i32, i32) {
    %c0_i32 = arith.constant 0 : i32
    %c0_i32_0 = arith.constant 0 : i32
    %c0_i32_1 = arith.constant 0 : i32
    return %arg0, %c0_i32, %c0_i32_0 : i32, i32, i32
  }
}

</mosaic_0001>

<llo_original>
// kernel: ecg_cnn_forward.1
$region0: #{ecg_cnn_forward.1}
  #allocation0 [shape = 'u32[]', space=smem, size = 0x4, offset = 0x4, fixed_abs, tag = 'smem constant byte address 0x4 - core index']
  #allocation1 [shape = 'u32[144,128]{1,0:T(1,128)}', space=vmem, size = 0x12000, scoped, tag = 'internal scratch']
  #allocation2 [shape = 'f32[1,18,18,32]{3,2,1,0:T(8,128)}', space=vmem, size = 0x36000, scoped, tag = 'scratch operand']
  #allocation3 [shape = 'f32[1,10,10,64]{3,2,1,0:T(8,128)}', space=vmem, size = 0x14000, scoped, tag = 'scratch operand']
  #allocation4 [shape = 'f32[256,288]{1,0:T(8,128)}', space=vmem, size = 0x60000, scoped, tag = 'scratch operand']
  #allocation5 [shape = 'f32[64,576]{1,0:T(8,128)}', space=vmem, size = 0x28000, scoped, tag = 'scratch operand']
  #allocation6 [shape = 'f32[512,32]{1,0:T(8,128)}', space=vmem, size = 0x40000, scoped, tag = 'scratch operand']
  #allocation7 [shape = 'f32[128,64]{1,0:T(8,128)}', space=vmem, size = 0x10000, scoped, tag = 'scratch operand']
  #allocation8 [shape = 'f32[32,128]{1,0:T(8,128)}', space=vmem, size = 0x4000, scoped, tag = 'scratch operand']
  %s0 = inlined_call_operand.vmem [shape: f32[2048,9], index: 0, kind: input, shape index: {}]
  %s1 = inlined_call_operand.vmem [shape: f32[9,32], index: 1, kind: input, shape index: {}]
  %s2 = inlined_call_operand.vmem [shape: f32[1,32], index: 2, kind: input, shape index: {}]
  %s3 = inlined_call_operand.vmem [shape: f32[288,64], index: 3, kind: input, shape index: {}]
  %s4 = inlined_call_operand.vmem [shape: f32[1,64], index: 4, kind: input, shape index: {}]
  %s5 = inlined_call_operand.vmem [shape: f32[576,128], index: 5, kind: input, shape index: {}]
  %s6 = inlined_call_operand.vmem [shape: f32[1,128], index: 6, kind: input, shape index: {}]
  %s7 = inlined_call_operand.vmem [shape: f32[128,64], index: 7, kind: input, shape index: {}]
  %s8 = inlined_call_operand.vmem [shape: f32[1,64], index: 8, kind: input, shape index: {}]
  %s9 = inlined_call_operand.vmem [shape: f32[64,4], index: 9, kind: input, shape index: {}]
  %s10 = inlined_call_operand.vmem [shape: f32[1,4], index: 10, kind: input, shape index: {}]
  %s11 = inlined_call_operand.hbm [shape: f32[2,1,4], index: 11, kind: output, shape index: {}]
  %s12 = sld [smem:[#allocation0]]
  $region77: #{ecg_cnn_forward.1} parent=0
    _
  %s14 = ssub.s32 1, %s12
  %s15 = scalar_select 0, %s14, %s12
  $region1: #{ecg_cnn_forward.1} parent=0
    #allocation9 [shape = 'u8[1024]{0}', space=vmem, size = 0x400, scoped, tag = 'output window, operand 0']
    #allocation10 [shape = 's32[2]{0}', space=sflag, size = 0x8, scoped, tag = 'scoped memory for ecg_cnn_forward.1']
    %16 = vsyncpa [#allocation10], 0
    %s17 = scalar_lea.sflag [#allocation10], 1
    %18 = vsyncpa %s17, 0
    loop: start=0, step=1, limit=4
    $region2: #{ecg_cnn_forward.1} parent=1 // loop_pre_header
      _
    $region3: #{ecg_cnn_forward.1} parent=1 // loop_header
      %s20 = sphi 0, %s24
      %p21 = scmp.ge.s32.totalorder %s20, 4
      %s30 = sphi 0, %s32
      %s33 = sphi 0, %s30
      %s34 = sphi 0, %s33
      %s50 = sphi 0, %s34
      %s54 = sphi 0, %s54
      %s56 = sphi 0, %s54
      %s57 = sphi 0, %s56
      %s71 = sphi 0, %s57
      %s75 = sphi 0, %s75
      %s77 = sphi 0, %s75
      %s78 = sphi 0, %s77
      %s92 = sphi 0, %s78
      %s96 = sphi 0, %s96
      %s98 = sphi 0, %s96
      %s99 = sphi 0, %s98
      %s113 = sphi 0, %s99
      %s117 = sphi 0, %s117
      %s119 = sphi 0, %s117
      %s120 = sphi 0, %s119
      %s134 = sphi 0, %s120
      %s138 = sphi 0, %s138
      %s140 = sphi 0, %s138
      %s141 = sphi 0, %s140
      %s155 = sphi 0, %s141
      %s159 = sphi 0, %s159
      %s161 = sphi 0, %s159
      %s162 = sphi 0, %s161
      %s176 = sphi 0, %s162
      %s180 = sphi 0, %s180
      %s182 = sphi 0, %s180
      %s183 = sphi 0, %s182
      %s197 = sphi 0, %s183
      %s201 = sphi 0, %s201
      %s203 = sphi 0, %s201
      %s204 = sphi 0, %s203
      %s218 = sphi 0, %s204
      %s222 = sphi 0, %s222
      %s224 = sphi 0, %s222
      %s225 = sphi 0, %s224
      %s239 = sphi 0, %s225
      %s243 = sphi 0, %s243
      %s245 = sphi 0, %s243
      %s246 = sphi 0, %s245
      %s260 = sphi 0, %s246
      %s266 = sphi 0, %s268
      %s269 = sphi 0, %s266
      %s270 = sphi 0, %s269
      %s286 = sphi 0, %s270
    $region4: #{ecg_cnn_forward.1} parent=1 // loop_header_branch
      %23 = sbr.rel (%p21) target = $region8
    $region5: #{ecg_cnn_forward.1} parent=1 // loop_body
      %s25 = ssub.s32 %s20, 1
      %s26 = ssub.s32 %s20, 2
      %s27 = sadd.s32 %s20, 1
      %s28 = ssub.s32 %s20, %s27
      %p29 = scmp.eq.s32.totalorder %s28, 0
      %s31 = sadd.s32 %s30, 1
      %s32 = scalar_select %p29, %s30, %s31
      %p35 = pneg %p29
      %p36 = scmp.eq.s32.totalorder %s20, 1
      %p37 = por %p35, %p36
      %p38 = scmp.ne.s32.totalorder %s30, %s33
      %p39 = scmp.eq.s32.totalorder %s20, 0
      %p40 = por %p38, %p39
      %p41 = scmp.ne.s32.totalorder %s30, %s33
      %p42 = scmp.eq.s32.totalorder %s25, 1
      %p43 = por %p41, %p42
      %p44 = scmp.ne.s32.totalorder %s33, %s34
      %p45 = scmp.eq.s32.totalorder %s25, 0
      %p46 = por %p44, %p45
      %p47 = scmp.ne.s32.totalorder %s33, %s34
      %p48 = scmp.eq.s32.totalorder %s26, 1
      %p49 = por %p47, %p48
      %p51 = scmp.ne.s32.totalorder %s34, %s50
      %p52 = scmp.eq.s32.totalorder %s26, 0
      %p53 = por %p51, %p52
      %s55 = sadd.s32 %s54, 1
      %p58 = scmp.eq.s32.totalorder %s20, 1
      %p59 = scmp.ne.s32.totalorder %s54, %s56
      %p60 = scmp.eq.s32.totalorder %s20, 0
      %p61 = por %p59, %p60
      %p62 = scmp.ne.s32.totalorder %s54, %s56
      %p63 = scmp.eq.s32.totalorder %s25, 1
      %p64 = por %p62, %p63
      %p65 = scmp.ne.s32.totalorder %s56, %s57
      %p66 = scmp.eq.s32.totalorder %s25, 0
      %p67 = por %p65, %p66
      %p68 = scmp.ne.s32.totalorder %s56, %s57
      %p69 = scmp.eq.s32.totalorder %s26, 1
      %p70 = por %p68, %p69
      %p72 = scmp.ne.s32.totalorder %s57, %s71
      %p73 = scmp.eq.s32.totalorder %s26, 0
      %p74 = por %p72, %p73
      %s76 = sadd.s32 %s75, 1
      %p79 = scmp.eq.s32.totalorder %s20, 1
      %p80 = scmp.ne.s32.totalorder %s75, %s77
      %p81 = scmp.eq.s32.totalorder %s20, 0
      %p82 = por %p80, %p81
      %p83 = scmp.ne.s32.totalorder %s75, %s77
      %p84 = scmp.eq.s32.totalorder %s25, 1
      %p85 = por %p83, %p84
      %p86 = scmp.ne.s32.totalorder %s77, %s78
      %p87 = scmp.eq.s32.totalorder %s25, 0
      %p88 = por %p86, %p87
      %p89 = scmp.ne.s32.totalorder %s77, %s78
      %p90 = scmp.eq.s32.totalorder %s26, 1
      %p91 = por %p89, %p90
      %p93 = scmp.ne.s32.totalorder %s78, %s92
      %p94 = scmp.eq.s32.totalorder %s26, 0
      %p95 = por %p93, %p94
      %s97 = sadd.s32 %s96, 1
      %p100 = scmp.eq.s32.totalorder %s20, 1
      %p101 = scmp.ne.s32.totalorder %s96, %s98
      %p102 = scmp.eq.s32.totalorder %s20, 0
      %p103 = por %p101, %p102
      %p104 = scmp.ne.s32.totalorder %s96, %s98
      %p105 = scmp.eq.s32.totalorder %s25, 1
      %p106 = por %p104, %p105
      %p107 = scmp.ne.s32.totalorder %s98, %s99
      %p108 = scmp.eq.s32.totalorder %s25, 0
      %p109 = por %p107, %p108
      %p110 = scmp.ne.s32.totalorder %s98, %s99
      %p111 = scmp.eq.s32.totalorder %s26, 1
      %p112 = por %p110, %p111
      %p114 = scmp.ne.s32.totalorder %s99, %s113
      %p115 = scmp.eq.s32.totalorder %s26, 0
      %p116 = por %p114, %p115
      %s118 = sadd.s32 %s117, 1
      %p121 = scmp.eq.s32.totalorder %s20, 1
      %p122 = scmp.ne.s32.totalorder %s117, %s119
      %p123 = scmp.eq.s32.totalorder %s20, 0
      %p124 = por %p122, %p123
      %p125 = scmp.ne.s32.totalorder %s117, %s119
      %p126 = scmp.eq.s32.totalorder %s25, 1
      %p127 = por %p125, %p126
      %p128 = scmp.ne.s32.totalorder %s119, %s120
      %p129 = scmp.eq.s32.totalorder %s25, 0
      %p130 = por %p128, %p129
      %p131 = scmp.ne.s32.totalorder %s119, %s120
      %p132 = scmp.eq.s32.totalorder %s26, 1
      %p133 = por %p131, %p132
      %p135 = scmp.ne.s32.totalorder %s120, %s134
      %p136 = scmp.eq.s32.totalorder %s26, 0
      %p137 = por %p135, %p136
      %s139 = sadd.s32 %s138, 1
      %p142 = scmp.eq.s32.totalorder %s20, 1
      %p143 = scmp.ne.s32.totalorder %s138, %s140
      %p144 = scmp.eq.s32.totalorder %s20, 0
      %p145 = por %p143, %p144
      %p146 = scmp.ne.s32.totalorder %s138, %s140
      %p147 = scmp.eq.s32.totalorder %s25, 1
      %p148 = por %p146, %p147
      %p149 = scmp.ne.s32.totalorder %s140, %s141
      %p150 = scmp.eq.s32.totalorder %s25, 0
      %p151 = por %p149, %p150
      %p152 = scmp.ne.s32.totalorder %s140, %s141
      %p153 = scmp.eq.s32.totalorder %s26, 1
      %p154 = por %p152, %p153
      %p156 = scmp.ne.s32.totalorder %s141, %s155
      %p157 = scmp.eq.s32.totalorder %s26, 0
      %p158 = por %p156, %p157
      %s160 = sadd.s32 %s159, 1
      %p163 = scmp.eq.s32.totalorder %s20, 1
      %p164 = scmp.ne.s32.totalorder %s159, %s161
      %p165 = scmp.eq.s32.totalorder %s20, 0
      %p166 = por %p164, %p165
      %p167 = scmp.ne.s32.totalorder %s159, %s161
      %p168 = scmp.eq.s32.totalorder %s25, 1
      %p169 = por %p167, %p168
      %p170 = scmp.ne.s32.totalorder %s161, %s162
      %p171 = scmp.eq.s32.totalorder %s25, 0
      %p172 = por %p170, %p171
      %p173 = scmp.ne.s32.totalorder %s161, %s162
      %p174 = scmp.eq.s32.totalorder %s26, 1
      %p175 = por %p173, %p174
      %p177 = scmp.ne.s32.totalorder %s162, %s176
      %p178 = scmp.eq.s32.totalorder %s26, 0
      %p179 = por %p177, %p178
      %s181 = sadd.s32 %s180, 1
      %p184 = scmp.eq.s32.totalorder %s20, 1
      %p185 = scmp.ne.s32.totalorder %s180, %s182
      %p186 = scmp.eq.s32.totalorder %s20, 0
      %p187 = por %p185, %p186
      %p188 = scmp.ne.s32.totalorder %s180, %s182
      %p189 = scmp.eq.s32.totalorder %s25, 1
      %p190 = por %p188, %p189
      %p191 = scmp.ne.s32.totalorder %s182, %s183
      %p192 = scmp.eq.s32.totalorder %s25, 0
      %p193 = por %p191, %p192
      %p194 = scmp.ne.s32.totalorder %s182, %s183
      %p195 = scmp.eq.s32.totalorder %s26, 1
      %p196 = por %p194, %p195
      %p198 = scmp.ne.s32.totalorder %s183, %s197
      %p199 = scmp.eq.s32.totalorder %s26, 0
      %p200 = por %p198, %p199
      %s202 = sadd.s32 %s201, 1
      %p205 = scmp.eq.s32.totalorder %s20, 1
      %p206 = scmp.ne.s32.totalorder %s201, %s203
      %p207 = scmp.eq.s32.totalorder %s20, 0
      %p208 = por %p206, %p207
      %p209 = scmp.ne.s32.totalorder %s201, %s203
      %p210 = scmp.eq.s32.totalorder %s25, 1
      %p211 = por %p209, %p210
      %p212 = scmp.ne.s32.totalorder %s203, %s204
      %p213 = scmp.eq.s32.totalorder %s25, 0
      %p214 = por %p212, %p213
      %p215 = scmp.ne.s32.totalorder %s203, %s204
      %p216 = scmp.eq.s32.totalorder %s26, 1
      %p217 = por %p215, %p216
      %p219 = scmp.ne.s32.totalorder %s204, %s218
      %p220 = scmp.eq.s32.totalorder %s26, 0
      %p221 = por %p219, %p220
      %s223 = sadd.s32 %s222, 1
      %p226 = scmp.eq.s32.totalorder %s20, 1
      %p227 = scmp.ne.s32.totalorder %s222, %s224
      %p228 = scmp.eq.s32.totalorder %s20, 0
      %p229 = por %p227, %p228
      %p230 = scmp.ne.s32.totalorder %s222, %s224
      %p231 = scmp.eq.s32.totalorder %s25, 1
      %p232 = por %p230, %p231
      %p233 = scmp.ne.s32.totalorder %s224, %s225
      %p234 = scmp.eq.s32.totalorder %s25, 0
      %p235 = por %p233, %p234
      %p236 = scmp.ne.s32.totalorder %s224, %s225
      %p237 = scmp.eq.s32.totalorder %s26, 1
      %p238 = por %p236, %p237
      %p240 = scmp.ne.s32.totalorder %s225, %s239
      %p241 = scmp.eq.s32.totalorder %s26, 0
      %p242 = por %p240, %p241
      %s244 = sadd.s32 %s243, 1
      %p247 = scmp.eq.s32.totalorder %s20, 1
      %p248 = scmp.ne.s32.totalorder %s243, %s245
      %p249 = scmp.eq.s32.totalorder %s20, 0
      %p250 = por %p248, %p249
      %p251 = scmp.ne.s32.totalorder %s243, %s245
      %p252 = scmp.eq.s32.totalorder %s25, 1
      %p253 = por %p251, %p252
      %p254 = scmp.ne.s32.totalorder %s245, %s246
      %p255 = scmp.eq.s32.totalorder %s25, 0
      %p256 = por %p254, %p255
      %p257 = scmp.ne.s32.totalorder %s245, %s246
      %p258 = scmp.eq.s32.totalorder %s26, 1
      %p259 = por %p257, %p258
      %p261 = scmp.ne.s32.totalorder %s246, %s260
      %p262 = scmp.eq.s32.totalorder %s26, 0
      %p263 = por %p261, %p262
      %s264 = ssub.s32 %s20, %s27
      %p265 = scmp.eq.s32.totalorder %s264, 0
      %s267 = sadd.s32 %s266, 1
      %s268 = scalar_select %p265, %s266, %s267
      %p271 = pneg %p265
      %p272 = scmp.eq.s32.totalorder %s20, 1
      %p273 = por %p271, %p272
      %p274 = scmp.ne.s32.totalorder %s266, %s269
      %p275 = scmp.eq.s32.totalorder %s20, 0
      %p276 = por %p274, %p275
      %p277 = scmp.ne.s32.totalorder %s266, %s269
      %p278 = scmp.eq.s32.totalorder %s25, 1
      %p279 = por %p277, %p278
      %p280 = scmp.ne.s32.totalorder %s269, %s270
      %p281 = scmp.eq.s32.totalorder %s25, 0
      %p282 = por %p280, %p281
      %p283 = scmp.ne.s32.totalorder %s269, %s270
      %p284 = scmp.eq.s32.totalorder %s26, 1
      %p285 = por %p283, %p284
      %p287 = scmp.ne.s32.totalorder %s270, %s286
      %p288 = scmp.eq.s32.totalorder %s26, 0
      %p289 = por %p287, %p288
      %p290 = scmp.le.s32.totalorder 1, %s20
      %p291 = scmp.lt.s32.totalorder %s20, 3
      %p292 = pnand %p290, %p291
      %p293 = pneg %p292
      // Predicated region
      $region9: #{ecg_cnn_forward.1} parent=5 // pred_check
        _
      $region10: #{ecg_cnn_forward.1} parent=5 // pred_check_branch
        %295 = sbr.rel (%p292) target = $region12
      $region11: #{ecg_cnn_forward.1} parent=5 // pred_region
        %s296 = ssub.s32 %s20, 1
        // Predicated region
        $region13: #{ecg_cnn_forward.1} parent=11 // pred_check
          %p297 = pneg %p67
        $region14: #{ecg_cnn_forward.1} parent=11 // pred_check_branch
          %299 = sbr.rel (%p297) target = $region16
        $region15: #{ecg_cnn_forward.1} parent=11 // pred_region
          _
        $region16: #{ecg_cnn_forward.1} parent=11 // pred_fallthru
          _
        // Predicated region
        $region17: #{ecg_cnn_forward.1} parent=11 // pred_check
          %p300 = pneg %p88
        $region18: #{ecg_cnn_forward.1} parent=11 // pred_check_branch
          %302 = sbr.rel (%p300) target = $region20
        $region19: #{ecg_cnn_forward.1} parent=11 // pred_region
          _
        $region20: #{ecg_cnn_forward.1} parent=11 // pred_fallthru
          _
        // Predicated region
        $region21: #{ecg_cnn_forward.1} parent=11 // pred_check
          %p303 = pneg %p109
        $region22: #{ecg_cnn_forward.1} parent=11 // pred_check_branch
          %305 = sbr.rel (%p303) target = $region24
        $region23: #{ecg_cnn_forward.1} parent=11 // pred_region
          _
        $region24: #{ecg_cnn_forward.1} parent=11 // pred_fallthru
          _
        // Predicated region
        $region25: #{ecg_cnn_forward.1} parent=11 // pred_check
          %p306 = pneg %p130
        $region26: #{ecg_cnn_forward.1} parent=11 // pred_check_branch
          %308 = sbr.rel (%p306) target = $region28
        $region27: #{ecg_cnn_forward.1} parent=11 // pred_region
          _
        $region28: #{ecg_cnn_forward.1} parent=11 // pred_fallthru
          _
        // Predicated region
        $region29: #{ecg_cnn_forward.1} parent=11 // pred_check
          %p309 = pneg %p151
        $region30: #{ecg_cnn_forward.1} parent=11 // pred_check_branch
          %311 = sbr.rel (%p309) target = $region32
        $region31: #{ecg_cnn_forward.1} parent=11 // pred_region
          _
        $region32: #{ecg_cnn_forward.1} parent=11 // pred_fallthru
          _
        // Predicated region
        $region33: #{ecg_cnn_forward.1} parent=11 // pred_check
          %p312 = pneg %p172
        $region34: #{ecg_cnn_forward.1} parent=11 // pred_check_branch
          %314 = sbr.rel (%p312) target = $region36
        $region35: #{ecg_cnn_forward.1} parent=11 // pred_region
          _
        $region36: #{ecg_cnn_forward.1} parent=11 // pred_fallthru
          _
        // Predicated region
        $region37: #{ecg_cnn_forward.1} parent=11 // pred_check
          %p315 = pneg %p193
        $region38: #{ecg_cnn_forward.1} parent=11 // pred_check_branch
          %317 = sbr.rel (%p315) target = $region40
        $region39: #{ecg_cnn_forward.1} parent=11 // pred_region
          _
        $region40: #{ecg_cnn_forward.1} parent=11 // pred_fallthru
          _
        // Predicated region
        $region41: #{ecg_cnn_forward.1} parent=11 // pred_check
          %p318 = pneg %p214
        $region42: #{ecg_cnn_forward.1} parent=11 // pred_check_branch
          %320 = sbr.rel (%p318) target = $region44
        $region43: #{ecg_cnn_forward.1} parent=11 // pred_region
          _
        $region44: #{ecg_cnn_forward.1} parent=11 // pred_fallthru
          _
        // Predicated region
        $region45: #{ecg_cnn_forward.1} parent=11 // pred_check
          %p321 = pneg %p235
        $region46: #{ecg_cnn_forward.1} parent=11 // pred_check_branch
          %323 = sbr.rel (%p321) target = $region48
        $region47: #{ecg_cnn_forward.1} parent=11 // pred_region
          _
        $region48: #{ecg_cnn_forward.1} parent=11 // pred_fallthru
          _
        // Predicated region
        $region49: #{ecg_cnn_forward.1} parent=11 // pred_check
          %p324 = pneg %p256
        $region50: #{ecg_cnn_forward.1} parent=11 // pred_check_branch
          %326 = sbr.rel (%p324) target = $region52
        $region51: #{ecg_cnn_forward.1} parent=11 // pred_region
          _
        $region52: #{ecg_cnn_forward.1} parent=11 // pred_fallthru
          _
      $region12: #{ecg_cnn_forward.1} parent=5 // pred_fallthru
        _
      %p327 = scmp.lt.s32.totalorder %s20, 2
      // Predicated region
      $region53: #{ecg_cnn_forward.1} parent=5 // pred_check
        %p328 = pneg %p327
      $region54: #{ecg_cnn_forward.1} parent=5 // pred_check_branch
        %330 = sbr.rel (%p328) target = $region56
      $region55: #{ecg_cnn_forward.1} parent=5 // pred_region
        // Predicated region
        $region57: #{ecg_cnn_forward.1} parent=55 // pred_check
          %p331 = pneg %p40
        $region58: #{ecg_cnn_forward.1} parent=55 // pred_check_branch
          %333 = sbr.rel (%p331) target = $region60
        $region59: #{ecg_cnn_forward.1} parent=55 // pred_region
          %s334 = smul.u32 128, %s20
          %p335 = scmp.lt.s32.totalorder %s334, 255
          %s336 = scalar_select %p335, %s334, 255
          %s337 = smul.addr %s336, 8
          %s338 = scalar_lea.vmem %s0, %s337
          %s339 = smul.u32 128, %s20
        $region60: #{ecg_cnn_forward.1} parent=55 // pred_fallthru
          _
      $region56: #{ecg_cnn_forward.1} parent=5 // pred_fallthru
        _
      %p340 = scmp.le.s32.totalorder 1, %s20
      %p341 = scmp.lt.s32.totalorder %s20, 3
      %p342 = pnand %p340, %p341
      %p343 = pneg %p342
      // Predicated region
      $region61: #{ecg_cnn_forward.1} parent=5 // pred_check
        _
      $region62: #{ecg_cnn_forward.1} parent=5 // pred_check_branch
        %345 = sbr.rel (%p342) target = $region64
      $region63: #{ecg_cnn_forward.1} parent=5 // pred_region
        %s346 = ssub.s32 %s20, 1
        %s347 = smul.u32 128, %s25
        %p348 = scmp.lt.s32.totalorder %s347, 255
        %s349 = scalar_select %p348, %s347, 255
        %s350 = smul.addr %s349, 8
        %s351 = scalar_lea.vmem %s0, %s350
        %p352 = pneg %p46
        %p353 = pneg %p43
        %p354 = pneg %p67
        %p355 = pneg %p64
        %p356 = pneg %p88
        %p357 = pneg %p85
        %p358 = pneg %p109
        %p359 = pneg %p106
        %p360 = pneg %p130
        %p361 = pneg %p127
        %p362 = pneg %p151
        %p363 = pneg %p148
        %p364 = pneg %p172
        %p365 = pneg %p169
        %p366 = pneg %p193
        %p367 = pneg %p190
        %p368 = pneg %p214
        %p369 = pneg %p211
        %p370 = pneg %p235
        %p371 = pneg %p232
        %p372 = pneg %p256
        %p373 = pneg %p253
        %p374 = pneg %p282
        %p375 = pneg %p279
        %s376 = sand.u32 %s269, 1
        %s377 = scalar_lea.sflag [#allocation10], %s376
        %s378 = sand.u32 %s269, 1
        %s379 = scalar_lea.vmem [#allocation9], %s378
        %s380 = smul.u32 128, %s25
        %p381 = scmp.lt.s32.totalorder %s380, 255
        %s382 = scalar_select %p381, %s380, 255
        %s383 = smul.addr %s382, 8
        %s384 = scalar_lea.vmem %s0, %s383
        %s385 = smul.u32 128, %s25
        %vm386 = vcmask 261120
        %387 = vst.msk [vmem:[#allocation2] sm:$0xff] %vm386, 0.0
        %388 = vst.msk [vmem:[#allocation2 + $0x8] sm:$0xff] %vm386, 0.0
        %vm389 = vcmask 254976
        %390 = vst.msk [vmem:[#allocation2 + $0x10] sm:$0x3] %vm389, 0.0
        %391 = vst.msk [vmem:[#allocation2 + $0x18] sm:$0xff] %vm386, 0.0
        %392 = vst.msk [vmem:[#allocation2 + $0x20] sm:$0xff] %vm386, 0.0
        %393 = vst.msk [vmem:[#allocation2 + $0x28] sm:$0x3] %vm389, 0.0
        %394 = vst.msk [vmem:[#allocation2 + $0x30] sm:$0xff] %vm386, 0.0
        %395 = vst.msk [vmem:[#allocation2 + $0x38] sm:$0xff] %vm386, 0.0
        %396 = vst.msk [vmem:[#allocation2 + $0x40] sm:$0x3] %vm389, 0.0
        %397 = vst.msk [vmem:[#allocation2 + $0x48] sm:$0xff] %vm386, 0.0
        %398 = vst.msk [vmem:[#allocation2 + $0x50] sm:$0xff] %vm386, 0.0
        %399 = vst.msk [vmem:[#allocation2 + $0x58] sm:$0x3] %vm389, 0.0
        %400 = vst.msk [vmem:[#allocation2 + $0x60] sm:$0xff] %vm386, 0.0
        %401 = vst.msk [vmem:[#allocation2 + $0x68] sm:$0xff] %vm386, 0.0
        %402 = vst.msk [vmem:[#allocation2 + $0x70] sm:$0x3] %vm389, 0.0
        %403 = vst.msk [vmem:[#allocation2 + $0x78] sm:$0xff] %vm386, 0.0
        %404 = vst.msk [vmem:[#allocation2 + $0x80] sm:$0xff] %vm386, 0.0
        %405 = vst.msk [vmem:[#allocation2 + $0x88] sm:$0x3] %vm389, 0.0
        %406 = vst.msk [vmem:[#allocation2 + $0x90] sm:$0xff] %vm386, 0.0
        %407 = vst.msk [vmem:[#allocation2 + $0x98] sm:$0xff] %vm386, 0.0
        %408 = vst.msk [vmem:[#allocation2 + $0xa0] sm:$0x3] %vm389, 0.0
        %409 = vst.msk [vmem:[#allocation2 + $0xa8] sm:$0xff] %vm386, 0.0
        %410 = vst.msk [vmem:[#allocation2 + $0xb0] sm:$0xff] %vm386, 0.0
        %411 = vst.msk [vmem:[#allocation2 + $0xb8] sm:$0x3] %vm389, 0.0
        %412 = vst.msk [vmem:[#allocation2 + $0xc0] sm:$0xff] %vm386, 0.0
        %413 = vst.msk [vmem:[#allocation2 + $0xc8] sm:$0xff] %vm386, 0.0
        %414 = vst.msk [vmem:[#allocation2 + $0xd0] sm:$0x3] %vm389, 0.0
        %415 = vst.msk [vmem:[#allocation2 + $0xd8] sm:$0xff] %vm386, 0.0
        %416 = vst.msk [vmem:[#allocation2 + $0xe0] sm:$0xff] %vm386, 0.0
        %417 = vst.msk [vmem:[#allocation2 + $0xe8] sm:$0x3] %vm389, 0.0
        %418 = vst.msk [vmem:[#allocation2 + $0xf0] sm:$0xff] %vm386, 0.0
        %419 = vst.msk [vmem:[#allocation2 + $0xf8] sm:$0xff] %vm386, 0.0
        %420 = vst.msk [vmem:[#allocation2 + $0x100] sm:$0x3] %vm389, 0.0
        %421 = vst.msk [vmem:[#allocation2 + $0x108] sm:$0xff] %vm386, 0.0
        %422 = vst.msk [vmem:[#allocation2 + $0x110] sm:$0xff] %vm386, 0.0
        %423 = vst.msk [vmem:[#allocation2 + $0x118] sm:$0x3] %vm389, 0.0
        %424 = vst.msk [vmem:[#allocation2 + $0x120] sm:$0xff] %vm386, 0.0
        %425 = vst.msk [vmem:[#allocation2 + $0x128] sm:$0xff] %vm386, 0.0
        %426 = vst.msk [vmem:[#allocation2 + $0x130] sm:$0x3] %vm389, 0.0
        %427 = vst.msk [vmem:[#allocation2 + $0x138] sm:$0xff] %vm386, 0.0
        %428 = vst.msk [vmem:[#allocation2 + $0x140] sm:$0xff] %vm386, 0.0
        %429 = vst.msk [vmem:[#allocation2 + $0x148] sm:$0x3] %vm389, 0.0
        %430 = vst.msk [vmem:[#allocation2 + $0x150] sm:$0xff] %vm386, 0.0
        %431 = vst.msk [vmem:[#allocation2 + $0x158] sm:$0xff] %vm386, 0.0
        %432 = vst.msk [vmem:[#allocation2 + $0x160] sm:$0x3] %vm389, 0.0
        %433 = vst.msk [vmem:[#allocation2 + $0x168] sm:$0xff] %vm386, 0.0
        %434 = vst.msk [vmem:[#allocation2 + $0x170] sm:$0xff] %vm386, 0.0
        %435 = vst.msk [vmem:[#allocation2 + $0x178] sm:$0x3] %vm389, 0.0
        %436 = vst.msk [vmem:[#allocation2 + $0x180] sm:$0xff] %vm386, 0.0
        %437 = vst.msk [vmem:[#allocation2 + $0x188] sm:$0xff] %vm386, 0.0
        %438 = vst.msk [vmem:[#allocation2 + $0x190] sm:$0x3] %vm389, 0.0
        %439 = vst.msk [vmem:[#allocation2 + $0x198] sm:$0xff] %vm386, 0.0
        %440 = vst.msk [vmem:[#allocation2 + $0x1a0] sm:$0xff] %vm386, 0.0
        %441 = vst.msk [vmem:[#allocation2 + $0x1a8] sm:$0x3] %vm389, 0.0
        %vm442 = vcmask 523264
        %443 = vst.msk [vmem:[#allocation3] sm:$0xff] %vm442, 0.0
        %vm444 = vcmask 517120
        %445 = vst.msk [vmem:[#allocation3 + $0x8] sm:$0x3] %vm444, 0.0
        %446 = vst.msk [vmem:[#allocation3 + $0x10] sm:$0xff] %vm442, 0.0
        %447 = vst.msk [vmem:[#allocation3 + $0x18] sm:$0x3] %vm444, 0.0
        %448 = vst.msk [vmem:[#allocation3 + $0x20] sm:$0xff] %vm442, 0.0
        %449 = vst.msk [vmem:[#allocation3 + $0x28] sm:$0x3] %vm444, 0.0
        %450 = vst.msk [vmem:[#allocation3 + $0x30] sm:$0xff] %vm442, 0.0
        %451 = vst.msk [vmem:[#allocation3 + $0x38] sm:$0x3] %vm444, 0.0
        %452 = vst.msk [vmem:[#allocation3 + $0x40] sm:$0xff] %vm442, 0.0
        %453 = vst.msk [vmem:[#allocation3 + $0x48] sm:$0x3] %vm444, 0.0
        %454 = vst.msk [vmem:[#allocation3 + $0x50] sm:$0xff] %vm442, 0.0
        %455 = vst.msk [vmem:[#allocation3 + $0x58] sm:$0x3] %vm444, 0.0
        %456 = vst.msk [vmem:[#allocation3 + $0x60] sm:$0xff] %vm442, 0.0
        %457 = vst.msk [vmem:[#allocation3 + $0x68] sm:$0x3] %vm444, 0.0
        %458 = vst.msk [vmem:[#allocation3 + $0x70] sm:$0xff] %vm442, 0.0
        %459 = vst.msk [vmem:[#allocation3 + $0x78] sm:$0x3] %vm444, 0.0
        %460 = vst.msk [vmem:[#allocation3 + $0x80] sm:$0xff] %vm442, 0.0
        %461 = vst.msk [vmem:[#allocation3 + $0x88] sm:$0x3] %vm444, 0.0
        %462 = vst.msk [vmem:[#allocation3 + $0x90] sm:$0xff] %vm442, 0.0
        %463 = vst.msk [vmem:[#allocation3 + $0x98] sm:$0x3] %vm444, 0.0
        %v464 = vld [vmem:[%s384] sm:$0xff]
        %v465 = vld [vmem:[%s384 + $0x8] sm:$0xff]
        %v466 = vld [vmem:[%s384 + $0x10] sm:$0xff]
        %v467 = vld [vmem:[%s384 + $0x18] sm:$0xff]
        %v468 = vld [vmem:[%s384 + $0x20] sm:$0xff]
        %v469 = vld [vmem:[%s384 + $0x28] sm:$0xff]
        %v470 = vld [vmem:[%s384 + $0x30] sm:$0xff]
        %v471 = vld [vmem:[%s384 + $0x38] sm:$0xff]
        %v472 = vld [vmem:[%s384 + $0x40] sm:$0xff]
        %v473 = vld [vmem:[%s384 + $0x48] sm:$0xff]
        %v474 = vld [vmem:[%s384 + $0x50] sm:$0xff]
        %v475 = vld [vmem:[%s384 + $0x58] sm:$0xff]
        %v476 = vld [vmem:[%s384 + $0x60] sm:$0xff]
        %v477 = vld [vmem:[%s384 + $0x68] sm:$0xff]
        %v478 = vld [vmem:[%s384 + $0x70] sm:$0xff]
        %v479 = vld [vmem:[%s384 + $0x78] sm:$0xff]
        %v480 = vld [vmem:[%s384 + $0x80] sm:$0xff]
        %v481 = vld [vmem:[%s384 + $0x88] sm:$0xff]
        %v482 = vld [vmem:[%s384 + $0x90] sm:$0xff]
        %v483 = vld [vmem:[%s384 + $0x98] sm:$0xff]
        %v484 = vld [vmem:[%s384 + $0xa0] sm:$0xff]
        %v485 = vld [vmem:[%s384 + $0xa8] sm:$0xff]
        %v486 = vld [vmem:[%s384 + $0xb0] sm:$0xff]
        %v487 = vld [vmem:[%s384 + $0xb8] sm:$0xff]
        %v488 = vld [vmem:[%s384 + $0xc0] sm:$0xff]
        %v489 = vld [vmem:[%s384 + $0xc8] sm:$0xff]
        %v490 = vld [vmem:[%s384 + $0xd0] sm:$0xff]
        %v491 = vld [vmem:[%s384 + $0xd8] sm:$0xff]
        %v492 = vld [vmem:[%s384 + $0xe0] sm:$0xff]
        %v493 = vld [vmem:[%s384 + $0xe8] sm:$0xff]
        %v494 = vld [vmem:[%s384 + $0xf0] sm:$0xff]
        %v495 = vld [vmem:[%s384 + $0xf8] sm:$0xff]
        %v496 = vld [vmem:[%s384 + $0x100] sm:$0xff]
        %v497 = vld [vmem:[%s384 + $0x108] sm:$0xff]
        %v498 = vld [vmem:[%s384 + $0x110] sm:$0xff]
        %v499 = vld [vmem:[%s384 + $0x118] sm:$0xff]
        %v500 = vld [vmem:[%s384 + $0x120] sm:$0xff]
        %v501 = vld [vmem:[%s384 + $0x128] sm:$0xff]
        %v502 = vld [vmem:[%s384 + $0x130] sm:$0xff]
        %v503 = vld [vmem:[%s384 + $0x138] sm:$0xff]
        %v504 = vld [vmem:[%s384 + $0x140] sm:$0xff]
        %v505 = vld [vmem:[%s384 + $0x148] sm:$0xff]
        %v506 = vld [vmem:[%s384 + $0x150] sm:$0xff]
        %v507 = vld [vmem:[%s384 + $0x158] sm:$0xff]
        %v508 = vld [vmem:[%s384 + $0x160] sm:$0xff]
        %v509 = vld [vmem:[%s384 + $0x168] sm:$0xff]
        %v510 = vld [vmem:[%s384 + $0x170] sm:$0xff]
        %v511 = vld [vmem:[%s384 + $0x178] sm:$0xff]
        %v512 = vld [vmem:[%s384 + $0x180] sm:$0xff]
        %v513 = vld [vmem:[%s384 + $0x188] sm:$0xff]
        %v514 = vld [vmem:[%s384 + $0x190] sm:$0xff]
        %v515 = vld [vmem:[%s384 + $0x198] sm:$0xff]
        %v516 = vld [vmem:[%s384 + $0x1a0] sm:$0xff]
        %v517 = vld [vmem:[%s384 + $0x1a8] sm:$0xff]
        %v518 = vld [vmem:[%s384 + $0x1b0] sm:$0xff]
        %v519 = vld [vmem:[%s384 + $0x1b8] sm:$0xff]
        %v520 = vld [vmem:[%s384 + $0x1c0] sm:$0xff]
        %v521 = vld [vmem:[%s384 + $0x1c8] sm:$0xff]
        %v522 = vld [vmem:[%s384 + $0x1d0] sm:$0xff]
        %v523 = vld [vmem:[%s384 + $0x1d8] sm:$0xff]
        %v524 = vld [vmem:[%s384 + $0x1e0] sm:$0xff]
        %v525 = vld [vmem:[%s384 + $0x1e8] sm:$0xff]
        %v526 = vld [vmem:[%s384 + $0x1f0] sm:$0xff]
        %v527 = vld [vmem:[%s384 + $0x1f8] sm:$0xff]
        %v528 = vld [vmem:[%s384 + $0x200] sm:$0xff]
        %v529 = vld [vmem:[%s384 + $0x208] sm:$0xff]
        %v530 = vld [vmem:[%s384 + $0x210] sm:$0xff]
        %v531 = vld [vmem:[%s384 + $0x218] sm:$0xff]
        %v532 = vld [vmem:[%s384 + $0x220] sm:$0xff]
        %v533 = vld [vmem:[%s384 + $0x228] sm:$0xff]
        %v534 = vld [vmem:[%s384 + $0x230] sm:$0xff]
        %v535 = vld [vmem:[%s384 + $0x238] sm:$0xff]
        %v536 = vld [vmem:[%s384 + $0x240] sm:$0xff]
        %v537 = vld [vmem:[%s384 + $0x248] sm:$0xff]
        %v538 = vld [vmem:[%s384 + $0x250] sm:$0xff]
        %v539 = vld [vmem:[%s384 + $0x258] sm:$0xff]
        %v540 = vld [vmem:[%s384 + $0x260] sm:$0xff]
        %v541 = vld [vmem:[%s384 + $0x268] sm:$0xff]
        %v542 = vld [vmem:[%s384 + $0x270] sm:$0xff]
        %v543 = vld [vmem:[%s384 + $0x278] sm:$0xff]
        %v544 = vld [vmem:[%s384 + $0x280] sm:$0xff]
        %v545 = vld [vmem:[%s384 + $0x288] sm:$0xff]
        %v546 = vld [vmem:[%s384 + $0x290] sm:$0xff]
        %v547 = vld [vmem:[%s384 + $0x298] sm:$0xff]
        %v548 = vld [vmem:[%s384 + $0x2a0] sm:$0xff]
        %v549 = vld [vmem:[%s384 + $0x2a8] sm:$0xff]
        %v550 = vld [vmem:[%s384 + $0x2b0] sm:$0xff]
        %v551 = vld [vmem:[%s384 + $0x2b8] sm:$0xff]
        %v552 = vld [vmem:[%s384 + $0x2c0] sm:$0xff]
        %v553 = vld [vmem:[%s384 + $0x2c8] sm:$0xff]
        %v554 = vld [vmem:[%s384 + $0x2d0] sm:$0xff]
        %v555 = vld [vmem:[%s384 + $0x2d8] sm:$0xff]
        %v556 = vld [vmem:[%s384 + $0x2e0] sm:$0xff]
        %v557 = vld [vmem:[%s384 + $0x2e8] sm:$0xff]
        %v558 = vld [vmem:[%s384 + $0x2f0] sm:$0xff]
        %v559 = vld [vmem:[%s384 + $0x2f8] sm:$0xff]
        %v560 = vld [vmem:[%s384 + $0x300] sm:$0xff]
        %v561 = vld [vmem:[%s384 + $0x308] sm:$0xff]
        %v562 = vld [vmem:[%s384 + $0x310] sm:$0xff]
        %v563 = vld [vmem:[%s384 + $0x318] sm:$0xff]
        %v564 = vld [vmem:[%s384 + $0x320] sm:$0xff]
        %v565 = vld [vmem:[%s384 + $0x328] sm:$0xff]
        %v566 = vld [vmem:[%s384 + $0x330] sm:$0xff]
        %v567 = vld [vmem:[%s384 + $0x338] sm:$0xff]
        %v568 = vld [vmem:[%s384 + $0x340] sm:$0xff]
        %v569 = vld [vmem:[%s384 + $0x348] sm:$0xff]
        %v570 = vld [vmem:[%s384 + $0x350] sm:$0xff]
        %v571 = vld [vmem:[%s384 + $0x358] sm:$0xff]
        %v572 = vld [vmem:[%s384 + $0x360] sm:$0xff]
        %v573 = vld [vmem:[%s384 + $0x368] sm:$0xff]
        %v574 = vld [vmem:[%s384 + $0x370] sm:$0xff]
        %v575 = vld [vmem:[%s384 + $0x378] sm:$0xff]
        %v576 = vld [vmem:[%s384 + $0x380] sm:$0xff]
        %v577 = vld [vmem:[%s384 + $0x388] sm:$0xff]
        %v578 = vld [vmem:[%s384 + $0x390] sm:$0xff]
        %v579 = vld [vmem:[%s384 + $0x398] sm:$0xff]
        %v580 = vld [vmem:[%s384 + $0x3a0] sm:$0xff]
        %v581 = vld [vmem:[%s384 + $0x3a8] sm:$0xff]
        %v582 = vld [vmem:[%s384 + $0x3b0] sm:$0xff]
        %v583 = vld [vmem:[%s384 + $0x3b8] sm:$0xff]
        %v584 = vld [vmem:[%s384 + $0x3c0] sm:$0xff]
        %v585 = vld [vmem:[%s384 + $0x3c8] sm:$0xff]
        %v586 = vld [vmem:[%s384 + $0x3d0] sm:$0xff]
        %v587 = vld [vmem:[%s384 + $0x3d8] sm:$0xff]
        %v588 = vld [vmem:[%s384 + $0x3e0] sm:$0xff]
        %v589 = vld [vmem:[%s384 + $0x3e8] sm:$0xff]
        %v590 = vld [vmem:[%s384 + $0x3f0] sm:$0xff]
        %v591 = vld [vmem:[%s384 + $0x3f8] sm:$0xff]
        %v592 = vld [vmem:[%s1] sm:$0xff]
        %v593 = vld [vmem:[%s1 + $0x8] sm:$0x1]
        %v594 = vld [vmem:[%s2] sm:$0x1]
        %v596 = vlaneseq
        %v597 = vshrl.u32 %v596, 7
        %v598 = vsub.s32 0, %v597
        %v599 = vrot.slane %v594, %v598
        %vm601 = vcmask 72704
        %v603 = vsel %vm601, %v464, 0
        %v606 = vsel %vm601, %v465, 0
        %v609 = vsel %vm601, %v466, 0
        %v612 = vsel %vm601, %v467, 0
        %v615 = vsel %vm601, %v468, 0
        %v618 = vsel %vm601, %v469, 0
        %v621 = vsel %vm601, %v470, 0
        %v624 = vsel %vm601, %v471, 0
        %v627 = vsel %vm601, %v472, 0
        %v630 = vsel %vm601, %v473, 0
        %v633 = vsel %vm601, %v474, 0
        %v636 = vsel %vm601, %v475, 0
        %v639 = vsel %vm601, %v476, 0
        %v642 = vsel %vm601, %v477, 0
        %v645 = vsel %vm601, %v478, 0
        %v648 = vsel %vm601, %v479, 0
        %v651 = vsel %vm601, %v480, 0
        %v654 = vsel %vm601, %v481, 0
        %v657 = vsel %vm601, %v482, 0
        %v660 = vsel %vm601, %v483, 0
        %v663 = vsel %vm601, %v484, 0
        %v666 = vsel %vm601, %v485, 0
        %v669 = vsel %vm601, %v486, 0
        %v672 = vsel %vm601, %v487, 0
        %v675 = vsel %vm601, %v488, 0
        %v678 = vsel %vm601, %v489, 0
        %v681 = vsel %vm601, %v490, 0
        %v684 = vsel %vm601, %v491, 0
        %v687 = vsel %vm601, %v492, 0
        %v690 = vsel %vm601, %v493, 0
        %v693 = vsel %vm601, %v494, 0
        %v696 = vsel %vm601, %v495, 0
        %v699 = vsel %vm601, %v496, 0
        %v702 = vsel %vm601, %v497, 0
        %v705 = vsel %vm601, %v498, 0
        %v708 = vsel %vm601, %v499, 0
        %v711 = vsel %vm601, %v500, 0
        %v714 = vsel %vm601, %v501, 0
        %v717 = vsel %vm601, %v502, 0
        %v720 = vsel %vm601, %v503, 0
        %v723 = vsel %vm601, %v504, 0
        %v726 = vsel %vm601, %v505, 0
        %v729 = vsel %vm601, %v506, 0
        %v732 = vsel %vm601, %v507, 0
        %v735 = vsel %vm601, %v508, 0
        %v738 = vsel %vm601, %v509, 0
        %v741 = vsel %vm601, %v510, 0
        %v744 = vsel %vm601, %v511, 0
        %v747 = vsel %vm601, %v512, 0
        %v750 = vsel %vm601, %v513, 0
        %v753 = vsel %vm601, %v514, 0
        %v756 = vsel %vm601, %v515, 0
        %v759 = vsel %vm601, %v516, 0
        %v762 = vsel %vm601, %v517, 0
        %v765 = vsel %vm601, %v518, 0
        %v768 = vsel %vm601, %v519, 0
        %v771 = vsel %vm601, %v520, 0
        %v774 = vsel %vm601, %v521, 0
        %v777 = vsel %vm601, %v522, 0
        %v780 = vsel %vm601, %v523, 0
        %v783 = vsel %vm601, %v524, 0
        %v786 = vsel %vm601, %v525, 0
        %v789 = vsel %vm601, %v526, 0
        %v792 = vsel %vm601, %v527, 0
        %v795 = vsel %vm601, %v528, 0
        %v798 = vsel %vm601, %v529, 0
        %v801 = vsel %vm601, %v530, 0
        %v804 = vsel %vm601, %v531, 0
        %v807 = vsel %vm601, %v532, 0
        %v810 = vsel %vm601, %v533, 0
        %v813 = vsel %vm601, %v534, 0
        %v816 = vsel %vm601, %v535, 0
        %v819 = vsel %vm601, %v536, 0
        %v822 = vsel %vm601, %v537, 0
        %v825 = vsel %vm601, %v538, 0
        %v828 = vsel %vm601, %v539, 0
        %v831 = vsel %vm601, %v540, 0
        %v834 = vsel %vm601, %v541, 0
        %v837 = vsel %vm601, %v542, 0
        %v840 = vsel %vm601, %v543, 0
        %v843 = vsel %vm601, %v544, 0
        %v846 = vsel %vm601, %v545, 0
        %v849 = vsel %vm601, %v546, 0
        %v852 = vsel %vm601, %v547, 0
        %v855 = vsel %vm601, %v548, 0
        %v858 = vsel %vm601, %v549, 0
        %v861 = vsel %vm601, %v550, 0
        %v864 = vsel %vm601, %v551, 0
        %v867 = vsel %vm601, %v552, 0
        %v870 = vsel %vm601, %v553, 0
        %v873 = vsel %vm601, %v554, 0
        %v876 = vsel %vm601, %v555, 0
        %v879 = vsel %vm601, %v556, 0
        %v882 = vsel %vm601, %v557, 0
        %v885 = vsel %vm601, %v558, 0
        %v888 = vsel %vm601, %v559, 0
        %v891 = vsel %vm601, %v560, 0
        %v894 = vsel %vm601, %v561, 0
        %v897 = vsel %vm601, %v562, 0
        %v900 = vsel %vm601, %v563, 0
        %v903 = vsel %vm601, %v564, 0
        %v906 = vsel %vm601, %v565, 0
        %v909 = vsel %vm601, %v566, 0
        %v912 = vsel %vm601, %v567, 0
        %v915 = vsel %vm601, %v568, 0
        %v918 = vsel %vm601, %v569, 0
        %v921 = vsel %vm601, %v570, 0
        %v924 = vsel %vm601, %v571, 0
        %v927 = vsel %vm601, %v572, 0
        %v930 = vsel %vm601, %v573, 0
        %v933 = vsel %vm601, %v574, 0
        %v936 = vsel %vm601, %v575, 0
        %v939 = vsel %vm601, %v576, 0
        %v942 = vsel %vm601, %v577, 0
        %v945 = vsel %vm601, %v578, 0
        %v948 = vsel %vm601, %v579, 0
        %v951 = vsel %vm601, %v580, 0
        %v954 = vsel %vm601, %v581, 0
        %v957 = vsel %vm601, %v582, 0
        %v960 = vsel %vm601, %v583, 0
        %v963 = vsel %vm601, %v584, 0
        %v966 = vsel %vm601, %v585, 0
        %v969 = vsel %vm601, %v586, 0
        %v972 = vsel %vm601, %v587, 0
        %v975 = vsel %vm601, %v588, 0
        %v978 = vsel %vm601, %v589, 0
        %v981 = vsel %vm601, %v590, 0
        %v984 = vsel %vm601, %v591, 0
        %vm986 = vcmask 1040384
        %v988 = vsel %vm986, %v593, 0
        %990 = vmatprep.subr.mxu0 0.0
        %991 = vmatpush1.msra.mxu0 %v592
        %992 = vmatprep.subr.mxu0 0.0
        %993 = vmatpush1.msra.mxu0 %v988
        %994 = vmatprep.subr.mxu0 0.0
        %995 = vmatpush1.msra.mxu0 0.0
        %996 = vmatprep.subr.mxu0 0.0
        %997 = vmatpush1.msra.mxu0 0.0
        %998 = vmatprep.subr.mxu0 0.0
        %999 = vmatpush1.msra.mxu0 0.0
        %1000 = vmatprep.subr.mxu0 0.0
        %1001 = vmatpush1.msra.mxu0 0.0
        %1002 = vmatprep.subr.mxu0 0.0
        %1003 = vmatpush1.msra.mxu0 0.0
        %1004 = vmatprep.subr.mxu0 0.0
        %1005 = vmatpush1.msra.mxu0 0.0
        %1006 = vmatprep.subr.mxu0 0.0
        %1007 = vmatpush1.msra.mxu0 0.0
        %1008 = vmatprep.subr.mxu0 0.0
        %1009 = vmatpush1.msra.mxu0 0.0
        %1010 = vmatprep.subr.mxu0 0.0
        %1011 = vmatpush1.msra.mxu0 0.0
        %1012 = vmatprep.subr.mxu0 0.0
        %1013 = vmatpush1.msra.mxu0 0.0
        %1014 = vmatprep.subr.mxu0 0.0
        %1015 = vmatpush1.msra.mxu0 0.0
        %1016 = vmatprep.subr.mxu0 0.0
        %1017 = vmatpush1.msra.mxu0 0.0
        %1018 = vmatprep.subr.mxu0 0.0
        %1019 = vmatpush1.msra.mxu0 0.0
        %1020 = vmatprep.subr.mxu0 0.0
        %1021 = vmatpush1.msra.mxu0 0.0
        %1022 = vmatprep.subr.mxu0 0.0
        %1023 = vmatpush1.msra.mxu0 0.0
        %1024 = vmatprep.subr.mxu0 0.0
        %1025 = vmatpush1.msra.mxu0 0.0
        %1026 = vmatprep.subr.mxu0 0.0
        %1027 = vmatpush1.msra.mxu0 0.0
        %1028 = vmatprep.subr.mxu0 0.0
        %1029 = vmatpush1.msra.mxu0 0.0
        %1030 = vmatprep.subr.mxu0 0.0
        %1031 = vmatpush1.msra.mxu0 0.0
        %1032 = vmatprep.subr.mxu0 0.0
        %1033 = vmatpush1.msra.mxu0 0.0
        %1034 = vmatprep.subr.mxu0 0.0
        %1035 = vmatpush1.msra.mxu0 0.0
        %1036 = vmatprep.subr.mxu0 0.0
        %1037 = vmatpush1.msra.mxu0 0.0
        %1038 = vmatprep.subr.mxu0 0.0
        %1039 = vmatpush1.msra.mxu0 0.0
        %1040 = vmatprep.subr.mxu0 0.0
        %1041 = vmatpush1.msra.mxu0 0.0
        %1042 = vmatprep.subr.mxu0 0.0
        %1043 = vmatpush1.msra.mxu0 0.0
        %1044 = vmatprep.subr.mxu0 0.0
        %1045 = vmatpush1.msra.mxu0 0.0
        %1046 = vmatprep.subr.mxu0 0.0
        %1047 = vmatpush1.msra.mxu0 0.0
        %1048 = vmatprep.subr.mxu0 0.0
        %1049 = vmatpush1.msra.mxu0 0.0
        %1050 = vmatprep.subr.mxu0 0.0
        %1051 = vmatpush1.msra.mxu0 0.0
        %1052 = vmatprep.subr.mxu0 0.0
        %1053 = vmatpush1.msra.mxu0 0.0
        %1054 = vmatprep.mubr.f32.mxu0 0.0
        %1055 = vmatmul.mubr.f32.gmra.mrb[0].mxu0 %v603
        %v1056 = vpop.f32.mrb[0].mxu0
        %v1057 = vadd.f32 %v599, %v1056
        %v1058 = vpop.f32.mrb[0].mxu0
        %1059 = vmatprep.mubr.f32.mxu0 0.0
        %1060 = vmatmul.mubr.f32.gmra.mrb[0].mxu0 %v606
        %v1061 = vpop.f32.mrb[0].mxu0
        %v1062 = vadd.f32 %v599, %v1061
        %v1063 = vpop.f32.mrb[0].mxu0
        %1064 = vmatprep.mubr.f32.mxu0 0.0
        %1065 = vmatmul.mubr.f32.gmra.mrb[0].mxu0 %v609
        %v1066 = vpop.f32.mrb[0].mxu0
        %v1067 = vadd.f32 %v599, %v1066
        %v1068 = vpop.f32.mrb[0].mxu0
        %1069 = vmatprep.mubr.f32.mxu0 0.0
        %1070 = vmatmul.mubr.f32.gmra.mrb[0].mxu0 %v612
        %v1071 = vpop.f32.mrb[0].mxu0
        %v1072 = vadd.f32 %v599, %v1071
        %v1073 = vpop.f32.mrb[0].mxu0
        %1074 = vmatprep.mubr.f32.mxu0 0.0
        %1075 = vmatmul.mubr.f32.gmra.mrb[0].mxu0 %v615
        %v1076 = vpop.f32.mrb[0].mxu0
        %v1077 = vadd.f32 %v599, %v1076
        %v1078 = vpop.f32.mrb[0].mxu0
        %1079 = vmatprep.mubr.f32.mxu0 0.0
        %1080 = vmatmul.mubr.f32.gmra.mrb[0].mxu0 %v618
        %v1081 = vpop.f32.mrb[0].mxu0
        %v1082 = vadd.f32 %v599, %v1081
        %v1083 = vpop.f32.mrb[0].mxu0
        %1084 = vmatprep.mubr.f32.mxu0 0.0
        %1085 = vmatmul.mubr.f32.gmra.mrb[0].mxu0 %v621
        %v1086 = vpop.f32.mrb[0].mxu0
        %v1087 = vadd.f32 %v599, %v1086
        %v1088 = vpop.f32.mrb[0].mxu0
        %1089 = vmatprep.mubr.f32.mxu0 0.0
        %1090 = vmatmul.mubr.f32.gmra.mrb[0].mxu0 %v624
        %v1091 = vpop.f32.mrb[0].mxu0
        %v1092 = vadd.f32 %v599, %v1091
        %v1093 = vpop.f32.mrb[0].mxu0
        %1094 = vmatprep.mubr.f32.mxu0 0.0
        %1095 = vmatmul.mubr.f32.gmra.mrb[0].mxu0 %v627
        %v1096 = vpop.f32.mrb[0].mxu0
        %v1097 = vadd.f32 %v599, %v1096
        %v1098 = vpop.f32.mrb[0].mxu0
        %1099 = vmatprep.mubr.f32.mxu0 0.0
        %1100 = vmatmul.mubr.f32.gmra.mrb[0].mxu0 %v630
        %v1101 = vpop.f32.mrb[0].mxu0
        %v1102 = vadd.f32 %v599, %v1101
        %v1103 = vpop.f32.mrb[0].mxu0
        %1104 = vmatprep.mubr.f32.mxu0 0.0
        %1105 = vmatmul.mubr.f32.gmra.mrb[0].mxu0 %v633
        %v1106 = vpop.f32.mrb[0].mxu0
        %v1107 = vadd.f32 %v599, %v1106
        %v1108 = vpop.f32.mrb[0].mxu0
        %1109 = vmatprep.mubr.f32.mxu0 0.0
        %1110 = vmatmul.mubr.f32.gmra.mrb[0].mxu0 %v636
        %v1111 = vpop.f32.mrb[0].mxu0
        %v1112 = vadd.f32 %v599, %v1111
        %v1113 = vpop.f32.mrb[0].mxu0
        %1114 = vmatprep.mubr.f32.mxu0 0.0
        %1115 = vmatmul.mubr.f32.gmra.mrb[0].mxu0 %v639
        %v1116 = vpop.f32.mrb[0].mxu0
        %v1117 = vadd.f32 %v599, %v1116
        %v1118 = vpop.f32.mrb[0].mxu0
        %1119 = vmatprep.mubr.f32.mxu0 0.0
        %1120 = vmatmul.mubr.f32.gmra.mrb[0].mxu0 %v642
        %v1121 = vpop.f32.mrb[0].mxu0
        %v1122 = vadd.f32 %v599, %v1121
        %v1123 = vpop.f32.mrb[0].mxu0
        %1124 = vmatprep.mubr.f32.mxu0 0.0
        %1125 = vmatmul.mubr.f32.gmra.mrb[0].mxu0 %v645
        %v1126 = vpop.f32.mrb[0].mxu0
        %v1127 = vadd.f32 %v599, %v1126
        %v1128 = vpop.f32.mrb[0].mxu0
        %1129 = vmatprep.mubr.f32.mxu0 0.0
        %1130 = vmatmul.mubr.f32.gmra.mrb[0].mxu0 %v648
        %v1131 = vpop.f32.mrb[0].mxu0
        %v1132 = vadd.f32 %v599, %v1131
        %v1133 = vpop.f32.mrb[0].mxu0
        %1134 = vmatprep.mubr.f32.mxu0 0.0
        %1135 = vmatmul.mubr.f32.gmra.mrb[0].mxu0 %v651
        %v1136 = vpop.f32.mrb[0].mxu0
        %v1137 = vadd.f32 %v599, %v1136
        %v1138 = vpop.f32.mrb[0].mxu0
        %1139 = vmatprep.mubr.f32.mxu0 0.0
        %1140 = vmatmul.mubr.f32.gmra.mrb[0].mxu0 %v654
        %v1141 = vpop.f32.mrb[0].mxu0
        %v1142 = vadd.f32 %v599, %v1141
        %v1143 = vpop.f32.mrb[0].mxu0
        %1144 = vmatprep.mubr.f32.mxu0 0.0
        %1145 = vmatmul.mubr.f32.gmra.mrb[0].mxu0 %v657
        %v1146 = vpop.f32.mrb[0].mxu0
        %v1147 = vadd.f32 %v599, %v1146
        %v1148 = vpop.f32.mrb[0].mxu0
        %1149 = vmatprep.mubr.f32.mxu0 0.0
        %1150 = vmatmul.mubr.f32.gmra.mrb[0].mxu0 %v660
        %v1151 = vpop.f32.mrb[0].mxu0
        %v1152 = vadd.f32 %v599, %v1151
        %v1153 = vpop.f32.mrb[0].mxu0
        %1154 = vmatprep.mubr.f32.mxu0 0.0
        %1155 = vmatmul.mubr.f32.gmra.mrb[0].mxu0 %v663
        %v1156 = vpop.f32.mrb[0].mxu0
        %v1157 = vadd.f32 %v599, %v1156
        %v1158 = vpop.f32.mrb[0].mxu0
        %1159 = vmatprep.mubr.f32.mxu0 0.0
        %1160 = vmatmul.mubr.f32.gmra.mrb[0].mxu0 %v666
        %v1161 = vpop.f32.mrb[0].mxu0
        %v1162 = vadd.f32 %v599, %v1161
        %v1163 = vpop.f32.mrb[0].mxu0
        %1164 = vmatprep.mubr.f32.mxu0 0.0
        %1165 = vmatmul.mubr.f32.gmra.mrb[0].mxu0 %v669
        %v1166 = vpop.f32.mrb[0].mxu0
        %v1167 = vadd.f32 %v599, %v1166
        %v1168 = vpop.f32.mrb[0].mxu0
        %1169 = vmatprep.mubr.f32.mxu0 0.0
        %1170 = vmatmul.mubr.f32.gmra.mrb[0].mxu0 %v672
        %v1171 = vpop.f32.mrb[0].mxu0
        %v1172 = vadd.f32 %v599, %v1171
        %v1173 = vpop.f32.mrb[0].mxu0
        %1174 = vmatprep.mubr.f32.mxu0 0.0
        %1175 = vmatmul.mubr.f32.gmra.mrb[0].mxu0 %v675
        %v1176 = vpop.f32.mrb[0].mxu0
        %v1177 = vadd.f32 %v599, %v1176
        %v1178 = vpop.f32.mrb[0].mxu0
        %1179 = vmatprep.mubr.f32.mxu0 0.0
        %1180 = vmatmul.mubr.f32.gmra.mrb[0].mxu0 %v678
        %v1181 = vpop.f32.mrb[0].mxu0
        %v1182 = vadd.f32 %v599, %v1181
        %v1183 = vpop.f32.mrb[0].mxu0
        %1184 = vmatprep.mubr.f32.mxu0 0.0
        %1185 = vmatmul.mubr.f32.gmra.mrb[0].mxu0 %v681
        %v1186 = vpop.f32.mrb[0].mxu0
        %v1187 = vadd.f32 %v599, %v1186
        %v1188 = vpop.f32.mrb[0].mxu0
        %1189 = vmatprep.mubr.f32.mxu0 0.0
        %1190 = vmatmul.mubr.f32.gmra.mrb[0].mxu0 %v684
        %v1191 = vpop.f32.mrb[0].mxu0
        %v1192 = vadd.f32 %v599, %v1191
        %v1193 = vpop.f32.mrb[0].mxu0
        %1194 = vmatprep.mubr.f32.mxu0 0.0
        %1195 = vmatmul.mubr.f32.gmra.mrb[0].mxu0 %v687
        %v1196 = vpop.f32.mrb[0].mxu0
        %v1197 = vadd.f32 %v599, %v1196
        %v1198 = vpop.f32.mrb[0].mxu0
        %1199 = vmatprep.mubr.f32.mxu0 0.0
        %1200 = vmatmul.mubr.f32.gmra.mrb[0].mxu0 %v690
        %v1201 = vpop.f32.mrb[0].mxu0
        %v1202 = vadd.f32 %v599, %v1201
        %v1203 = vpop.f32.mrb[0].mxu0
        %1204 = vmatprep.mubr.f32.mxu0 0.0
        %1205 = vmatmul.mubr.f32.gmra.mrb[0].mxu0 %v693
        %v1206 = vpop.f32.mrb[0].mxu0
        %v1207 = vadd.f32 %v599, %v1206
        %v1208 = vpop.f32.mrb[0].mxu0
        %1209 = vmatprep.mubr.f32.mxu0 0.0
        %1210 = vmatmul.mubr.f32.gmra.mrb[0].mxu0 %v696
        %v1211 = vpop.f32.mrb[0].mxu0
        %v1212 = vadd.f32 %v599, %v1211
        %v1213 = vpop.f32.mrb[0].mxu0
        %1214 = vmatprep.mubr.f32.mxu0 0.0
        %1215 = vmatmul.mubr.f32.gmra.mrb[0].mxu0 %v699
        %v1216 = vpop.f32.mrb[0].mxu0
        %v1217 = vadd.f32 %v599, %v1216
        %v1218 = vpop.f32.mrb[0].mxu0
        %1219 = vmatprep.mubr.f32.mxu0 0.0
        %1220 = vmatmul.mubr.f32.gmra.mrb[0].mxu0 %v702
        %v1221 = vpop.f32.mrb[0].mxu0
        %v1222 = vadd.f32 %v599, %v1221
        %v1223 = vpop.f32.mrb[0].mxu0
        %1224 = vmatprep.mubr.f32.mxu0 0.0
        %1225 = vmatmul.mubr.f32.gmra.mrb[0].mxu0 %v705
        %v1226 = vpop.f32.mrb[0].mxu0
        %v1227 = vadd.f32 %v599, %v1226
        %v1228 = vpop.f32.mrb[0].mxu0
        %1229 = vmatprep.mubr.f32.mxu0 0.0
        %1230 = vmatmul.mubr.f32.gmra.mrb[0].mxu0 %v708
        %v1231 = vpop.f32.mrb[0].mxu0
        %v1232 = vadd.f32 %v599, %v1231
        %v1233 = vpop.f32.mrb[0].mxu0
        %1234 = vmatprep.mubr.f32.mxu0 0.0
        %1235 = vmatmul.mubr.f32.gmra.mrb[0].mxu0 %v711
        %v1236 = vpop.f32.mrb[0].mxu0
        %v1237 = vadd.f32 %v599, %v1236
        %v1238 = vpop.f32.mrb[0].mxu0
        %1239 = vmatprep.mubr.f32.mxu0 0.0
        %1240 = vmatmul.mubr.f32.gmra.mrb[0].mxu0 %v714
        %v1241 = vpop.f32.mrb[0].mxu0
        %v1242 = vadd.f32 %v599, %v1241
        %v1243 = vpop.f32.mrb[0].mxu0
        %1244 = vmatprep.mubr.f32.mxu0 0.0
        %1245 = vmatmul.mubr.f32.gmra.mrb[0].mxu0 %v717
        %v1246 = vpop.f32.mrb[0].mxu0
        %v1247 = vadd.f32 %v599, %v1246
        %v1248 = vpop.f32.mrb[0].mxu0
        %1249 = vmatprep.mubr.f32.mxu0 0.0
        %1250 = vmatmul.mubr.f32.gmra.mrb[0].mxu0 %v720
        %v1251 = vpop.f32.mrb[0].mxu0
        %v1252 = vadd.f32 %v599, %v1251
        %v1253 = vpop.f32.mrb[0].mxu0
        %1254 = vmatprep.mubr.f32.mxu0 0.0
        %1255 = vmatmul.mubr.f32.gmra.mrb[0].mxu0 %v723
        %v1256 = vpop.f32.mrb[0].mxu0
        %v1257 = vadd.f32 %v599, %v1256
        %v1258 = vpop.f32.mrb[0].mxu0
        %1259 = vmatprep.mubr.f32.mxu0 0.0
        %1260 = vmatmul.mubr.f32.gmra.mrb[0].mxu0 %v726
        %v1261 = vpop.f32.mrb[0].mxu0
        %v1262 = vadd.f32 %v599, %v1261
        %v1263 = vpop.f32.mrb[0].mxu0
        %1264 = vmatprep.mubr.f32.mxu0 0.0
        %1265 = vmatmul.mubr.f32.gmra.mrb[0].mxu0 %v729
        %v1266 = vpop.f32.mrb[0].mxu0
        %v1267 = vadd.f32 %v599, %v1266
        %v1268 = vpop.f32.mrb[0].mxu0
        %1269 = vmatprep.mubr.f32.mxu0 0.0
        %1270 = vmatmul.mubr.f32.gmra.mrb[0].mxu0 %v732
        %v1271 = vpop.f32.mrb[0].mxu0
        %v1272 = vadd.f32 %v599, %v1271
        %v1273 = vpop.f32.mrb[0].mxu0
        %1274 = vmatprep.mubr.f32.mxu0 0.0
        %1275 = vmatmul.mubr.f32.gmra.mrb[0].mxu0 %v735
        %v1276 = vpop.f32.mrb[0].mxu0
        %v1277 = vadd.f32 %v599, %v1276
        %v1278 = vpop.f32.mrb[0].mxu0
        %1279 = vmatprep.mubr.f32.mxu0 0.0
        %1280 = vmatmul.mubr.f32.gmra.mrb[0].mxu0 %v738
        %v1281 = vpop.f32.mrb[0].mxu0
        %v1282 = vadd.f32 %v599, %v1281
        %v1283 = vpop.f32.mrb[0].mxu0
        %1284 = vmatprep.mubr.f32.mxu0 0.0
        %1285 = vmatmul.mubr.f32.gmra.mrb[0].mxu0 %v741
        %v1286 = vpop.f32.mrb[0].mxu0
        %v1287 = vadd.f32 %v599, %v1286
        %v1288 = vpop.f32.mrb[0].mxu0
        %1289 = vmatprep.mubr.f32.mxu0 0.0
        %1290 = vmatmul.mubr.f32.gmra.mrb[0].mxu0 %v744
        %v1291 = vpop.f32.mrb[0].mxu0
        %v1292 = vadd.f32 %v599, %v1291
        %v1293 = vpop.f32.mrb[0].mxu0
        %1294 = vmatprep.mubr.f32.mxu0 0.0
        %1295 = vmatmul.mubr.f32.gmra.mrb[0].mxu0 %v747
        %v1296 = vpop.f32.mrb[0].mxu0
        %v1297 = vadd.f32 %v599, %v1296
        %v1298 = vpop.f32.mrb[0].mxu0
        %1299 = vmatprep.mubr.f32.mxu0 0.0
        %1300 = vmatmul.mubr.f32.gmra.mrb[0].mxu0 %v750
        %v1301 = vpop.f32.mrb[0].mxu0
        %v1302 = vadd.f32 %v599, %v1301
        %v1303 = vpop.f32.mrb[0].mxu0
        %1304 = vmatprep.mubr.f32.mxu0 0.0
        %1305 = vmatmul.mubr.f32.gmra.mrb[0].mxu0 %v753
        %v1306 = vpop.f32.mrb[0].mxu0
        %v1307 = vadd.f32 %v599, %v1306
        %v1308 = vpop.f32.mrb[0].mxu0
        %1309 = vmatprep.mubr.f32.mxu0 0.0
        %1310 = vmatmul.mubr.f32.gmra.mrb[0].mxu0 %v756
        %v1311 = vpop.f32.mrb[0].mxu0
        %v1312 = vadd.f32 %v599, %v1311
        %v1313 = vpop.f32.mrb[0].mxu0
        %1314 = vmatprep.mubr.f32.mxu0 0.0
        %1315 = vmatmul.mubr.f32.gmra.mrb[0].mxu0 %v759
        %v1316 = vpop.f32.mrb[0].mxu0
        %v1317 = vadd.f32 %v599, %v1316
        %v1318 = vpop.f32.mrb[0].mxu0
        %1319 = vmatprep.mubr.f32.mxu0 0.0
        %1320 = vmatmul.mubr.f32.gmra.mrb[0].mxu0 %v762
        %v1321 = vpop.f32.mrb[0].mxu0
        %v1322 = vadd.f32 %v599, %v1321
        %v1323 = vpop.f32.mrb[0].mxu0
        %1324 = vmatprep.mubr.f32.mxu0 0.0
        %1325 = vmatmul.mubr.f32.gmra.mrb[0].mxu0 %v765
        %v1326 = vpop.f32.mrb[0].mxu0
        %v1327 = vadd.f32 %v599, %v1326
        %v1328 = vpop.f32.mrb[0].mxu0
        %1329 = vmatprep.mubr.f32.mxu0 0.0
        %1330 = vmatmul.mubr.f32.gmra.mrb[0].mxu0 %v768
        %v1331 = vpop.f32.mrb[0].mxu0
        %v1332 = vadd.f32 %v599, %v1331
        %v1333 = vpop.f32.mrb[0].mxu0
        %1334 = vmatprep.mubr.f32.mxu0 0.0
        %1335 = vmatmul.mubr.f32.gmra.mrb[0].mxu0 %v771
        %v1336 = vpop.f32.mrb[0].mxu0
        %v1337 = vadd.f32 %v599, %v1336
        %v1338 = vpop.f32.mrb[0].mxu0
        %1339 = vmatprep.mubr.f32.mxu0 0.0
        %1340 = vmatmul.mubr.f32.gmra.mrb[0].mxu0 %v774
        %v1341 = vpop.f32.mrb[0].mxu0
        %v1342 = vadd.f32 %v599, %v1341
        %v1343 = vpop.f32.mrb[0].mxu0
        %1344 = vmatprep.mubr.f32.mxu0 0.0
        %1345 = vmatmul.mubr.f32.gmra.mrb[0].mxu0 %v777
        %v1346 = vpop.f32.mrb[0].mxu0
        %v1347 = vadd.f32 %v599, %v1346
        %v1348 = vpop.f32.mrb[0].mxu0
        %1349 = vmatprep.mubr.f32.mxu0 0.0
        %1350 = vmatmul.mubr.f32.gmra.mrb[0].mxu0 %v780
        %v1351 = vpop.f32.mrb[0].mxu0
        %v1352 = vadd.f32 %v599, %v1351
        %v1353 = vpop.f32.mrb[0].mxu0
        %1354 = vmatprep.mubr.f32.mxu0 0.0
        %1355 = vmatmul.mubr.f32.gmra.mrb[0].mxu0 %v783
        %v1356 = vpop.f32.mrb[0].mxu0
        %v1357 = vadd.f32 %v599, %v1356
        %v1358 = vpop.f32.mrb[0].mxu0
        %1359 = vmatprep.mubr.f32.mxu0 0.0
        %1360 = vmatmul.mubr.f32.gmra.mrb[0].mxu0 %v786
        %v1361 = vpop.f32.mrb[0].mxu0
        %v1362 = vadd.f32 %v599, %v1361
        %v1363 = vpop.f32.mrb[0].mxu0
        %1364 = vmatprep.mubr.f32.mxu0 0.0
        %1365 = vmatmul.mubr.f32.gmra.mrb[0].mxu0 %v789
        %v1366 = vpop.f32.mrb[0].mxu0
        %v1367 = vadd.f32 %v599, %v1366
        %v1368 = vpop.f32.mrb[0].mxu0
        %1369 = vmatprep.mubr.f32.mxu0 0.0
        %1370 = vmatmul.mubr.f32.gmra.mrb[0].mxu0 %v792
        %v1371 = vpop.f32.mrb[0].mxu0
        %v1372 = vadd.f32 %v599, %v1371
        %v1373 = vpop.f32.mrb[0].mxu0
        %1374 = vmatprep.mubr.f32.mxu0 0.0
        %1375 = vmatmul.mubr.f32.gmra.mrb[0].mxu0 %v795
        %v1376 = vpop.f32.mrb[0].mxu0
        %v1377 = vadd.f32 %v599, %v1376
        %v1378 = vpop.f32.mrb[0].mxu0
        %1379 = vmatprep.mubr.f32.mxu0 0.0
        %1380 = vmatmul.mubr.f32.gmra.mrb[0].mxu0 %v798
        %v1381 = vpop.f32.mrb[0].mxu0
        %v1382 = vadd.f32 %v599, %v1381
        %v1383 = vpop.f32.mrb[0].mxu0
        %1384 = vmatprep.mubr.f32.mxu0 0.0
        %1385 = vmatmul.mubr.f32.gmra.mrb[0].mxu0 %v801
        %v1386 = vpop.f32.mrb[0].mxu0
        %v1387 = vadd.f32 %v599, %v1386
        %v1388 = vpop.f32.mrb[0].mxu0
        %1389 = vmatprep.mubr.f32.mxu0 0.0
        %1390 = vmatmul.mubr.f32.gmra.mrb[0].mxu0 %v804
        %v1391 = vpop.f32.mrb[0].mxu0
        %v1392 = vadd.f32 %v599, %v1391
        %v1393 = vpop.f32.mrb[0].mxu0
        %1394 = vmatprep.mubr.f32.mxu0 0.0
        %1395 = vmatmul.mubr.f32.gmra.mrb[0].mxu0 %v807
        %v1396 = vpop.f32.mrb[0].mxu0
        %v1397 = vadd.f32 %v599, %v1396
        %v1398 = vpop.f32.mrb[0].mxu0
        %1399 = vmatprep.mubr.f32.mxu0 0.0
        %1400 = vmatmul.mubr.f32.gmra.mrb[0].mxu0 %v810
        %v1401 = vpop.f32.mrb[0].mxu0
        %v1402 = vadd.f32 %v599, %v1401
        %v1403 = vpop.f32.mrb[0].mxu0
        %1404 = vmatprep.mubr.f32.mxu0 0.0
        %1405 = vmatmul.mubr.f32.gmra.mrb[0].mxu0 %v813
        %v1406 = vpop.f32.mrb[0].mxu0
        %v1407 = vadd.f32 %v599, %v1406
        %v1408 = vpop.f32.mrb[0].mxu0
        %1409 = vmatprep.mubr.f32.mxu0 0.0
        %1410 = vmatmul.mubr.f32.gmra.mrb[0].mxu0 %v816
        %v1411 = vpop.f32.mrb[0].mxu0
        %v1412 = vadd.f32 %v599, %v1411
        %v1413 = vpop.f32.mrb[0].mxu0
        %1414 = vmatprep.mubr.f32.mxu0 0.0
        %1415 = vmatmul.mubr.f32.gmra.mrb[0].mxu0 %v819
        %v1416 = vpop.f32.mrb[0].mxu0
        %v1417 = vadd.f32 %v599, %v1416
        %v1418 = vpop.f32.mrb[0].mxu0
        %1419 = vmatprep.mubr.f32.mxu0 0.0
        %1420 = vmatmul.mubr.f32.gmra.mrb[0].mxu0 %v822
        %v1421 = vpop.f32.mrb[0].mxu0
        %v1422 = vadd.f32 %v599, %v1421
        %v1423 = vpop.f32.mrb[0].mxu0
        %1424 = vmatprep.mubr.f32.mxu0 0.0
        %1425 = vmatmul.mubr.f32.gmra.mrb[0].mxu0 %v825
        %v1426 = vpop.f32.mrb[0].mxu0
        %v1427 = vadd.f32 %v599, %v1426
        %v1428 = vpop.f32.mrb[0].mxu0
        %1429 = vmatprep.mubr.f32.mxu0 0.0
        %1430 = vmatmul.mubr.f32.gmra.mrb[0].mxu0 %v828
        %v1431 = vpop.f32.mrb[0].mxu0
        %v1432 = vadd.f32 %v599, %v1431
        %v1433 = vpop.f32.mrb[0].mxu0
        %1434 = vmatprep.mubr.f32.mxu0 0.0
        %1435 = vmatmul.mubr.f32.gmra.mrb[0].mxu0 %v831
        %v1436 = vpop.f32.mrb[0].mxu0
        %v1437 = vadd.f32 %v599, %v1436
        %v1438 = vpop.f32.mrb[0].mxu0
        %1439 = vmatprep.mubr.f32.mxu0 0.0
        %1440 = vmatmul.mubr.f32.gmra.mrb[0].mxu0 %v834
        %v1441 = vpop.f32.mrb[0].mxu0
        %v1442 = vadd.f32 %v599, %v1441
        %v1443 = vpop.f32.mrb[0].mxu0
        %1444 = vmatprep.mubr.f32.mxu0 0.0
        %1445 = vmatmul.mubr.f32.gmra.mrb[0].mxu0 %v837
        %v1446 = vpop.f32.mrb[0].mxu0
        %v1447 = vadd.f32 %v599, %v1446
        %v1448 = vpop.f32.mrb[0].mxu0
        %1449 = vmatprep.mubr.f32.mxu0 0.0
        %1450 = vmatmul.mubr.f32.gmra.mrb[0].mxu0 %v840
        %v1451 = vpop.f32.mrb[0].mxu0
        %v1452 = vadd.f32 %v599, %v1451
        %v1453 = vpop.f32.mrb[0].mxu0
        %1454 = vmatprep.mubr.f32.mxu0 0.0
        %1455 = vmatmul.mubr.f32.gmra.mrb[0].mxu0 %v843
        %v1456 = vpop.f32.mrb[0].mxu0
        %v1457 = vadd.f32 %v599, %v1456
        %v1458 = vpop.f32.mrb[0].mxu0
        %1459 = vmatprep.mubr.f32.mxu0 0.0
        %1460 = vmatmul.mubr.f32.gmra.mrb[0].mxu0 %v846
        %v1461 = vpop.f32.mrb[0].mxu0
        %v1462 = vadd.f32 %v599, %v1461
        %v1463 = vpop.f32.mrb[0].mxu0
        %1464 = vmatprep.mubr.f32.mxu0 0.0
        %1465 = vmatmul.mubr.f32.gmra.mrb[0].mxu0 %v849
        %v1466 = vpop.f32.mrb[0].mxu0
        %v1467 = vadd.f32 %v599, %v1466
        %v1468 = vpop.f32.mrb[0].mxu0
        %1469 = vmatprep.mubr.f32.mxu0 0.0
        %1470 = vmatmul.mubr.f32.gmra.mrb[0].mxu0 %v852
        %v1471 = vpop.f32.mrb[0].mxu0
        %v1472 = vadd.f32 %v599, %v1471
        %v1473 = vpop.f32.mrb[0].mxu0
        %1474 = vmatprep.mubr.f32.mxu0 0.0
        %1475 = vmatmul.mubr.f32.gmra.mrb[0].mxu0 %v855
        %v1476 = vpop.f32.mrb[0].mxu0
        %v1477 = vadd.f32 %v599, %v1476
        %v1478 = vpop.f32.mrb[0].mxu0
        %1479 = vmatprep.mubr.f32.mxu0 0.0
        %1480 = vmatmul.mubr.f32.gmra.mrb[0].mxu0 %v858
        %v1481 = vpop.f32.mrb[0].mxu0
        %v1482 = vadd.f32 %v599, %v1481
        %v1483 = vpop.f32.mrb[0].mxu0
        %1484 = vmatprep.mubr.f32.mxu0 0.0
        %1485 = vmatmul.mubr.f32.gmra.mrb[0].mxu0 %v861
        %v1486 = vpop.f32.mrb[0].mxu0
        %v1487 = vadd.f32 %v599, %v1486
        %v1488 = vpop.f32.mrb[0].mxu0
        %1489 = vmatprep.mubr.f32.mxu0 0.0
        %1490 = vmatmul.mubr.f32.gmra.mrb[0].mxu0 %v864
        %v1491 = vpop.f32.mrb[0].mxu0
        %v1492 = vadd.f32 %v599, %v1491
        %v1493 = vpop.f32.mrb[0].mxu0
        %1494 = vmatprep.mubr.f32.mxu0 0.0
        %1495 = vmatmul.mubr.f32.gmra.mrb[0].mxu0 %v867
        %v1496 = vpop.f32.mrb[0].mxu0
        %v1497 = vadd.f32 %v599, %v1496
        %v1498 = vpop.f32.mrb[0].mxu0
        %1499 = vmatprep.mubr.f32.mxu0 0.0
        %1500 = vmatmul.mubr.f32.gmra.mrb[0].mxu0 %v870
        %v1501 = vpop.f32.mrb[0].mxu0
        %v1502 = vadd.f32 %v599, %v1501
        %v1503 = vpop.f32.mrb[0].mxu0
        %1504 = vmatprep.mubr.f32.mxu0 0.0
        %1505 = vmatmul.mubr.f32.gmra.mrb[0].mxu0 %v873
        %v1506 = vpop.f32.mrb[0].mxu0
        %v1507 = vadd.f32 %v599, %v1506
        %v1508 = vpop.f32.mrb[0].mxu0
        %1509 = vmatprep.mubr.f32.mxu0 0.0
        %1510 = vmatmul.mubr.f32.gmra.mrb[0].mxu0 %v876
        %v1511 = vpop.f32.mrb[0].mxu0
        %v1512 = vadd.f32 %v599, %v1511
        %v1513 = vpop.f32.mrb[0].mxu0
        %1514 = vmatprep.mubr.f32.mxu0 0.0
        %1515 = vmatmul.mubr.f32.gmra.mrb[0].mxu0 %v879
        %v1516 = vpop.f32.mrb[0].mxu0
        %v1517 = vadd.f32 %v599, %v1516
        %v1518 = vpop.f32.mrb[0].mxu0
        %1519 = vmatprep.mubr.f32.mxu0 0.0
        %1520 = vmatmul.mubr.f32.gmra.mrb[0].mxu0 %v882
        %v1521 = vpop.f32.mrb[0].mxu0
        %v1522 = vadd.f32 %v599, %v1521
        %v1523 = vpop.f32.mrb[0].mxu0
        %1524 = vmatprep.mubr.f32.mxu0 0.0
        %1525 = vmatmul.mubr.f32.gmra.mrb[0].mxu0 %v885
        %v1526 = vpop.f32.mrb[0].mxu0
        %v1527 = vadd.f32 %v599, %v1526
        %v1528 = vpop.f32.mrb[0].mxu0
        %1529 = vmatprep.mubr.f32.mxu0 0.0
        %1530 = vmatmul.mubr.f32.gmra.mrb[0].mxu0 %v888
        %v1531 = vpop.f32.mrb[0].mxu0
        %v1532 = vadd.f32 %v599, %v1531
        %v1533 = vpop.f32.mrb[0].mxu0
        %1534 = vmatprep.mubr.f32.mxu0 0.0
        %1535 = vmatmul.mubr.f32.gmra.mrb[0].mxu0 %v891
        %v1536 = vpop.f32.mrb[0].mxu0
        %v1537 = vadd.f32 %v599, %v1536
        %v1538 = vpop.f32.mrb[0].mxu0
        %1539 = vmatprep.mubr.f32.mxu0 0.0
        %1540 = vmatmul.mubr.f32.gmra.mrb[0].mxu0 %v894
        %v1541 = vpop.f32.mrb[0].mxu0
        %v1542 = vadd.f32 %v599, %v1541
        %v1543 = vpop.f32.mrb[0].mxu0
        %1544 = vmatprep.mubr.f32.mxu0 0.0
        %1545 = vmatmul.mubr.f32.gmra.mrb[0].mxu0 %v897
        %v1546 = vpop.f32.mrb[0].mxu0
        %v1547 = vadd.f32 %v599, %v1546
        %v1548 = vpop.f32.mrb[0].mxu0
        %1549 = vmatprep.mubr.f32.mxu0 0.0
        %1550 = vmatmul.mubr.f32.gmra.mrb[0].mxu0 %v900
        %v1551 = vpop.f32.mrb[0].mxu0
        %v1552 = vadd.f32 %v599, %v1551
        %v1553 = vpop.f32.mrb[0].mxu0
        %1554 = vmatprep.mubr.f32.mxu0 0.0
        %1555 = vmatmul.mubr.f32.gmra.mrb[0].mxu0 %v903
        %v1556 = vpop.f32.mrb[0].mxu0
        %v1557 = vadd.f32 %v599, %v1556
        %v1558 = vpop.f32.mrb[0].mxu0
        %1559 = vmatprep.mubr.f32.mxu0 0.0
        %1560 = vmatmul.mubr.f32.gmra.mrb[0].mxu0 %v906
        %v1561 = vpop.f32.mrb[0].mxu0
        %v1562 = vadd.f32 %v599, %v1561
        %v1563 = vpop.f32.mrb[0].mxu0
        %1564 = vmatprep.mubr.f32.mxu0 0.0
        %1565 = vmatmul.mubr.f32.gmra.mrb[0].mxu0 %v909
        %v1566 = vpop.f32.mrb[0].mxu0
        %v1567 = vadd.f32 %v599, %v1566
        %v1568 = vpop.f32.mrb[0].mxu0
        %1569 = vmatprep.mubr.f32.mxu0 0.0
        %1570 = vmatmul.mubr.f32.gmra.mrb[0].mxu0 %v912
        %v1571 = vpop.f32.mrb[0].mxu0
        %v1572 = vadd.f32 %v599, %v1571
        %v1573 = vpop.f32.mrb[0].mxu0
        %1574 = vmatprep.mubr.f32.mxu0 0.0
        %1575 = vmatmul.mubr.f32.gmra.mrb[0].mxu0 %v915
        %v1576 = vpop.f32.mrb[0].mxu0
        %v1577 = vadd.f32 %v599, %v1576
        %v1578 = vpop.f32.mrb[0].mxu0
        %1579 = vmatprep.mubr.f32.mxu0 0.0
        %1580 = vmatmul.mubr.f32.gmra.mrb[0].mxu0 %v918
        %v1581 = vpop.f32.mrb[0].mxu0
        %v1582 = vadd.f32 %v599, %v1581
        %v1583 = vpop.f32.mrb[0].mxu0
        %1584 = vmatprep.mubr.f32.mxu0 0.0
        %1585 = vmatmul.mubr.f32.gmra.mrb[0].mxu0 %v921
        %v1586 = vpop.f32.mrb[0].mxu0
        %v1587 = vadd.f32 %v599, %v1586
        %v1588 = vpop.f32.mrb[0].mxu0
        %1589 = vmatprep.mubr.f32.mxu0 0.0
        %1590 = vmatmul.mubr.f32.gmra.mrb[0].mxu0 %v924
        %v1591 = vpop.f32.mrb[0].mxu0
        %v1592 = vadd.f32 %v599, %v1591
        %v1593 = vpop.f32.mrb[0].mxu0
        %1594 = vmatprep.mubr.f32.mxu0 0.0
        %1595 = vmatmul.mubr.f32.gmra.mrb[0].mxu0 %v927
        %v1596 = vpop.f32.mrb[0].mxu0
        %v1597 = vadd.f32 %v599, %v1596
        %v1598 = vpop.f32.mrb[0].mxu0
        %1599 = vmatprep.mubr.f32.mxu0 0.0
        %1600 = vmatmul.mubr.f32.gmra.mrb[0].mxu0 %v930
        %v1601 = vpop.f32.mrb[0].mxu0
        %v1602 = vadd.f32 %v599, %v1601
        %v1603 = vpop.f32.mrb[0].mxu0
        %1604 = vmatprep.mubr.f32.mxu0 0.0
        %1605 = vmatmul.mubr.f32.gmra.mrb[0].mxu0 %v933
        %v1606 = vpop.f32.mrb[0].mxu0
        %v1607 = vadd.f32 %v599, %v1606
        %v1608 = vpop.f32.mrb[0].mxu0
        %1609 = vmatprep.mubr.f32.mxu0 0.0
        %1610 = vmatmul.mubr.f32.gmra.mrb[0].mxu0 %v936
        %v1611 = vpop.f32.mrb[0].mxu0
        %v1612 = vadd.f32 %v599, %v1611
        %v1613 = vpop.f32.mrb[0].mxu0
        %1614 = vmatprep.mubr.f32.mxu0 0.0
        %1615 = vmatmul.mubr.f32.gmra.mrb[0].mxu0 %v939
        %v1616 = vpop.f32.mrb[0].mxu0
        %v1617 = vadd.f32 %v599, %v1616
        %v1618 = vpop.f32.mrb[0].mxu0
        %1619 = vmatprep.mubr.f32.mxu0 0.0
        %1620 = vmatmul.mubr.f32.gmra.mrb[0].mxu0 %v942
        %v1621 = vpop.f32.mrb[0].mxu0
        %v1622 = vadd.f32 %v599, %v1621
        %v1623 = vpop.f32.mrb[0].mxu0
        %1624 = vmatprep.mubr.f32.mxu0 0.0
        %1625 = vmatmul.mubr.f32.gmra.mrb[0].mxu0 %v945
        %v1626 = vpop.f32.mrb[0].mxu0
        %v1627 = vadd.f32 %v599, %v1626
        %v1628 = vpop.f32.mrb[0].mxu0
        %1629 = vmatprep.mubr.f32.mxu0 0.0
        %1630 = vmatmul.mubr.f32.gmra.mrb[0].mxu0 %v948
        %v1631 = vpop.f32.mrb[0].mxu0
        %v1632 = vadd.f32 %v599, %v1631
        %v1633 = vpop.f32.mrb[0].mxu0
        %1634 = vmatprep.mubr.f32.mxu0 0.0
        %1635 = vmatmul.mubr.f32.gmra.mrb[0].mxu0 %v951
        %v1636 = vpop.f32.mrb[0].mxu0
        %v1637 = vadd.f32 %v599, %v1636
        %v1638 = vpop.f32.mrb[0].mxu0
        %1639 = vmatprep.mubr.f32.mxu0 0.0
        %1640 = vmatmul.mubr.f32.gmra.mrb[0].mxu0 %v954
        %v1641 = vpop.f32.mrb[0].mxu0
        %v1642 = vadd.f32 %v599, %v1641
        %v1643 = vpop.f32.mrb[0].mxu0
        %1644 = vmatprep.mubr.f32.mxu0 0.0
        %1645 = vmatmul.mubr.f32.gmra.mrb[0].mxu0 %v957
        %v1646 = vpop.f32.mrb[0].mxu0
        %v1647 = vadd.f32 %v599, %v1646
        %v1648 = vpop.f32.mrb[0].mxu0
        %1649 = vmatprep.mubr.f32.mxu0 0.0
        %1650 = vmatmul.mubr.f32.gmra.mrb[0].mxu0 %v960
        %v1651 = vpop.f32.mrb[0].mxu0
        %v1652 = vadd.f32 %v599, %v1651
        %v1653 = vpop.f32.mrb[0].mxu0
        %1654 = vmatprep.mubr.f32.mxu0 0.0
        %1655 = vmatmul.mubr.f32.gmra.mrb[0].mxu0 %v963
        %v1656 = vpop.f32.mrb[0].mxu0
        %v1657 = vadd.f32 %v599, %v1656
        %v1658 = vpop.f32.mrb[0].mxu0
        %1659 = vmatprep.mubr.f32.mxu0 0.0
        %1660 = vmatmul.mubr.f32.gmra.mrb[0].mxu0 %v966
        %v1661 = vpop.f32.mrb[0].mxu0
        %v1662 = vadd.f32 %v599, %v1661
        %v1663 = vpop.f32.mrb[0].mxu0
        %1664 = vmatprep.mubr.f32.mxu0 0.0
        %1665 = vmatmul.mubr.f32.gmra.mrb[0].mxu0 %v969
        %v1666 = vpop.f32.mrb[0].mxu0
        %v1667 = vadd.f32 %v599, %v1666
        %v1668 = vpop.f32.mrb[0].mxu0
        %1669 = vmatprep.mubr.f32.mxu0 0.0
        %1670 = vmatmul.mubr.f32.gmra.mrb[0].mxu0 %v972
        %v1671 = vpop.f32.mrb[0].mxu0
        %v1672 = vadd.f32 %v599, %v1671
        %v1673 = vpop.f32.mrb[0].mxu0
        %1674 = vmatprep.mubr.f32.mxu0 0.0
        %1675 = vmatmul.mubr.f32.gmra.mrb[0].mxu0 %v975
        %v1676 = vpop.f32.mrb[0].mxu0
        %v1677 = vadd.f32 %v599, %v1676
        %v1678 = vpop.f32.mrb[0].mxu0
        %1679 = vmatprep.mubr.f32.mxu0 0.0
        %1680 = vmatmul.mubr.f32.gmra.mrb[0].mxu0 %v978
        %v1681 = vpop.f32.mrb[0].mxu0
        %v1682 = vadd.f32 %v599, %v1681
        %v1683 = vpop.f32.mrb[0].mxu0
        %1684 = vmatprep.mubr.f32.mxu0 0.0
        %1685 = vmatmul.mubr.f32.gmra.mrb[0].mxu0 %v981
        %v1686 = vpop.f32.mrb[0].mxu0
        %v1687 = vadd.f32 %v599, %v1686
        %v1688 = vpop.f32.mrb[0].mxu0
        %1689 = vmatprep.mubr.f32.mxu0 0.0
        %1690 = vmatmul.mubr.f32.gmra.mrb[0].mxu0 %v984
        %v1691 = vpop.f32.mrb[0].mxu0
        %v1692 = vadd.f32 %v599, %v1691
        %v1693 = vpop.f32.mrb[0].mxu0
        %1694 = vdwg.mxu0
        %v1695 = vmax.f32 %v1057, 0.0
        %v1696 = vmax.f32 %v1062, 0.0
        %v1697 = vmax.f32 %v1067, 0.0
        %v1698 = vmax.f32 %v1072, 0.0
        %v1699 = vmax.f32 %v1077, 0.0
        %v1700 = vmax.f32 %v1082, 0.0
        %v1701 = vmax.f32 %v1087, 0.0
        %v1702 = vmax.f32 %v1092, 0.0
        %v1703 = vmax.f32 %v1097, 0.0
        %v1704 = vmax.f32 %v1102, 0.0
        %v1705 = vmax.f32 %v1107, 0.0
        %v1706 = vmax.f32 %v1112, 0.0
        %v1707 = vmax.f32 %v1117, 0.0
        %v1708 = vmax.f32 %v1122, 0.0
        %v1709 = vmax.f32 %v1127, 0.0
        %v1710 = vmax.f32 %v1132, 0.0
        %v1711 = vmax.f32 %v1137, 0.0
        %v1712 = vmax.f32 %v1142, 0.0
        %v1713 = vmax.f32 %v1147, 0.0
        %v1714 = vmax.f32 %v1152, 0.0
        %v1715 = vmax.f32 %v1157, 0.0
        %v1716 = vmax.f32 %v1162, 0.0
        %v1717 = vmax.f32 %v1167, 0.0
        %v1718 = vmax.f32 %v1172, 0.0
        %v1719 = vmax.f32 %v1177, 0.0
        %v1720 = vmax.f32 %v1182, 0.0
        %v1721 = vmax.f32 %v1187, 0.0
        %v1722 = vmax.f32 %v1192, 0.0
        %v1723 = vmax.f32 %v1197, 0.0
        %v1724 = vmax.f32 %v1202, 0.0
        %v1725 = vmax.f32 %v1207, 0.0
        %v1726 = vmax.f32 %v1212, 0.0
        %v1727 = vmax.f32 %v1217, 0.0
        %v1728 = vmax.f32 %v1222, 0.0
        %v1729 = vmax.f32 %v1227, 0.0
        %v1730 = vmax.f32 %v1232, 0.0
        %v1731 = vmax.f32 %v1237, 0.0
        %v1732 = vmax.f32 %v1242, 0.0
        %v1733 = vmax.f32 %v1247, 0.0
        %v1734 = vmax.f32 %v1252, 0.0
        %v1735 = vmax.f32 %v1257, 0.0
        %v1736 = vmax.f32 %v1262, 0.0
        %v1737 = vmax.f32 %v1267, 0.0
        %v1738 = vmax.f32 %v1272, 0.0
        %v1739 = vmax.f32 %v1277, 0.0
        %v1740 = vmax.f32 %v1282, 0.0
        %v1741 = vmax.f32 %v1287, 0.0
        %v1742 = vmax.f32 %v1292, 0.0
        %v1743 = vmax.f32 %v1297, 0.0
        %v1744 = vmax.f32 %v1302, 0.0
        %v1745 = vmax.f32 %v1307, 0.0
        %v1746 = vmax.f32 %v1312, 0.0
        %v1747 = vmax.f32 %v1317, 0.0
        %v1748 = vmax.f32 %v1322, 0.0
        %v1749 = vmax.f32 %v1327, 0.0
        %v1750 = vmax.f32 %v1332, 0.0
        %v1751 = vmax.f32 %v1337, 0.0
        %v1752 = vmax.f32 %v1342, 0.0
        %v1753 = vmax.f32 %v1347, 0.0
        %v1754 = vmax.f32 %v1352, 0.0
        %v1755 = vmax.f32 %v1357, 0.0
        %v1756 = vmax.f32 %v1362, 0.0
        %v1757 = vmax.f32 %v1367, 0.0
        %v1758 = vmax.f32 %v1372, 0.0
        %v1759 = vmax.f32 %v1377, 0.0
        %v1760 = vmax.f32 %v1382, 0.0
        %v1761 = vmax.f32 %v1387, 0.0
        %v1762 = vmax.f32 %v1392, 0.0
        %v1763 = vmax.f32 %v1397, 0.0
        %v1764 = vmax.f32 %v1402, 0.0
        %v1765 = vmax.f32 %v1407, 0.0
        %v1766 = vmax.f32 %v1412, 0.0
        %v1767 = vmax.f32 %v1417, 0.0
        %v1768 = vmax.f32 %v1422, 0.0
        %v1769 = vmax.f32 %v1427, 0.0
        %v1770 = vmax.f32 %v1432, 0.0
        %v1771 = vmax.f32 %v1437, 0.0
        %v1772 = vmax.f32 %v1442, 0.0
        %v1773 = vmax.f32 %v1447, 0.0
        %v1774 = vmax.f32 %v1452, 0.0
        %v1775 = vmax.f32 %v1457, 0.0
        %v1776 = vmax.f32 %v1462, 0.0
        %v1777 = vmax.f32 %v1467, 0.0
        %v1778 = vmax.f32 %v1472, 0.0
        %v1779 = vmax.f32 %v1477, 0.0
        %v1780 = vmax.f32 %v1482, 0.0
        %v1781 = vmax.f32 %v1487, 0.0
        %v1782 = vmax.f32 %v1492, 0.0
        %v1783 = vmax.f32 %v1497, 0.0
        %v1784 = vmax.f32 %v1502, 0.0
        %v1785 = vmax.f32 %v1507, 0.0
        %v1786 = vmax.f32 %v1512, 0.0
        %v1787 = vmax.f32 %v1517, 0.0
        %v1788 = vmax.f32 %v1522, 0.0
        %v1789 = vmax.f32 %v1527, 0.0
        %v1790 = vmax.f32 %v1532, 0.0
        %v1791 = vmax.f32 %v1537, 0.0
        %v1792 = vmax.f32 %v1542, 0.0
        %v1793 = vmax.f32 %v1547, 0.0
        %v1794 = vmax.f32 %v1552, 0.0
        %v1795 = vmax.f32 %v1557, 0.0
        %v1796 = vmax.f32 %v1562, 0.0
        %v1797 = vmax.f32 %v1567, 0.0
        %v1798 = vmax.f32 %v1572, 0.0
        %v1799 = vmax.f32 %v1577, 0.0
        %v1800 = vmax.f32 %v1582, 0.0
        %v1801 = vmax.f32 %v1587, 0.0
        %v1802 = vmax.f32 %v1592, 0.0
        %v1803 = vmax.f32 %v1597, 0.0
        %v1804 = vmax.f32 %v1602, 0.0
        %v1805 = vmax.f32 %v1607, 0.0
        %v1806 = vmax.f32 %v1612, 0.0
        %v1807 = vmax.f32 %v1617, 0.0
        %v1808 = vmax.f32 %v1622, 0.0
        %v1809 = vmax.f32 %v1627, 0.0
        %v1810 = vmax.f32 %v1632, 0.0
        %v1811 = vmax.f32 %v1637, 0.0
        %v1812 = vmax.f32 %v1642, 0.0
        %v1813 = vmax.f32 %v1647, 0.0
        %v1814 = vmax.f32 %v1652, 0.0
        %v1815 = vmax.f32 %v1657, 0.0
        %v1816 = vmax.f32 %v1662, 0.0
        %v1817 = vmax.f32 %v1667, 0.0
        %v1818 = vmax.f32 %v1672, 0.0
        %v1819 = vmax.f32 %v1677, 0.0
        %v1820 = vmax.f32 %v1682, 0.0
        %v1821 = vmax.f32 %v1687, 0.0
        %v1822 = vmax.f32 %v1692, 0.0
        %v1823 = vmax.f32 %v1695, %v1699
        %v1824 = vmax.f32 %v1696, %v1700
        %v1825 = vmax.f32 %v1697, %v1701
        %v1826 = vmax.f32 %v1698, %v1702
        %v1827 = vmax.f32 %v1703, %v1707
        %v1828 = vmax.f32 %v1704, %v1708
        %v1829 = vmax.f32 %v1705, %v1709
        %v1830 = vmax.f32 %v1706, %v1710
        %v1831 = vmax.f32 %v1711, %v1715
        %v1832 = vmax.f32 %v1712, %v1716
        %v1833 = vmax.f32 %v1713, %v1717
        %v1834 = vmax.f32 %v1714, %v1718
        %v1835 = vmax.f32 %v1719, %v1723
        %v1836 = vmax.f32 %v1720, %v1724
        %v1837 = vmax.f32 %v1721, %v1725
        %v1838 = vmax.f32 %v1722, %v1726
        %v1839 = vmax.f32 %v1727, %v1731
        %v1840 = vmax.f32 %v1728, %v1732
        %v1841 = vmax.f32 %v1729, %v1733
        %v1842 = vmax.f32 %v1730, %v1734
        %v1843 = vmax.f32 %v1735, %v1739
        %v1844 = vmax.f32 %v1736, %v1740
        %v1845 = vmax.f32 %v1737, %v1741
        %v1846 = vmax.f32 %v1738, %v1742
        %v1847 = vmax.f32 %v1743, %v1747
        %v1848 = vmax.f32 %v1744, %v1748
        %v1849 = vmax.f32 %v1745, %v1749
        %v1850 = vmax.f32 %v1746, %v1750
        %v1851 = vmax.f32 %v1751, %v1755
        %v1852 = vmax.f32 %v1752, %v1756
        %v1853 = vmax.f32 %v1753, %v1757
        %v1854 = vmax.f32 %v1754, %v1758
        %v1855 = vmax.f32 %v1759, %v1763
        %v1856 = vmax.f32 %v1760, %v1764
        %v1857 = vmax.f32 %v1761, %v1765
        %v1858 = vmax.f32 %v1762, %v1766
        %v1859 = vmax.f32 %v1767, %v1771
        %v1860 = vmax.f32 %v1768, %v1772
        %v1861 = vmax.f32 %v1769, %v1773
        %v1862 = vmax.f32 %v1770, %v1774
        %v1863 = vmax.f32 %v1775, %v1779
        %v1864 = vmax.f32 %v1776, %v1780
        %v1865 = vmax.f32 %v1777, %v1781
        %v1866 = vmax.f32 %v1778, %v1782
        %v1867 = vmax.f32 %v1783, %v1787
        %v1868 = vmax.f32 %v1784, %v1788
        %v1869 = vmax.f32 %v1785, %v1789
        %v1870 = vmax.f32 %v1786, %v1790
        %v1871 = vmax.f32 %v1791, %v1795
        %v1872 = vmax.f32 %v1792, %v1796
        %v1873 = vmax.f32 %v1793, %v1797
        %v1874 = vmax.f32 %v1794, %v1798
        %v1875 = vmax.f32 %v1799, %v1803
        %v1876 = vmax.f32 %v1800, %v1804
        %v1877 = vmax.f32 %v1801, %v1805
        %v1878 = vmax.f32 %v1802, %v1806
        %v1879 = vmax.f32 %v1807, %v1811
        %v1880 = vmax.f32 %v1808, %v1812
        %v1881 = vmax.f32 %v1809, %v1813
        %v1882 = vmax.f32 %v1810, %v1814
        %v1883 = vmax.f32 %v1815, %v1819
        %v1884 = vmax.f32 %v1816, %v1820
        %v1885 = vmax.f32 %v1817, %v1821
        %v1886 = vmax.f32 %v1818, %v1822
        %1887 = vst.msk [vmem:[#allocation6] sm:$0xff] %vm386, %v1823
        %1888 = vst.msk [vmem:[#allocation6 + $0x8] sm:$0xff] %vm386, %v1824
        %1889 = vst.msk [vmem:[#allocation6 + $0x10] sm:$0xff] %vm386, %v1825
        %1890 = vst.msk [vmem:[#allocation6 + $0x18] sm:$0xff] %vm386, %v1826
        %1891 = vst.msk [vmem:[#allocation6 + $0x20] sm:$0xff] %vm386, %v1827
        %1892 = vst.msk [vmem:[#allocation6 + $0x28] sm:$0xff] %vm386, %v1828
        %1893 = vst.msk [vmem:[#allocation6 + $0x30] sm:$0xff] %vm386, %v1829
        %1894 = vst.msk [vmem:[#allocation6 + $0x38] sm:$0xff] %vm386, %v1830
        %1895 = vst.msk [vmem:[#allocation6 + $0x40] sm:$0xff] %vm386, %v1831
        %1896 = vst.msk [vmem:[#allocation6 + $0x48] sm:$0xff] %vm386, %v1832
        %1897 = vst.msk [vmem:[#allocation6 + $0x50] sm:$0xff] %vm386, %v1833
        %1898 = vst.msk [vmem:[#allocation6 + $0x58] sm:$0xff] %vm386, %v1834
        %1899 = vst.msk [vmem:[#allocation6 + $0x60] sm:$0xff] %vm386, %v1835
        %1900 = vst.msk [vmem:[#allocation6 + $0x68] sm:$0xff] %vm386, %v1836
        %1901 = vst.msk [vmem:[#allocation6 + $0x70] sm:$0xff] %vm386, %v1837
        %1902 = vst.msk [vmem:[#allocation6 + $0x78] sm:$0xff] %vm386, %v1838
        %1903 = vst.msk [vmem:[#allocation6 + $0x80] sm:$0xff] %vm386, %v1839
        %1904 = vst.msk [vmem:[#allocation6 + $0x88] sm:$0xff] %vm386, %v1840
        %1905 = vst.msk [vmem:[#allocation6 + $0x90] sm:$0xff] %vm386, %v1841
        %1906 = vst.msk [vmem:[#allocation6 + $0x98] sm:$0xff] %vm386, %v1842
        %1907 = vst.msk [vmem:[#allocation6 + $0xa0] sm:$0xff] %vm386, %v1843
        %1908 = vst.msk [vmem:[#allocation6 + $0xa8] sm:$0xff] %vm386, %v1844
        %1909 = vst.msk [vmem:[#allocation6 + $0xb0] sm:$0xff] %vm386, %v1845
        %1910 = vst.msk [vmem:[#allocation6 + $0xb8] sm:$0xff] %vm386, %v1846
        %1911 = vst.msk [vmem:[#allocation6 + $0xc0] sm:$0xff] %vm386, %v1847
        %1912 = vst.msk [vmem:[#allocation6 + $0xc8] sm:$0xff] %vm386, %v1848
        %1913 = vst.msk [vmem:[#allocation6 + $0xd0] sm:$0xff] %vm386, %v1849
        %1914 = vst.msk [vmem:[#allocation6 + $0xd8] sm:$0xff] %vm386, %v1850
        %1915 = vst.msk [vmem:[#allocation6 + $0xe0] sm:$0xff] %vm386, %v1851
        %1916 = vst.msk [vmem:[#allocation6 + $0xe8] sm:$0xff] %vm386, %v1852
        %1917 = vst.msk [vmem:[#allocation6 + $0xf0] sm:$0xff] %vm386, %v1853
        %1918 = vst.msk [vmem:[#allocation6 + $0xf8] sm:$0xff] %vm386, %v1854
        %1919 = vst.msk [vmem:[#allocation6 + $0x100] sm:$0xff] %vm386, %v1855
        %1920 = vst.msk [vmem:[#allocation6 + $0x108] sm:$0xff] %vm386, %v1856
        %1921 = vst.msk [vmem:[#allocation6 + $0x110] sm:$0xff] %vm386, %v1857
        %1922 = vst.msk [vmem:[#allocation6 + $0x118] sm:$0xff] %vm386, %v1858
        %1923 = vst.msk [vmem:[#allocation6 + $0x120] sm:$0xff] %vm386, %v1859
        %1924 = vst.msk [vmem:[#allocation6 + $0x128] sm:$0xff] %vm386, %v1860
        %1925 = vst.msk [vmem:[#allocation6 + $0x130] sm:$0xff] %vm386, %v1861
        %1926 = vst.msk [vmem:[#allocation6 + $0x138] sm:$0xff] %vm386, %v1862
        %1927 = vst.msk [vmem:[#allocation6 + $0x140] sm:$0xff] %vm386, %v1863
        %1928 = vst.msk [vmem:[#allocation6 + $0x148] sm:$0xff] %vm386, %v1864
        %1929 = vst.msk [vmem:[#allocation6 + $0x150] sm:$0xff] %vm386, %v1865
        %1930 = vst.msk [vmem:[#allocation6 + $0x158] sm:$0xff] %vm386, %v1866
        %1931 = vst.msk [vmem:[#allocation6 + $0x160] sm:$0xff] %vm386, %v1867
        %1932 = vst.msk [vmem:[#allocation6 + $0x168] sm:$0xff] %vm386, %v1868
        %1933 = vst.msk [vmem:[#allocation6 + $0x170] sm:$0xff] %vm386, %v1869
        %1934 = vst.msk [vmem:[#allocation6 + $0x178] sm:$0xff] %vm386, %v1870
        %1935 = vst.msk [vmem:[#allocation6 + $0x180] sm:$0xff] %vm386, %v1871
        %1936 = vst.msk [vmem:[#allocation6 + $0x188] sm:$0xff] %vm386, %v1872
        %1937 = vst.msk [vmem:[#allocation6 + $0x190] sm:$0xff] %vm386, %v1873
        %1938 = vst.msk [vmem:[#allocation6 + $0x198] sm:$0xff] %vm386, %v1874
        %1939 = vst.msk [vmem:[#allocation6 + $0x1a0] sm:$0xff] %vm386, %v1875
        %1940 = vst.msk [vmem:[#allocation6 + $0x1a8] sm:$0xff] %vm386, %v1876
        %1941 = vst.msk [vmem:[#allocation6 + $0x1b0] sm:$0xff] %vm386, %v1877
        %1942 = vst.msk [vmem:[#allocation6 + $0x1b8] sm:$0xff] %vm386, %v1878
        %1943 = vst.msk [vmem:[#allocation6 + $0x1c0] sm:$0xff] %vm386, %v1879
        %1944 = vst.msk [vmem:[#allocation6 + $0x1c8] sm:$0xff] %vm386, %v1880
        %1945 = vst.msk [vmem:[#allocation6 + $0x1d0] sm:$0xff] %vm386, %v1881
        %1946 = vst.msk [vmem:[#allocation6 + $0x1d8] sm:$0xff] %vm386, %v1882
        %1947 = vst.msk [vmem:[#allocation6 + $0x1e0] sm:$0xff] %vm386, %v1883
        %1948 = vst.msk [vmem:[#allocation6 + $0x1e8] sm:$0xff] %vm386, %v1884
        %1949 = vst.msk [vmem:[#allocation6 + $0x1f0] sm:$0xff] %vm386, %v1885
        %1950 = vst.msk [vmem:[#allocation6 + $0x1f8] sm:$0xff] %vm386, %v1886
        %v1951 = vld [vmem:[#allocation6] ss:$2 sm:$0xff]
        %s1952 = scalar_lea.vmem [#allocation6], 16
        %v1953 = vld [vmem:[%s1952] ss:$2 sm:$0xff]
        %s1954 = scalar_lea.vmem [#allocation6], 32
        %v1955 = vld [vmem:[%s1954] ss:$2 sm:$0xff]
        %s1956 = scalar_lea.vmem [#allocation6], 48
        %v1957 = vld [vmem:[%s1956] ss:$2 sm:$0xff]
        %s1958 = scalar_lea.vmem [#allocation6], 64
        %v1959 = vld [vmem:[%s1958] ss:$2 sm:$0xff]
        %s1960 = scalar_lea.vmem [#allocation6], 80
        %v1961 = vld [vmem:[%s1960] ss:$2 sm:$0xff]
        %s1962 = scalar_lea.vmem [#allocation6], 96
        %v1963 = vld [vmem:[%s1962] ss:$2 sm:$0xff]
        %s1964 = scalar_lea.vmem [#allocation6], 112
        %v1965 = vld [vmem:[%s1964] ss:$2 sm:$0xff]
        %s1966 = scalar_lea.vmem [#allocation6], 128
        %v1967 = vld [vmem:[%s1966] ss:$2 sm:$0xff]
        %s1968 = scalar_lea.vmem [#allocation6], 144
        %v1969 = vld [vmem:[%s1968] ss:$2 sm:$0xff]
        %s1970 = scalar_lea.vmem [#allocation6], 160
        %v1971 = vld [vmem:[%s1970] ss:$2 sm:$0xff]
        %s1972 = scalar_lea.vmem [#allocation6], 176
        %v1973 = vld [vmem:[%s1972] ss:$2 sm:$0xff]
        %s1974 = scalar_lea.vmem [#allocation6], 192
        %v1975 = vld [vmem:[%s1974] ss:$2 sm:$0xff]
        %s1976 = scalar_lea.vmem [#allocation6], 208
        %v1977 = vld [vmem:[%s1976] ss:$2 sm:$0xff]
        %s1978 = scalar_lea.vmem [#allocation6], 224
        %v1979 = vld [vmem:[%s1978] ss:$2 sm:$0xff]
        %s1980 = scalar_lea.vmem [#allocation6], 240
        %v1981 = vld [vmem:[%s1980] ss:$2 sm:$0xff]
        %s1982 = scalar_lea.vmem [#allocation6], 256
        %v1983 = vld [vmem:[%s1982] ss:$2 sm:$0xff]
        %s1984 = scalar_lea.vmem [#allocation6], 272
        %v1985 = vld [vmem:[%s1984] ss:$2 sm:$0xff]
        %s1986 = scalar_lea.vmem [#allocation6], 288
        %v1987 = vld [vmem:[%s1986] ss:$2 sm:$0xff]
        %s1988 = scalar_lea.vmem [#allocation6], 304
        %v1989 = vld [vmem:[%s1988] ss:$2 sm:$0xff]
        %s1990 = scalar_lea.vmem [#allocation6], 320
        %v1991 = vld [vmem:[%s1990] ss:$2 sm:$0xff]
        %s1992 = scalar_lea.vmem [#allocation6], 336
        %v1993 = vld [vmem:[%s1992] ss:$2 sm:$0xff]
        %s1994 = scalar_lea.vmem [#allocation6], 352
        %v1995 = vld [vmem:[%s1994] ss:$2 sm:$0xff]
        %s1996 = scalar_lea.vmem [#allocation6], 368
        %v1997 = vld [vmem:[%s1996] ss:$2 sm:$0xff]
        %s1998 = scalar_lea.vmem [#allocation6], 384
        %v1999 = vld [vmem:[%s1998] ss:$2 sm:$0xff]
        %s2000 = scalar_lea.vmem [#allocation6], 400
        %v2001 = vld [vmem:[%s2000] ss:$2 sm:$0xff]
        %s2002 = scalar_lea.vmem [#allocation6], 416
        %v2003 = vld [vmem:[%s2002] ss:$2 sm:$0xff]
        %s2004 = scalar_lea.vmem [#allocation6], 432
        %v2005 = vld [vmem:[%s2004] ss:$2 sm:$0xff]
        %s2006 = scalar_lea.vmem [#allocation6], 448
        %v2007 = vld [vmem:[%s2006] ss:$2 sm:$0xff]
        %s2008 = scalar_lea.vmem [#allocation6], 464
        %v2009 = vld [vmem:[%s2008] ss:$2 sm:$0xff]
        %s2010 = scalar_lea.vmem [#allocation6], 480
        %v2011 = vld [vmem:[%s2010] ss:$2 sm:$0xff]
        %s2012 = scalar_lea.vmem [#allocation6], 496
        %v2013 = vld [vmem:[%s2012] ss:$2 sm:$0xff]
        %s2014 = scalar_lea.vmem [#allocation6], 1
        %v2015 = vld [vmem:[%s2014] ss:$2 sm:$0xff]
        %s2016 = scalar_lea.vmem [#allocation6], 17
        %v2017 = vld [vmem:[%s2016] ss:$2 sm:$0xff]
        %s2018 = scalar_lea.vmem [#allocation6], 33
        %v2019 = vld [vmem:[%s2018] ss:$2 sm:$0xff]
        %s2020 = scalar_lea.vmem [#allocation6], 49
        %v2021 = vld [vmem:[%s2020] ss:$2 sm:$0xff]
        %s2022 = scalar_lea.vmem [#allocation6], 65
        %v2023 = vld [vmem:[%s2022] ss:$2 sm:$0xff]
        %s2024 = scalar_lea.vmem [#allocation6], 81
        %v2025 = vld [vmem:[%s2024] ss:$2 sm:$0xff]
        %s2026 = scalar_lea.vmem [#allocation6], 97
        %v2027 = vld [vmem:[%s2026] ss:$2 sm:$0xff]
        %s2028 = scalar_lea.vmem [#allocation6], 113
        %v2029 = vld [vmem:[%s2028] ss:$2 sm:$0xff]
        %s2030 = scalar_lea.vmem [#allocation6], 129
        %v2031 = vld [vmem:[%s2030] ss:$2 sm:$0xff]
        %s2032 = scalar_lea.vmem [#allocation6], 145
        %v2033 = vld [vmem:[%s2032] ss:$2 sm:$0xff]
        %s2034 = scalar_lea.vmem [#allocation6], 161
        %v2035 = vld [vmem:[%s2034] ss:$2 sm:$0xff]
        %s2036 = scalar_lea.vmem [#allocation6], 177
        %v2037 = vld [vmem:[%s2036] ss:$2 sm:$0xff]
        %s2038 = scalar_lea.vmem [#allocation6], 193
        %v2039 = vld [vmem:[%s2038] ss:$2 sm:$0xff]
        %s2040 = scalar_lea.vmem [#allocation6], 209
        %v2041 = vld [vmem:[%s2040] ss:$2 sm:$0xff]
        %s2042 = scalar_lea.vmem [#allocation6], 225
        %v2043 = vld [vmem:[%s2042] ss:$2 sm:$0xff]
        %s2044 = scalar_lea.vmem [#allocation6], 241
        %v2045 = vld [vmem:[%s2044] ss:$2 sm:$0xff]
        %s2046 = scalar_lea.vmem [#allocation6], 257
        %v2047 = vld [vmem:[%s2046] ss:$2 sm:$0xff]
        %s2048 = scalar_lea.vmem [#allocation6], 273
        %v2049 = vld [vmem:[%s2048] ss:$2 sm:$0xff]
        %s2050 = scalar_lea.vmem [#allocation6], 289
        %v2051 = vld [vmem:[%s2050] ss:$2 sm:$0xff]
        %s2052 = scalar_lea.vmem [#allocation6], 305
        %v2053 = vld [vmem:[%s2052] ss:$2 sm:$0xff]
        %s2054 = scalar_lea.vmem [#allocation6], 321
        %v2055 = vld [vmem:[%s2054] ss:$2 sm:$0xff]
        %s2056 = scalar_lea.vmem [#allocation6], 337
        %v2057 = vld [vmem:[%s2056] ss:$2 sm:$0xff]
        %s2058 = scalar_lea.vmem [#allocation6], 353
        %v2059 = vld [vmem:[%s2058] ss:$2 sm:$0xff]
        %s2060 = scalar_lea.vmem [#allocation6], 369
        %v2061 = vld [vmem:[%s2060] ss:$2 sm:$0xff]
        %s2062 = scalar_lea.vmem [#allocation6], 385
        %v2063 = vld [vmem:[%s2062] ss:$2 sm:$0xff]
        %s2064 = scalar_lea.vmem [#allocation6], 401
        %v2065 = vld [vmem:[%s2064] ss:$2 sm:$0xff]
        %s2066 = scalar_lea.vmem [#allocation6], 417
        %v2067 = vld [vmem:[%s2066] ss:$2 sm:$0xff]
        %s2068 = scalar_lea.vmem [#allocation6], 433
        %v2069 = vld [vmem:[%s2068] ss:$2 sm:$0xff]
        %s2070 = scalar_lea.vmem [#allocation6], 449
        %v2071 = vld [vmem:[%s2070] ss:$2 sm:$0xff]
        %s2072 = scalar_lea.vmem [#allocation6], 465
        %v2073 = vld [vmem:[%s2072] ss:$2 sm:$0xff]
        %s2074 = scalar_lea.vmem [#allocation6], 481
        %v2075 = vld [vmem:[%s2074] ss:$2 sm:$0xff]
        %s2076 = scalar_lea.vmem [#allocation6], 497
        %v2077 = vld [vmem:[%s2076] ss:$2 sm:$0xff]
        %v2078 = vmax.f32 %v1951, %v2015
        %v2079 = vmax.f32 %v1953, %v2017
        %v2080 = vmax.f32 %v1955, %v2019
        %v2081 = vmax.f32 %v1957, %v2021
        %v2082 = vmax.f32 %v1959, %v2023
        %v2083 = vmax.f32 %v1961, %v2025
        %v2084 = vmax.f32 %v1963, %v2027
        %v2085 = vmax.f32 %v1965, %v2029
        %v2086 = vmax.f32 %v1967, %v2031
        %v2087 = vmax.f32 %v1969, %v2033
        %v2088 = vmax.f32 %v1971, %v2035
        %v2089 = vmax.f32 %v1973, %v2037
        %v2090 = vmax.f32 %v1975, %v2039
        %v2091 = vmax.f32 %v1977, %v2041
        %v2092 = vmax.f32 %v1979, %v2043
        %v2093 = vmax.f32 %v1981, %v2045
        %v2094 = vmax.f32 %v1983, %v2047
        %v2095 = vmax.f32 %v1985, %v2049
        %v2096 = vmax.f32 %v1987, %v2051
        %v2097 = vmax.f32 %v1989, %v2053
        %v2098 = vmax.f32 %v1991, %v2055
        %v2099 = vmax.f32 %v1993, %v2057
        %v2100 = vmax.f32 %v1995, %v2059
        %v2101 = vmax.f32 %v1997, %v2061
        %v2102 = vmax.f32 %v1999, %v2063
        %v2103 = vmax.f32 %v2001, %v2065
        %v2104 = vmax.f32 %v2003, %v2067
        %v2105 = vmax.f32 %v2005, %v2069
        %v2106 = vmax.f32 %v2007, %v2071
        %v2107 = vmax.f32 %v2009, %v2073
        %v2108 = vmax.f32 %v2011, %v2075
        %v2109 = vmax.f32 %v2013, %v2077
        %s2110 = scalar_lea.vmem [#allocation2], 24
        %2111 = vst.msk [vmem:[%s2110 + $0x1] sm:$0xff] %vm386, %v2078
        %2112 = vst.msk [vmem:[%s2110 + $0x9] sm:$0xff] %vm386, %v2079
        %2113 = vst.msk [vmem:[%s2110 + $0x19] sm:$0xff] %vm386, %v2080
        %2114 = vst.msk [vmem:[%s2110 + $0x21] sm:$0xff] %vm386, %v2081
        %2115 = vst.msk [vmem:[%s2110 + $0x31] sm:$0xff] %vm386, %v2082
        %2116 = vst.msk [vmem:[%s2110 + $0x39] sm:$0xff] %vm386, %v2083
        %2117 = vst.msk [vmem:[%s2110 + $0x49] sm:$0xff] %vm386, %v2084
        %2118 = vst.msk [vmem:[%s2110 + $0x51] sm:$0xff] %vm386, %v2085
        %2119 = vst.msk [vmem:[%s2110 + $0x61] sm:$0xff] %vm386, %v2086
        %2120 = vst.msk [vmem:[%s2110 + $0x69] sm:$0xff] %vm386, %v2087
        %2121 = vst.msk [vmem:[%s2110 + $0x79] sm:$0xff] %vm386, %v2088
        %2122 = vst.msk [vmem:[%s2110 + $0x81] sm:$0xff] %vm386, %v2089
        %2123 = vst.msk [vmem:[%s2110 + $0x91] sm:$0xff] %vm386, %v2090
        %2124 = vst.msk [vmem:[%s2110 + $0x99] sm:$0xff] %vm386, %v2091
        %2125 = vst.msk [vmem:[%s2110 + $0xa9] sm:$0xff] %vm386, %v2092
        %2126 = vst.msk [vmem:[%s2110 + $0xb1] sm:$0xff] %vm386, %v2093
        %2127 = vst.msk [vmem:[%s2110 + $0xc1] sm:$0xff] %vm386, %v2094
        %2128 = vst.msk [vmem:[%s2110 + $0xc9] sm:$0xff] %vm386, %v2095
        %2129 = vst.msk [vmem:[%s2110 + $0xd9] sm:$0xff] %vm386, %v2096
        %2130 = vst.msk [vmem:[%s2110 + $0xe1] sm:$0xff] %vm386, %v2097
        %2131 = vst.msk [vmem:[%s2110 + $0xf1] sm:$0xff] %vm386, %v2098
        %2132 = vst.msk [vmem:[%s2110 + $0xf9] sm:$0xff] %vm386, %v2099
        %2133 = vst.msk [vmem:[%s2110 + $0x109] sm:$0xff] %vm386, %v2100
        %2134 = vst.msk [vmem:[%s2110 + $0x111] sm:$0xff] %vm386, %v2101
        %2135 = vst.msk [vmem:[%s2110 + $0x121] sm:$0xff] %vm386, %v2102
        %2136 = vst.msk [vmem:[%s2110 + $0x129] sm:$0xff] %vm386, %v2103
        %2137 = vst.msk [vmem:[%s2110 + $0x139] sm:$0xff] %vm386, %v2104
        %2138 = vst.msk [vmem:[%s2110 + $0x141] sm:$0xff] %vm386, %v2105
        %2139 = vst.msk [vmem:[%s2110 + $0x151] sm:$0xff] %vm386, %v2106
        %2140 = vst.msk [vmem:[%s2110 + $0x159] sm:$0xff] %vm386, %v2107
        %2141 = vst.msk [vmem:[%s2110 + $0x169] sm:$0xff] %vm386, %v2108
        %2142 = vst.msk [vmem:[%s2110 + $0x171] sm:$0xff] %vm386, %v2109
        %v2143 = vld [vmem:[#allocation2] sm:$0xff]
        %v2144 = vld [vmem:[#allocation2 + $0x8] sm:$0xff]
        %v2145 = vld [vmem:[#allocation2 + $0x18] sm:$0xff]
        %v2146 = vld [vmem:[#allocation2 + $0x20] sm:$0xff]
        %v2147 = vld [vmem:[#allocation2 + $0x30] sm:$0xff]
        %v2148 = vld [vmem:[#allocation2 + $0x38] sm:$0xff]
        %v2149 = vld [vmem:[#allocation2 + $0x48] sm:$0xff]
        %v2150 = vld [vmem:[#allocation2 + $0x50] sm:$0xff]
        %v2151 = vld [vmem:[#allocation2 + $0x60] sm:$0xff]
        %v2152 = vld [vmem:[#allocation2 + $0x68] sm:$0xff]
        %v2153 = vld [vmem:[#allocation2 + $0x78] sm:$0xff]
        %v2154 = vld [vmem:[#allocation2 + $0x80] sm:$0xff]
        %v2155 = vld [vmem:[#allocation2 + $0x90] sm:$0xff]
        %v2156 = vld [vmem:[#allocation2 + $0x98] sm:$0xff]
        %v2157 = vld [vmem:[#allocation2 + $0xa8] sm:$0xff]
        %v2158 = vld [vmem:[#allocation2 + $0xb0] sm:$0xff]
        %v2159 = vld [vmem:[#allocation2 + $0xc0] sm:$0xff]
        %v2160 = vld [vmem:[#allocation2 + $0xc8] sm:$0xff]
        %v2161 = vld [vmem:[#allocation2 + $0xd8] sm:$0xff]
        %v2162 = vld [vmem:[#allocation2 + $0xe0] sm:$0xff]
        %v2163 = vld [vmem:[#allocation2 + $0xf0] sm:$0xff]
        %v2164 = vld [vmem:[#allocation2 + $0xf8] sm:$0xff]
        %v2165 = vld [vmem:[#allocation2 + $0x108] sm:$0xff]
        %v2166 = vld [vmem:[#allocation2 + $0x110] sm:$0xff]
        %v2167 = vld [vmem:[#allocation2 + $0x120] sm:$0xff]
        %v2168 = vld [vmem:[#allocation2 + $0x128] sm:$0xff]
        %v2169 = vld [vmem:[#allocation2 + $0x138] sm:$0xff]
        %v2170 = vld [vmem:[#allocation2 + $0x140] sm:$0xff]
        %v2171 = vld [vmem:[#allocation2 + $0x150] sm:$0xff]
        %v2172 = vld [vmem:[#allocation2 + $0x158] sm:$0xff]
        %v2173 = vld [vmem:[#allocation2 + $0x168] sm:$0xff]
        %v2174 = vld [vmem:[#allocation2 + $0x170] sm:$0xff]
        %2175 = vst.msk [vmem:[#allocation4] sm:$0xff] %vm386, %v2143
        %2176 = vst.msk [vmem:[#allocation4 + $0x18] sm:$0xff] %vm386, %v2144
        %2177 = vst.msk [vmem:[#allocation4 + $0x30] sm:$0xff] %vm386, %v2145
        %2178 = vst.msk [vmem:[#allocation4 + $0x48] sm:$0xff] %vm386, %v2146
        %2179 = vst.msk [vmem:[#allocation4 + $0x60] sm:$0xff] %vm386, %v2147
        %2180 = vst.msk [vmem:[#allocation4 + $0x78] sm:$0xff] %vm386, %v2148
        %2181 = vst.msk [vmem:[#allocation4 + $0x90] sm:$0xff] %vm386, %v2149
        %2182 = vst.msk [vmem:[#allocation4 + $0xa8] sm:$0xff] %vm386, %v2150
        %2183 = vst.msk [vmem:[#allocation4 + $0xc0] sm:$0xff] %vm386, %v2151
        %2184 = vst.msk [vmem:[#allocation4 + $0xd8] sm:$0xff] %vm386, %v2152
        %2185 = vst.msk [vmem:[#allocation4 + $0xf0] sm:$0xff] %vm386, %v2153
        %2186 = vst.msk [vmem:[#allocation4 + $0x108] sm:$0xff] %vm386, %v2154
        %2187 = vst.msk [vmem:[#allocation4 + $0x120] sm:$0xff] %vm386, %v2155
        %2188 = vst.msk [vmem:[#allocation4 + $0x138] sm:$0xff] %vm386, %v2156
        %2189 = vst.msk [vmem:[#allocation4 + $0x150] sm:$0xff] %vm386, %v2157
        %2190 = vst.msk [vmem:[#allocation4 + $0x168] sm:$0xff] %vm386, %v2158
        %2191 = vst.msk [vmem:[#allocation4 + $0x180] sm:$0xff] %vm386, %v2159
        %2192 = vst.msk [vmem:[#allocation4 + $0x198] sm:$0xff] %vm386, %v2160
        %2193 = vst.msk [vmem:[#allocation4 + $0x1b0] sm:$0xff] %vm386, %v2161
        %2194 = vst.msk [vmem:[#allocation4 + $0x1c8] sm:$0xff] %vm386, %v2162
        %2195 = vst.msk [vmem:[#allocation4 + $0x1e0] sm:$0xff] %vm386, %v2163
        %2196 = vst.msk [vmem:[#allocation4 + $0x1f8] sm:$0xff] %vm386, %v2164
        %2197 = vst.msk [vmem:[#allocation4 + $0x210] sm:$0xff] %vm386, %v2165
        %2198 = vst.msk [vmem:[#allocation4 + $0x228] sm:$0xff] %vm386, %v2166
        %2199 = vst.msk [vmem:[#allocation4 + $0x240] sm:$0xff] %vm386, %v2167
        %2200 = vst.msk [vmem:[#allocation4 + $0x258] sm:$0xff] %vm386, %v2168
        %2201 = vst.msk [vmem:[#allocation4 + $0x270] sm:$0xff] %vm386, %v2169
        %2202 = vst.msk [vmem:[#allocation4 + $0x288] sm:$0xff] %vm386, %v2170
        %2203 = vst.msk [vmem:[#allocation4 + $0x2a0] sm:$0xff] %vm386, %v2171
        %2204 = vst.msk [vmem:[#allocation4 + $0x2b8] sm:$0xff] %vm386, %v2172
        %2205 = vst.msk [vmem:[#allocation4 + $0x2d0] sm:$0xff] %vm386, %v2173
        %2206 = vst.msk [vmem:[#allocation4 + $0x2e8] sm:$0xff] %vm386, %v2174
        %v2207 = vld [vmem:[#allocation2 + $0x1] sm:$0xff]
        %v2208 = vld [vmem:[#allocation2 + $0x9] sm:$0xff]
        %v2209 = vld [vmem:[#allocation2 + $0x19] sm:$0xff]
        %v2210 = vld [vmem:[#allocation2 + $0x21] sm:$0xff]
        %v2211 = vld [vmem:[#allocation2 + $0x31] sm:$0xff]
        %v2212 = vld [vmem:[#allocation2 + $0x39] sm:$0xff]
        %v2213 = vld [vmem:[#allocation2 + $0x49] sm:$0xff]
        %v2214 = vld [vmem:[#allocation2 + $0x51] sm:$0xff]
        %v2215 = vld [vmem:[#allocation2 + $0x61] sm:$0xff]
        %v2216 = vld [vmem:[#allocation2 + $0x69] sm:$0xff]
        %v2217 = vld [vmem:[#allocation2 + $0x79] sm:$0xff]
        %v2218 = vld [vmem:[#allocation2 + $0x81] sm:$0xff]
        %v2219 = vld [vmem:[#allocation2 + $0x91] sm:$0xff]
        %v2220 = vld [vmem:[#allocation2 + $0x99] sm:$0xff]
        %v2221 = vld [vmem:[#allocation2 + $0xa9] sm:$0xff]
        %v2222 = vld [vmem:[#allocation2 + $0xb1] sm:$0xff]
        %v2223 = vld [vmem:[#allocation2 + $0xc1] sm:$0xff]
        %v2224 = vld [vmem:[#allocation2 + $0xc9] sm:$0xff]
        %v2225 = vld [vmem:[#allocation2 + $0xd9] sm:$0xff]
        %v2226 = vld [vmem:[#allocation2 + $0xe1] sm:$0xff]
        %v2227 = vld [vmem:[#allocation2 + $0xf1] sm:$0xff]
        %v2228 = vld [vmem:[#allocation2 + $0xf9] sm:$0xff]
        %v2229 = vld [vmem:[#allocation2 + $0x109] sm:$0xff]
        %v2230 = vld [vmem:[#allocation2 + $0x111] sm:$0xff]
        %v2231 = vld [vmem:[#allocation2 + $0x121] sm:$0xff]
        %v2232 = vld [vmem:[#allocation2 + $0x129] sm:$0xff]
        %v2233 = vld [vmem:[#allocation2 + $0x139] sm:$0xff]
        %v2234 = vld [vmem:[#allocation2 + $0x141] sm:$0xff]
        %v2235 = vld [vmem:[#allocation2 + $0x151] sm:$0xff]
        %v2236 = vld [vmem:[#allocation2 + $0x159] sm:$0xff]
        %v2237 = vld [vmem:[#allocation2 + $0x169] sm:$0xff]
        %v2238 = vld [vmem:[#allocation2 + $0x171] sm:$0xff]
        %2271 = vrot.lane.b32.xlu0 %v2207, 32
        %v2272 = vpop.permute.xlu0 %2271
        %2273 = vrot.lane.b32.xlu0 %v2208, 32
        %v2274 = vpop.permute.xlu0 %2273
        %2275 = vrot.lane.b32.xlu0 %v2209, 32
        %v2276 = vpop.permute.xlu0 %2275
        %2277 = vrot.lane.b32.xlu0 %v2210, 32
        %v2278 = vpop.permute.xlu0 %2277
        %2279 = vrot.lane.b32.xlu0 %v2211, 32
        %v2280 = vpop.permute.xlu0 %2279
        %2281 = vrot.lane.b32.xlu0 %v2212, 32
        %v2282 = vpop.permute.xlu0 %2281
        %2283 = vrot.lane.b32.xlu0 %v2213, 32
        %v2284 = vpop.permute.xlu0 %2283
        %2285 = vrot.lane.b32.xlu0 %v2214, 32
        %v2286 = vpop.permute.xlu0 %2285
        %2287 = vrot.lane.b32.xlu0 %v2215, 32
        %v2288 = vpop.permute.xlu0 %2287
        %2289 = vrot.lane.b32.xlu0 %v2216, 32
        %v2290 = vpop.permute.xlu0 %2289
        %2291 = vrot.lane.b32.xlu0 %v2217, 32
        %v2292 = vpop.permute.xlu0 %2291
        %2293 = vrot.lane.b32.xlu0 %v2218, 32
        %v2294 = vpop.permute.xlu0 %2293
        %2295 = vrot.lane.b32.xlu0 %v2219, 32
        %v2296 = vpop.permute.xlu0 %2295
        %2297 = vrot.lane.b32.xlu0 %v2220, 32
        %v2298 = vpop.permute.xlu0 %2297
        %2299 = vrot.lane.b32.xlu0 %v2221, 32
        %v2300 = vpop.permute.xlu0 %2299
        %2301 = vrot.lane.b32.xlu0 %v2222, 32
        %v2302 = vpop.permute.xlu0 %2301
        %2303 = vrot.lane.b32.xlu0 %v2223, 32
        %v2304 = vpop.permute.xlu0 %2303
        %2305 = vrot.lane.b32.xlu0 %v2224, 32
        %v2306 = vpop.permute.xlu0 %2305
        %2307 = vrot.lane.b32.xlu0 %v2225, 32
        %v2308 = vpop.permute.xlu0 %2307
        %2309 = vrot.lane.b32.xlu0 %v2226, 32
        %v2310 = vpop.permute.xlu0 %2309
        %2311 = vrot.lane.b32.xlu0 %v2227, 32
        %v2312 = vpop.permute.xlu0 %2311
        %2313 = vrot.lane.b32.xlu0 %v2228, 32
        %v2314 = vpop.permute.xlu0 %2313
        %2315 = vrot.lane.b32.xlu0 %v2229, 32
        %v2316 = vpop.permute.xlu0 %2315
        %2317 = vrot.lane.b32.xlu0 %v2230, 32
        %v2318 = vpop.permute.xlu0 %2317
        %2319 = vrot.lane.b32.xlu0 %v2231, 32
        %v2320 = vpop.permute.xlu0 %2319
        %2321 = vrot.lane.b32.xlu0 %v2232, 32
        %v2322 = vpop.permute.xlu0 %2321
        %2323 = vrot.lane.b32.xlu0 %v2233, 32
        %v2324 = vpop.permute.xlu0 %2323
        %2325 = vrot.lane.b32.xlu0 %v2234, 32
        %v2326 = vpop.permute.xlu0 %2325
        %2327 = vrot.lane.b32.xlu0 %v2235, 32
        %v2328 = vpop.permute.xlu0 %2327
        %2329 = vrot.lane.b32.xlu0 %v2236, 32
        %v2330 = vpop.permute.xlu0 %2329
        %2331 = vrot.lane.b32.xlu0 %v2237, 32
        %v2332 = vpop.permute.xlu0 %2331
        %2333 = vrot.lane.b32.xlu0 %v2238, 32
        %v2334 = vpop.permute.xlu0 %2333
        %vm2367 = vcmask 523520
        %2368 = vst.msk [vmem:[#allocation4] sm:$0xff] %vm2367, %v2272
        %2369 = vst.msk [vmem:[#allocation4 + $0x18] sm:$0xff] %vm2367, %v2274
        %2370 = vst.msk [vmem:[#allocation4 + $0x30] sm:$0xff] %vm2367, %v2276
        %2371 = vst.msk [vmem:[#allocation4 + $0x48] sm:$0xff] %vm2367, %v2278
        %2372 = vst.msk [vmem:[#allocation4 + $0x60] sm:$0xff] %vm2367, %v2280
        %2373 = vst.msk [vmem:[#allocation4 + $0x78] sm:$0xff] %vm2367, %v2282
        %2374 = vst.msk [vmem:[#allocation4 + $0x90] sm:$0xff] %vm2367, %v2284
        %2375 = vst.msk [vmem:[#allocation4 + $0xa8] sm:$0xff] %vm2367, %v2286
        %2376 = vst.msk [vmem:[#allocation4 + $0xc0] sm:$0xff] %vm2367, %v2288
        %2377 = vst.msk [vmem:[#allocation4 + $0xd8] sm:$0xff] %vm2367, %v2290
        %2378 = vst.msk [vmem:[#allocation4 + $0xf0] sm:$0xff] %vm2367, %v2292
        %2379 = vst.msk [vmem:[#allocation4 + $0x108] sm:$0xff] %vm2367, %v2294
        %2380 = vst.msk [vmem:[#allocation4 + $0x120] sm:$0xff] %vm2367, %v2296
        %2381 = vst.msk [vmem:[#allocation4 + $0x138] sm:$0xff] %vm2367, %v2298
        %2382 = vst.msk [vmem:[#allocation4 + $0x150] sm:$0xff] %vm2367, %v2300
        %2383 = vst.msk [vmem:[#allocation4 + $0x168] sm:$0xff] %vm2367, %v2302
        %2384 = vst.msk [vmem:[#allocation4 + $0x180] sm:$0xff] %vm2367, %v2304
        %2385 = vst.msk [vmem:[#allocation4 + $0x198] sm:$0xff] %vm2367, %v2306
        %2386 = vst.msk [vmem:[#allocation4 + $0x1b0] sm:$0xff] %vm2367, %v2308
        %2387 = vst.msk [vmem:[#allocation4 + $0x1c8] sm:$0xff] %vm2367, %v2310
        %2388 = vst.msk [vmem:[#allocation4 + $0x1e0] sm:$0xff] %vm2367, %v2312
        %2389 = vst.msk [vmem:[#allocation4 + $0x1f8] sm:$0xff] %vm2367, %v2314
        %2390 = vst.msk [vmem:[#allocation4 + $0x210] sm:$0xff] %vm2367, %v2316
        %2391 = vst.msk [vmem:[#allocation4 + $0x228] sm:$0xff] %vm2367, %v2318
        %2392 = vst.msk [vmem:[#allocation4 + $0x240] sm:$0xff] %vm2367, %v2320
        %2393 = vst.msk [vmem:[#allocation4 + $0x258] sm:$0xff] %vm2367, %v2322
        %2394 = vst.msk [vmem:[#allocation4 + $0x270] sm:$0xff] %vm2367, %v2324
        %2395 = vst.msk [vmem:[#allocation4 + $0x288] sm:$0xff] %vm2367, %v2326
        %2396 = vst.msk [vmem:[#allocation4 + $0x2a0] sm:$0xff] %vm2367, %v2328
        %2397 = vst.msk [vmem:[#allocation4 + $0x2b8] sm:$0xff] %vm2367, %v2330
        %2398 = vst.msk [vmem:[#allocation4 + $0x2d0] sm:$0xff] %vm2367, %v2332
        %2399 = vst.msk [vmem:[#allocation4 + $0x2e8] sm:$0xff] %vm2367, %v2334
        %v2400 = vld [vmem:[#allocation2 + $0x2] sm:$0xff]
        %v2401 = vld [vmem:[#allocation2 + $0xa] sm:$0xff]
        %v2402 = vld [vmem:[#allocation2 + $0x1a] sm:$0xff]
        %v2403 = vld [vmem:[#allocation2 + $0x22] sm:$0xff]
        %v2404 = vld [vmem:[#allocation2 + $0x32] sm:$0xff]
        %v2405 = vld [vmem:[#allocation2 + $0x3a] sm:$0xff]
        %v2406 = vld [vmem:[#allocation2 + $0x4a] sm:$0xff]
        %v2407 = vld [vmem:[#allocation2 + $0x52] sm:$0xff]
        %v2408 = vld [vmem:[#allocation2 + $0x62] sm:$0xff]
        %v2409 = vld [vmem:[#allocation2 + $0x6a] sm:$0xff]
        %v2410 = vld [vmem:[#allocation2 + $0x7a] sm:$0xff]
        %v2411 = vld [vmem:[#allocation2 + $0x82] sm:$0xff]
        %v2412 = vld [vmem:[#allocation2 + $0x92] sm:$0xff]
        %v2413 = vld [vmem:[#allocation2 + $0x9a] sm:$0xff]
        %v2414 = vld [vmem:[#allocation2 + $0xaa] sm:$0xff]
        %v2415 = vld [vmem:[#allocation2 + $0xb2] sm:$0xff]
        %v2416 = vld [vmem:[#allocation2 + $0xc2] sm:$0xff]
        %v2417 = vld [vmem:[#allocation2 + $0xca] sm:$0xff]
        %v2418 = vld [vmem:[#allocation2 + $0xda] sm:$0xff]
        %v2419 = vld [vmem:[#allocation2 + $0xe2] sm:$0xff]
        %v2420 = vld [vmem:[#allocation2 + $0xf2] sm:$0xff]
        %v2421 = vld [vmem:[#allocation2 + $0xfa] sm:$0xff]
        %v2422 = vld [vmem:[#allocation2 + $0x10a] sm:$0xff]
        %v2423 = vld [vmem:[#allocation2 + $0x112] sm:$0xff]
        %v2424 = vld [vmem:[#allocation2 + $0x122] sm:$0xff]
        %v2425 = vld [vmem:[#allocation2 + $0x12a] sm:$0xff]
        %v2426 = vld [vmem:[#allocation2 + $0x13a] sm:$0xff]
        %v2427 = vld [vmem:[#allocation2 + $0x142] sm:$0xff]
        %v2428 = vld [vmem:[#allocation2 + $0x152] sm:$0xff]
        %v2429 = vld [vmem:[#allocation2 + $0x15a] sm:$0xff]
        %v2430 = vld [vmem:[#allocation2 + $0x16a] sm:$0xff]
        %v2431 = vld [vmem:[#allocation2 + $0x172] sm:$0xff]
        %2464 = vrot.lane.b32.xlu0 %v2400, 64
        %v2465 = vpop.permute.xlu0 %2464
        %2466 = vrot.lane.b32.xlu0 %v2401, 64
        %v2467 = vpop.permute.xlu0 %2466
        %2468 = vrot.lane.b32.xlu0 %v2402, 64
        %v2469 = vpop.permute.xlu0 %2468
        %2470 = vrot.lane.b32.xlu0 %v2403, 64
        %v2471 = vpop.permute.xlu0 %2470
        %2472 = vrot.lane.b32.xlu0 %v2404, 64
        %v2473 = vpop.permute.xlu0 %2472
        %2474 = vrot.lane.b32.xlu0 %v2405, 64
        %v2475 = vpop.permute.xlu0 %2474
        %2476 = vrot.lane.b32.xlu0 %v2406, 64
        %v2477 = vpop.permute.xlu0 %2476
        %2478 = vrot.lane.b32.xlu0 %v2407, 64
        %v2479 = vpop.permute.xlu0 %2478
        %2480 = vrot.lane.b32.xlu0 %v2408, 64
        %v2481 = vpop.permute.xlu0 %2480
        %2482 = vrot.lane.b32.xlu0 %v2409, 64
        %v2483 = vpop.permute.xlu0 %2482
        %2484 = vrot.lane.b32.xlu0 %v2410, 64
        %v2485 = vpop.permute.xlu0 %2484
        %2486 = vrot.lane.b32.xlu0 %v2411, 64
        %v2487 = vpop.permute.xlu0 %2486
        %2488 = vrot.lane.b32.xlu0 %v2412, 64
        %v2489 = vpop.permute.xlu0 %2488
        %2490 = vrot.lane.b32.xlu0 %v2413, 64
        %v2491 = vpop.permute.xlu0 %2490
        %2492 = vrot.lane.b32.xlu0 %v2414, 64
        %v2493 = vpop.permute.xlu0 %2492
        %2494 = vrot.lane.b32.xlu0 %v2415, 64
        %v2495 = vpop.permute.xlu0 %2494
        %2496 = vrot.lane.b32.xlu0 %v2416, 64
        %v2497 = vpop.permute.xlu0 %2496
        %2498 = vrot.lane.b32.xlu0 %v2417, 64
        %v2499 = vpop.permute.xlu0 %2498
        %2500 = vrot.lane.b32.xlu0 %v2418, 64
        %v2501 = vpop.permute.xlu0 %2500
        %2502 = vrot.lane.b32.xlu0 %v2419, 64
        %v2503 = vpop.permute.xlu0 %2502
        %2504 = vrot.lane.b32.xlu0 %v2420, 64
        %v2505 = vpop.permute.xlu0 %2504
        %2506 = vrot.lane.b32.xlu0 %v2421, 64
        %v2507 = vpop.permute.xlu0 %2506
        %2508 = vrot.lane.b32.xlu0 %v2422, 64
        %v2509 = vpop.permute.xlu0 %2508
        %2510 = vrot.lane.b32.xlu0 %v2423, 64
        %v2511 = vpop.permute.xlu0 %2510
        %2512 = vrot.lane.b32.xlu0 %v2424, 64
        %v2513 = vpop.permute.xlu0 %2512
        %2514 = vrot.lane.b32.xlu0 %v2425, 64
        %v2515 = vpop.permute.xlu0 %2514
        %2516 = vrot.lane.b32.xlu0 %v2426, 64
        %v2517 = vpop.permute.xlu0 %2516
        %2518 = vrot.lane.b32.xlu0 %v2427, 64
        %v2519 = vpop.permute.xlu0 %2518
        %2520 = vrot.lane.b32.xlu0 %v2428, 64
        %v2521 = vpop.permute.xlu0 %2520
        %2522 = vrot.lane.b32.xlu0 %v2429, 64
        %v2523 = vpop.permute.xlu0 %2522
        %2524 = vrot.lane.b32.xlu0 %v2430, 64
        %v2525 = vpop.permute.xlu0 %2524
        %2526 = vrot.lane.b32.xlu0 %v2431, 64
        %v2527 = vpop.permute.xlu0 %2526
        %vm2560 = vcmask 785920
        %2561 = vst.msk [vmem:[#allocation4] sm:$0xff] %vm2560, %v2465
        %2562 = vst.msk [vmem:[#allocation4 + $0x18] sm:$0xff] %vm2560, %v2467
        %2563 = vst.msk [vmem:[#allocation4 + $0x30] sm:$0xff] %vm2560, %v2469
        %2564 = vst.msk [vmem:[#allocation4 + $0x48] sm:$0xff] %vm2560, %v2471
        %2565 = vst.msk [vmem:[#allocation4 + $0x60] sm:$0xff] %vm2560, %v2473
        %2566 = vst.msk [vmem:[#allocation4 + $0x78] sm:$0xff] %vm2560, %v2475
        %2567 = vst.msk [vmem:[#allocation4 + $0x90] sm:$0xff] %vm2560, %v2477
        %2568 = vst.msk [vmem:[#allocation4 + $0xa8] sm:$0xff] %vm2560, %v2479
        %2569 = vst.msk [vmem:[#allocation4 + $0xc0] sm:$0xff] %vm2560, %v2481
        %2570 = vst.msk [vmem:[#allocation4 + $0xd8] sm:$0xff] %vm2560, %v2483
        %2571 = vst.msk [vmem:[#allocation4 + $0xf0] sm:$0xff] %vm2560, %v2485
        %2572 = vst.msk [vmem:[#allocation4 + $0x108] sm:$0xff] %vm2560, %v2487
        %2573 = vst.msk [vmem:[#allocation4 + $0x120] sm:$0xff] %vm2560, %v2489
        %2574 = vst.msk [vmem:[#allocation4 + $0x138] sm:$0xff] %vm2560, %v2491
        %2575 = vst.msk [vmem:[#allocation4 + $0x150] sm:$0xff] %vm2560, %v2493
        %2576 = vst.msk [vmem:[#allocation4 + $0x168] sm:$0xff] %vm2560, %v2495
        %2577 = vst.msk [vmem:[#allocation4 + $0x180] sm:$0xff] %vm2560, %v2497
        %2578 = vst.msk [vmem:[#allocation4 + $0x198] sm:$0xff] %vm2560, %v2499
        %2579 = vst.msk [vmem:[#allocation4 + $0x1b0] sm:$0xff] %vm2560, %v2501
        %2580 = vst.msk [vmem:[#allocation4 + $0x1c8] sm:$0xff] %vm2560, %v2503
        %2581 = vst.msk [vmem:[#allocation4 + $0x1e0] sm:$0xff] %vm2560, %v2505
        %2582 = vst.msk [vmem:[#allocation4 + $0x1f8] sm:$0xff] %vm2560, %v2507
        %2583 = vst.msk [vmem:[#allocation4 + $0x210] sm:$0xff] %vm2560, %v2509
        %2584 = vst.msk [vmem:[#allocation4 + $0x228] sm:$0xff] %vm2560, %v2511
        %2585 = vst.msk [vmem:[#allocation4 + $0x240] sm:$0xff] %vm2560, %v2513
        %2586 = vst.msk [vmem:[#allocation4 + $0x258] sm:$0xff] %vm2560, %v2515
        %2587 = vst.msk [vmem:[#allocation4 + $0x270] sm:$0xff] %vm2560, %v2517
        %2588 = vst.msk [vmem:[#allocation4 + $0x288] sm:$0xff] %vm2560, %v2519
        %2589 = vst.msk [vmem:[#allocation4 + $0x2a0] sm:$0xff] %vm2560, %v2521
        %2590 = vst.msk [vmem:[#allocation4 + $0x2b8] sm:$0xff] %vm2560, %v2523
        %2591 = vst.msk [vmem:[#allocation4 + $0x2d0] sm:$0xff] %vm2560, %v2525
        %2592 = vst.msk [vmem:[#allocation4 + $0x2e8] sm:$0xff] %vm2560, %v2527
        %v2593 = vld [vmem:[%s2110] sm:$0xff]
        %v2594 = vld [vmem:[%s2110 + $0x8] sm:$0xff]
        %v2595 = vld [vmem:[%s2110 + $0x18] sm:$0xff]
        %v2596 = vld [vmem:[%s2110 + $0x20] sm:$0xff]
        %v2597 = vld [vmem:[%s2110 + $0x30] sm:$0xff]
        %v2598 = vld [vmem:[%s2110 + $0x38] sm:$0xff]
        %v2599 = vld [vmem:[%s2110 + $0x48] sm:$0xff]
        %v2600 = vld [vmem:[%s2110 + $0x50] sm:$0xff]
        %v2601 = vld [vmem:[%s2110 + $0x60] sm:$0xff]
        %v2602 = vld [vmem:[%s2110 + $0x68] sm:$0xff]
        %v2603 = vld [vmem:[%s2110 + $0x78] sm:$0xff]
        %v2604 = vld [vmem:[%s2110 + $0x80] sm:$0xff]
        %v2605 = vld [vmem:[%s2110 + $0x90] sm:$0xff]
        %v2606 = vld [vmem:[%s2110 + $0x98] sm:$0xff]
        %v2607 = vld [vmem:[%s2110 + $0xa8] sm:$0xff]
        %v2608 = vld [vmem:[%s2110 + $0xb0] sm:$0xff]
        %v2609 = vld [vmem:[%s2110 + $0xc0] sm:$0xff]
        %v2610 = vld [vmem:[%s2110 + $0xc8] sm:$0xff]
        %v2611 = vld [vmem:[%s2110 + $0xd8] sm:$0xff]
        %v2612 = vld [vmem:[%s2110 + $0xe0] sm:$0xff]
        %v2613 = vld [vmem:[%s2110 + $0xf0] sm:$0xff]
        %v2614 = vld [vmem:[%s2110 + $0xf8] sm:$0xff]
        %v2615 = vld [vmem:[%s2110 + $0x108] sm:$0xff]
        %v2616 = vld [vmem:[%s2110 + $0x110] sm:$0xff]
        %v2617 = vld [vmem:[%s2110 + $0x120] sm:$0xff]
        %v2618 = vld [vmem:[%s2110 + $0x128] sm:$0xff]
        %v2619 = vld [vmem:[%s2110 + $0x138] sm:$0xff]
        %v2620 = vld [vmem:[%s2110 + $0x140] sm:$0xff]
        %v2621 = vld [vmem:[%s2110 + $0x150] sm:$0xff]
        %v2622 = vld [vmem:[%s2110 + $0x158] sm:$0xff]
        %v2623 = vld [vmem:[%s2110 + $0x168] sm:$0xff]
        %v2624 = vld [vmem:[%s2110 + $0x170] sm:$0xff]
        %2657 = vrot.lane.b32.xlu0 %v2593, 96
        %v2658 = vpop.permute.xlu0 %2657
        %2659 = vrot.lane.b32.xlu0 %v2594, 96
        %v2660 = vpop.permute.xlu0 %2659
        %2661 = vrot.lane.b32.xlu0 %v2595, 96
        %v2662 = vpop.permute.xlu0 %2661
        %2663 = vrot.lane.b32.xlu0 %v2596, 96
        %v2664 = vpop.permute.xlu0 %2663
        %2665 = vrot.lane.b32.xlu0 %v2597, 96
        %v2666 = vpop.permute.xlu0 %2665
        %2667 = vrot.lane.b32.xlu0 %v2598, 96
        %v2668 = vpop.permute.xlu0 %2667
        %2669 = vrot.lane.b32.xlu0 %v2599, 96
        %v2670 = vpop.permute.xlu0 %2669
        %2671 = vrot.lane.b32.xlu0 %v2600, 96
        %v2672 = vpop.permute.xlu0 %2671
        %2673 = vrot.lane.b32.xlu0 %v2601, 96
        %v2674 = vpop.permute.xlu0 %2673
        %2675 = vrot.lane.b32.xlu0 %v2602, 96
        %v2676 = vpop.permute.xlu0 %2675
        %2677 = vrot.lane.b32.xlu0 %v2603, 96
        %v2678 = vpop.permute.xlu0 %2677
        %2679 = vrot.lane.b32.xlu0 %v2604, 96
        %v2680 = vpop.permute.xlu0 %2679
        %2681 = vrot.lane.b32.xlu0 %v2605, 96
        %v2682 = vpop.permute.xlu0 %2681
        %2683 = vrot.lane.b32.xlu0 %v2606, 96
        %v2684 = vpop.permute.xlu0 %2683
        %2685 = vrot.lane.b32.xlu0 %v2607, 96
        %v2686 = vpop.permute.xlu0 %2685
        %2687 = vrot.lane.b32.xlu0 %v2608, 96
        %v2688 = vpop.permute.xlu0 %2687
        %2689 = vrot.lane.b32.xlu0 %v2609, 96
        %v2690 = vpop.permute.xlu0 %2689
        %2691 = vrot.lane.b32.xlu0 %v2610, 96
        %v2692 = vpop.permute.xlu0 %2691
        %2693 = vrot.lane.b32.xlu0 %v2611, 96
        %v2694 = vpop.permute.xlu0 %2693
        %2695 = vrot.lane.b32.xlu0 %v2612, 96
        %v2696 = vpop.permute.xlu0 %2695
        %2697 = vrot.lane.b32.xlu0 %v2613, 96
        %v2698 = vpop.permute.xlu0 %2697
        %2699 = vrot.lane.b32.xlu0 %v2614, 96
        %v2700 = vpop.permute.xlu0 %2699
        %2701 = vrot.lane.b32.xlu0 %v2615, 96
        %v2702 = vpop.permute.xlu0 %2701
        %2703 = vrot.lane.b32.xlu0 %v2616, 96
        %v2704 = vpop.permute.xlu0 %2703
        %2705 = vrot.lane.b32.xlu0 %v2617, 96
        %v2706 = vpop.permute.xlu0 %2705
        %2707 = vrot.lane.b32.xlu0 %v2618, 96
        %v2708 = vpop.permute.xlu0 %2707
        %2709 = vrot.lane.b32.xlu0 %v2619, 96
        %v2710 = vpop.permute.xlu0 %2709
        %2711 = vrot.lane.b32.xlu0 %v2620, 96
        %v2712 = vpop.permute.xlu0 %2711
        %2713 = vrot.lane.b32.xlu0 %v2621, 96
        %v2714 = vpop.permute.xlu0 %2713
        %2715 = vrot.lane.b32.xlu0 %v2622, 96
        %v2716 = vpop.permute.xlu0 %2715
        %2717 = vrot.lane.b32.xlu0 %v2623, 96
        %v2718 = vpop.permute.xlu0 %2717
        %2719 = vrot.lane.b32.xlu0 %v2624, 96
        %v2720 = vpop.permute.xlu0 %2719
        %vm2753 = vcmask 1048320
        %2754 = vst.msk [vmem:[#allocation4] sm:$0xff] %vm2753, %v2658
        %2755 = vst.msk [vmem:[#allocation4 + $0x18] sm:$0xff] %vm2753, %v2660
        %2756 = vst.msk [vmem:[#allocation4 + $0x30] sm:$0xff] %vm2753, %v2662
        %2757 = vst.msk [vmem:[#allocation4 + $0x48] sm:$0xff] %vm2753, %v2664
        %2758 = vst.msk [vmem:[#allocation4 + $0x60] sm:$0xff] %vm2753, %v2666
        %2759 = vst.msk [vmem:[#allocation4 + $0x78] sm:$0xff] %vm2753, %v2668
        %2760 = vst.msk [vmem:[#allocation4 + $0x90] sm:$0xff] %vm2753, %v2670
        %2761 = vst.msk [vmem:[#allocation4 + $0xa8] sm:$0xff] %vm2753, %v2672
        %2762 = vst.msk [vmem:[#allocation4 + $0xc0] sm:$0xff] %vm2753, %v2674
        %2763 = vst.msk [vmem:[#allocation4 + $0xd8] sm:$0xff] %vm2753, %v2676
        %2764 = vst.msk [vmem:[#allocation4 + $0xf0] sm:$0xff] %vm2753, %v2678
        %2765 = vst.msk [vmem:[#allocation4 + $0x108] sm:$0xff] %vm2753, %v2680
        %2766 = vst.msk [vmem:[#allocation4 + $0x120] sm:$0xff] %vm2753, %v2682
        %2767 = vst.msk [vmem:[#allocation4 + $0x138] sm:$0xff] %vm2753, %v2684
        %2768 = vst.msk [vmem:[#allocation4 + $0x150] sm:$0xff] %vm2753, %v2686
        %2769 = vst.msk [vmem:[#allocation4 + $0x168] sm:$0xff] %vm2753, %v2688
        %2770 = vst.msk [vmem:[#allocation4 + $0x180] sm:$0xff] %vm2753, %v2690
        %2771 = vst.msk [vmem:[#allocation4 + $0x198] sm:$0xff] %vm2753, %v2692
        %2772 = vst.msk [vmem:[#allocation4 + $0x1b0] sm:$0xff] %vm2753, %v2694
        %2773 = vst.msk [vmem:[#allocation4 + $0x1c8] sm:$0xff] %vm2753, %v2696
        %2774 = vst.msk [vmem:[#allocation4 + $0x1e0] sm:$0xff] %vm2753, %v2698
        %2775 = vst.msk [vmem:[#allocation4 + $0x1f8] sm:$0xff] %vm2753, %v2700
        %2776 = vst.msk [vmem:[#allocation4 + $0x210] sm:$0xff] %vm2753, %v2702
        %2777 = vst.msk [vmem:[#allocation4 + $0x228] sm:$0xff] %vm2753, %v2704
        %2778 = vst.msk [vmem:[#allocation4 + $0x240] sm:$0xff] %vm2753, %v2706
        %2779 = vst.msk [vmem:[#allocation4 + $0x258] sm:$0xff] %vm2753, %v2708
        %2780 = vst.msk [vmem:[#allocation4 + $0x270] sm:$0xff] %vm2753, %v2710
        %2781 = vst.msk [vmem:[#allocation4 + $0x288] sm:$0xff] %vm2753, %v2712
        %2782 = vst.msk [vmem:[#allocation4 + $0x2a0] sm:$0xff] %vm2753, %v2714
        %2783 = vst.msk [vmem:[#allocation4 + $0x2b8] sm:$0xff] %vm2753, %v2716
        %2784 = vst.msk [vmem:[#allocation4 + $0x2d0] sm:$0xff] %vm2753, %v2718
        %2785 = vst.msk [vmem:[#allocation4 + $0x2e8] sm:$0xff] %vm2753, %v2720
        %v2786 = vld [vmem:[%s2110 + $0x1] sm:$0xff]
        %v2787 = vld [vmem:[%s2110 + $0x9] sm:$0xff]
        %v2788 = vld [vmem:[%s2110 + $0x19] sm:$0xff]
        %v2789 = vld [vmem:[%s2110 + $0x21] sm:$0xff]
        %v2790 = vld [vmem:[%s2110 + $0x31] sm:$0xff]
        %v2791 = vld [vmem:[%s2110 + $0x39] sm:$0xff]
        %v2792 = vld [vmem:[%s2110 + $0x49] sm:$0xff]
        %v2793 = vld [vmem:[%s2110 + $0x51] sm:$0xff]
        %v2794 = vld [vmem:[%s2110 + $0x61] sm:$0xff]
        %v2795 = vld [vmem:[%s2110 + $0x69] sm:$0xff]
        %v2796 = vld [vmem:[%s2110 + $0x79] sm:$0xff]
        %v2797 = vld [vmem:[%s2110 + $0x81] sm:$0xff]
        %v2798 = vld [vmem:[%s2110 + $0x91] sm:$0xff]
        %v2799 = vld [vmem:[%s2110 + $0x99] sm:$0xff]
        %v2800 = vld [vmem:[%s2110 + $0xa9] sm:$0xff]
        %v2801 = vld [vmem:[%s2110 + $0xb1] sm:$0xff]
        %v2802 = vld [vmem:[%s2110 + $0xc1] sm:$0xff]
        %v2803 = vld [vmem:[%s2110 + $0xc9] sm:$0xff]
        %v2804 = vld [vmem:[%s2110 + $0xd9] sm:$0xff]
        %v2805 = vld [vmem:[%s2110 + $0xe1] sm:$0xff]
        %v2806 = vld [vmem:[%s2110 + $0xf1] sm:$0xff]
        %v2807 = vld [vmem:[%s2110 + $0xf9] sm:$0xff]
        %v2808 = vld [vmem:[%s2110 + $0x109] sm:$0xff]
        %v2809 = vld [vmem:[%s2110 + $0x111] sm:$0xff]
        %v2810 = vld [vmem:[%s2110 + $0x121] sm:$0xff]
        %v2811 = vld [vmem:[%s2110 + $0x129] sm:$0xff]
        %v2812 = vld [vmem:[%s2110 + $0x139] sm:$0xff]
        %v2813 = vld [vmem:[%s2110 + $0x141] sm:$0xff]
        %v2814 = vld [vmem:[%s2110 + $0x151] sm:$0xff]
        %v2815 = vld [vmem:[%s2110 + $0x159] sm:$0xff]
        %v2816 = vld [vmem:[%s2110 + $0x169] sm:$0xff]
        %v2817 = vld [vmem:[%s2110 + $0x171] sm:$0xff]
        %2818 = vst.msk [vmem:[#allocation4 + $0x8] sm:$0xff] %vm386, %v2786
        %2819 = vst.msk [vmem:[#allocation4 + $0x20] sm:$0xff] %vm386, %v2787
        %2820 = vst.msk [vmem:[#allocation4 + $0x38] sm:$0xff] %vm386, %v2788
        %2821 = vst.msk [vmem:[#allocation4 + $0x50] sm:$0xff] %vm386, %v2789
        %2822 = vst.msk [vmem:[#allocation4 + $0x68] sm:$0xff] %vm386, %v2790
        %2823 = vst.msk [vmem:[#allocation4 + $0x80] sm:$0xff] %vm386, %v2791
        %2824 = vst.msk [vmem:[#allocation4 + $0x98] sm:$0xff] %vm386, %v2792
        %2825 = vst.msk [vmem:[#allocation4 + $0xb0] sm:$0xff] %vm386, %v2793
        %2826 = vst.msk [vmem:[#allocation4 + $0xc8] sm:$0xff] %vm386, %v2794
        %2827 = vst.msk [vmem:[#allocation4 + $0xe0] sm:$0xff] %vm386, %v2795
        %2828 = vst.msk [vmem:[#allocation4 + $0xf8] sm:$0xff] %vm386, %v2796
        %2829 = vst.msk [vmem:[#allocation4 + $0x110] sm:$0xff] %vm386, %v2797
        %2830 = vst.msk [vmem:[#allocation4 + $0x128] sm:$0xff] %vm386, %v2798
        %2831 = vst.msk [vmem:[#allocation4 + $0x140] sm:$0xff] %vm386, %v2799
        %2832 = vst.msk [vmem:[#allocation4 + $0x158] sm:$0xff] %vm386, %v2800
        %2833 = vst.msk [vmem:[#allocation4 + $0x170] sm:$0xff] %vm386, %v2801
        %2834 = vst.msk [vmem:[#allocation4 + $0x188] sm:$0xff] %vm386, %v2802
        %2835 = vst.msk [vmem:[#allocation4 + $0x1a0] sm:$0xff] %vm386, %v2803
        %2836 = vst.msk [vmem:[#allocation4 + $0x1b8] sm:$0xff] %vm386, %v2804
        %2837 = vst.msk [vmem:[#allocation4 + $0x1d0] sm:$0xff] %vm386, %v2805
        %2838 = vst.msk [vmem:[#allocation4 + $0x1e8] sm:$0xff] %vm386, %v2806
        %2839 = vst.msk [vmem:[#allocation4 + $0x200] sm:$0xff] %vm386, %v2807
        %2840 = vst.msk [vmem:[#allocation4 + $0x218] sm:$0xff] %vm386, %v2808
        %2841 = vst.msk [vmem:[#allocation4 + $0x230] sm:$0xff] %vm386, %v2809
        %2842 = vst.msk [vmem:[#allocation4 + $0x248] sm:$0xff] %vm386, %v2810
        %2843 = vst.msk [vmem:[#allocation4 + $0x260] sm:$0xff] %vm386, %v2811
        %2844 = vst.msk [vmem:[#allocation4 + $0x278] sm:$0xff] %vm386, %v2812
        %2845 = vst.msk [vmem:[#allocation4 + $0x290] sm:$0xff] %vm386, %v2813
        %2846 = vst.msk [vmem:[#allocation4 + $0x2a8] sm:$0xff] %vm386, %v2814
        %2847 = vst.msk [vmem:[#allocation4 + $0x2c0] sm:$0xff] %vm386, %v2815
        %2848 = vst.msk [vmem:[#allocation4 + $0x2d8] sm:$0xff] %vm386, %v2816
        %2849 = vst.msk [vmem:[#allocation4 + $0x2f0] sm:$0xff] %vm386, %v2817
        %v2850 = vld [vmem:[%s2110 + $0x2] sm:$0xff]
        %v2851 = vld [vmem:[%s2110 + $0xa] sm:$0xff]
        %v2852 = vld [vmem:[%s2110 + $0x1a] sm:$0xff]
        %v2853 = vld [vmem:[%s2110 + $0x22] sm:$0xff]
        %v2854 = vld [vmem:[%s2110 + $0x32] sm:$0xff]
        %v2855 = vld [vmem:[%s2110 + $0x3a] sm:$0xff]
        %v2856 = vld [vmem:[%s2110 + $0x4a] sm:$0xff]
        %v2857 = vld [vmem:[%s2110 + $0x52] sm:$0xff]
        %v2858 = vld [vmem:[%s2110 + $0x62] sm:$0xff]
        %v2859 = vld [vmem:[%s2110 + $0x6a] sm:$0xff]
        %v2860 = vld [vmem:[%s2110 + $0x7a] sm:$0xff]
        %v2861 = vld [vmem:[%s2110 + $0x82] sm:$0xff]
        %v2862 = vld [vmem:[%s2110 + $0x92] sm:$0xff]
        %v2863 = vld [vmem:[%s2110 + $0x9a] sm:$0xff]
        %v2864 = vld [vmem:[%s2110 + $0xaa] sm:$0xff]
        %v2865 = vld [vmem:[%s2110 + $0xb2] sm:$0xff]
        %v2866 = vld [vmem:[%s2110 + $0xc2] sm:$0xff]
        %v2867 = vld [vmem:[%s2110 + $0xca] sm:$0xff]
        %v2868 = vld [vmem:[%s2110 + $0xda] sm:$0xff]
        %v2869 = vld [vmem:[%s2110 + $0xe2] sm:$0xff]
        %v2870 = vld [vmem:[%s2110 + $0xf2] sm:$0xff]
        %v2871 = vld [vmem:[%s2110 + $0xfa] sm:$0xff]
        %v2872 = vld [vmem:[%s2110 + $0x10a] sm:$0xff]
        %v2873 = vld [vmem:[%s2110 + $0x112] sm:$0xff]
        %v2874 = vld [vmem:[%s2110 + $0x122] sm:$0xff]
        %v2875 = vld [vmem:[%s2110 + $0x12a] sm:$0xff]
        %v2876 = vld [vmem:[%s2110 + $0x13a] sm:$0xff]
        %v2877 = vld [vmem:[%s2110 + $0x142] sm:$0xff]
        %v2878 = vld [vmem:[%s2110 + $0x152] sm:$0xff]
        %v2879 = vld [vmem:[%s2110 + $0x15a] sm:$0xff]
        %v2880 = vld [vmem:[%s2110 + $0x16a] sm:$0xff]
        %v2881 = vld [vmem:[%s2110 + $0x172] sm:$0xff]
        %2914 = vrot.lane.b32.xlu0 %v2850, 32
        %v2915 = vpop.permute.xlu0 %2914
        %2916 = vrot.lane.b32.xlu0 %v2851, 32
        %v2917 = vpop.permute.xlu0 %2916
        %2918 = vrot.lane.b32.xlu0 %v2852, 32
        %v2919 = vpop.permute.xlu0 %2918
        %2920 = vrot.lane.b32.xlu0 %v2853, 32
        %v2921 = vpop.permute.xlu0 %2920
        %2922 = vrot.lane.b32.xlu0 %v2854, 32
        %v2923 = vpop.permute.xlu0 %2922
        %2924 = vrot.lane.b32.xlu0 %v2855, 32
        %v2925 = vpop.permute.xlu0 %2924
        %2926 = vrot.lane.b32.xlu0 %v2856, 32
        %v2927 = vpop.permute.xlu0 %2926
        %2928 = vrot.lane.b32.xlu0 %v2857, 32
        %v2929 = vpop.permute.xlu0 %2928
        %2930 = vrot.lane.b32.xlu0 %v2858, 32
        %v2931 = vpop.permute.xlu0 %2930
        %2932 = vrot.lane.b32.xlu0 %v2859, 32
        %v2933 = vpop.permute.xlu0 %2932
        %2934 = vrot.lane.b32.xlu0 %v2860, 32
        %v2935 = vpop.permute.xlu0 %2934
        %2936 = vrot.lane.b32.xlu0 %v2861, 32
        %v2937 = vpop.permute.xlu0 %2936
        %2938 = vrot.lane.b32.xlu0 %v2862, 32
        %v2939 = vpop.permute.xlu0 %2938
        %2940 = vrot.lane.b32.xlu0 %v2863, 32
        %v2941 = vpop.permute.xlu0 %2940
        %2942 = vrot.lane.b32.xlu0 %v2864, 32
        %v2943 = vpop.permute.xlu0 %2942
        %2944 = vrot.lane.b32.xlu0 %v2865, 32
        %v2945 = vpop.permute.xlu0 %2944
        %2946 = vrot.lane.b32.xlu0 %v2866, 32
        %v2947 = vpop.permute.xlu0 %2946
        %2948 = vrot.lane.b32.xlu0 %v2867, 32
        %v2949 = vpop.permute.xlu0 %2948
        %2950 = vrot.lane.b32.xlu0 %v2868, 32
        %v2951 = vpop.permute.xlu0 %2950
        %2952 = vrot.lane.b32.xlu0 %v2869, 32
        %v2953 = vpop.permute.xlu0 %2952
        %2954 = vrot.lane.b32.xlu0 %v2870, 32
        %v2955 = vpop.permute.xlu0 %2954
        %2956 = vrot.lane.b32.xlu0 %v2871, 32
        %v2957 = vpop.permute.xlu0 %2956
        %2958 = vrot.lane.b32.xlu0 %v2872, 32
        %v2959 = vpop.permute.xlu0 %2958
        %2960 = vrot.lane.b32.xlu0 %v2873, 32
        %v2961 = vpop.permute.xlu0 %2960
        %2962 = vrot.lane.b32.xlu0 %v2874, 32
        %v2963 = vpop.permute.xlu0 %2962
        %2964 = vrot.lane.b32.xlu0 %v2875, 32
        %v2965 = vpop.permute.xlu0 %2964
        %2966 = vrot.lane.b32.xlu0 %v2876, 32
        %v2967 = vpop.permute.xlu0 %2966
        %2968 = vrot.lane.b32.xlu0 %v2877, 32
        %v2969 = vpop.permute.xlu0 %2968
        %2970 = vrot.lane.b32.xlu0 %v2878, 32
        %v2971 = vpop.permute.xlu0 %2970
        %2972 = vrot.lane.b32.xlu0 %v2879, 32
        %v2973 = vpop.permute.xlu0 %2972
        %2974 = vrot.lane.b32.xlu0 %v2880, 32
        %v2975 = vpop.permute.xlu0 %2974
        %2976 = vrot.lane.b32.xlu0 %v2881, 32
        %v2977 = vpop.permute.xlu0 %2976
        %3010 = vst.msk [vmem:[#allocation4 + $0x8] sm:$0xff] %vm2367, %v2915
        %3011 = vst.msk [vmem:[#allocation4 + $0x20] sm:$0xff] %vm2367, %v2917
        %3012 = vst.msk [vmem:[#allocation4 + $0x38] sm:$0xff] %vm2367, %v2919
        %3013 = vst.msk [vmem:[#allocation4 + $0x50] sm:$0xff] %vm2367, %v2921
        %3014 = vst.msk [vmem:[#allocation4 + $0x68] sm:$0xff] %vm2367, %v2923
        %3015 = vst.msk [vmem:[#allocation4 + $0x80] sm:$0xff] %vm2367, %v2925
        %3016 = vst.msk [vmem:[#allocation4 + $0x98] sm:$0xff] %vm2367, %v2927
        %3017 = vst.msk [vmem:[#allocation4 + $0xb0] sm:$0xff] %vm2367, %v2929
        %3018 = vst.msk [vmem:[#allocation4 + $0xc8] sm:$0xff] %vm2367, %v2931
        %3019 = vst.msk [vmem:[#allocation4 + $0xe0] sm:$0xff] %vm2367, %v2933
        %3020 = vst.msk [vmem:[#allocation4 + $0xf8] sm:$0xff] %vm2367, %v2935
        %3021 = vst.msk [vmem:[#allocation4 + $0x110] sm:$0xff] %vm2367, %v2937
        %3022 = vst.msk [vmem:[#allocation4 + $0x128] sm:$0xff] %vm2367, %v2939
        %3023 = vst.msk [vmem:[#allocation4 + $0x140] sm:$0xff] %vm2367, %v2941
        %3024 = vst.msk [vmem:[#allocation4 + $0x158] sm:$0xff] %vm2367, %v2943
        %3025 = vst.msk [vmem:[#allocation4 + $0x170] sm:$0xff] %vm2367, %v2945
        %3026 = vst.msk [vmem:[#allocation4 + $0x188] sm:$0xff] %vm2367, %v2947
        %3027 = vst.msk [vmem:[#allocation4 + $0x1a0] sm:$0xff] %vm2367, %v2949
        %3028 = vst.msk [vmem:[#allocation4 + $0x1b8] sm:$0xff] %vm2367, %v2951
        %3029 = vst.msk [vmem:[#allocation4 + $0x1d0] sm:$0xff] %vm2367, %v2953
        %3030 = vst.msk [vmem:[#allocation4 + $0x1e8] sm:$0xff] %vm2367, %v2955
        %3031 = vst.msk [vmem:[#allocation4 + $0x200] sm:$0xff] %vm2367, %v2957
        %3032 = vst.msk [vmem:[#allocation4 + $0x218] sm:$0xff] %vm2367, %v2959
        %3033 = vst.msk [vmem:[#allocation4 + $0x230] sm:$0xff] %vm2367, %v2961
        %3034 = vst.msk [vmem:[#allocation4 + $0x248] sm:$0xff] %vm2367, %v2963
        %3035 = vst.msk [vmem:[#allocation4 + $0x260] sm:$0xff] %vm2367, %v2965
        %3036 = vst.msk [vmem:[#allocation4 + $0x278] sm:$0xff] %vm2367, %v2967
        %3037 = vst.msk [vmem:[#allocation4 + $0x290] sm:$0xff] %vm2367, %v2969
        %3038 = vst.msk [vmem:[#allocation4 + $0x2a8] sm:$0xff] %vm2367, %v2971
        %3039 = vst.msk [vmem:[#allocation4 + $0x2c0] sm:$0xff] %vm2367, %v2973
        %3040 = vst.msk [vmem:[#allocation4 + $0x2d8] sm:$0xff] %vm2367, %v2975
        %3041 = vst.msk [vmem:[#allocation4 + $0x2f0] sm:$0xff] %vm2367, %v2977
        %s3042 = scalar_lea.vmem [#allocation2], 48
        %v3043 = vld [vmem:[%s3042] sm:$0xff]
        %v3044 = vld [vmem:[%s3042 + $0x8] sm:$0xff]
        %v3045 = vld [vmem:[%s3042 + $0x18] sm:$0xff]
        %v3046 = vld [vmem:[%s3042 + $0x20] sm:$0xff]
        %v3047 = vld [vmem:[%s3042 + $0x30] sm:$0xff]
        %v3048 = vld [vmem:[%s3042 + $0x38] sm:$0xff]
        %v3049 = vld [vmem:[%s3042 + $0x48] sm:$0xff]
        %v3050 = vld [vmem:[%s3042 + $0x50] sm:$0xff]
        %v3051 = vld [vmem:[%s3042 + $0x60] sm:$0xff]
        %v3052 = vld [vmem:[%s3042 + $0x68] sm:$0xff]
        %v3053 = vld [vmem:[%s3042 + $0x78] sm:$0xff]
        %v3054 = vld [vmem:[%s3042 + $0x80] sm:$0xff]
        %v3055 = vld [vmem:[%s3042 + $0x90] sm:$0xff]
        %v3056 = vld [vmem:[%s3042 + $0x98] sm:$0xff]
        %v3057 = vld [vmem:[%s3042 + $0xa8] sm:$0xff]
        %v3058 = vld [vmem:[%s3042 + $0xb0] sm:$0xff]
        %v3059 = vld [vmem:[%s3042 + $0xc0] sm:$0xff]
        %v3060 = vld [vmem:[%s3042 + $0xc8] sm:$0xff]
        %v3061 = vld [vmem:[%s3042 + $0xd8] sm:$0xff]
        %v3062 = vld [vmem:[%s3042 + $0xe0] sm:$0xff]
        %v3063 = vld [vmem:[%s3042 + $0xf0] sm:$0xff]
        %v3064 = vld [vmem:[%s3042 + $0xf8] sm:$0xff]
        %v3065 = vld [vmem:[%s3042 + $0x108] sm:$0xff]
        %v3066 = vld [vmem:[%s3042 + $0x110] sm:$0xff]
        %v3067 = vld [vmem:[%s3042 + $0x120] sm:$0xff]
        %v3068 = vld [vmem:[%s3042 + $0x128] sm:$0xff]
        %v3069 = vld [vmem:[%s3042 + $0x138] sm:$0xff]
        %v3070 = vld [vmem:[%s3042 + $0x140] sm:$0xff]
        %v3071 = vld [vmem:[%s3042 + $0x150] sm:$0xff]
        %v3072 = vld [vmem:[%s3042 + $0x158] sm:$0xff]
        %v3073 = vld [vmem:[%s3042 + $0x168] sm:$0xff]
        %v3074 = vld [vmem:[%s3042 + $0x170] sm:$0xff]
        %3107 = vrot.lane.b32.xlu0 %v3043, 64
        %v3108 = vpop.permute.xlu0 %3107
        %3109 = vrot.lane.b32.xlu0 %v3044, 64
        %v3110 = vpop.permute.xlu0 %3109
        %3111 = vrot.lane.b32.xlu0 %v3045, 64
        %v3112 = vpop.permute.xlu0 %3111
        %3113 = vrot.lane.b32.xlu0 %v3046, 64
        %v3114 = vpop.permute.xlu0 %3113
        %3115 = vrot.lane.b32.xlu0 %v3047, 64
        %v3116 = vpop.permute.xlu0 %3115
        %3117 = vrot.lane.b32.xlu0 %v3048, 64
        %v3118 = vpop.permute.xlu0 %3117
        %3119 = vrot.lane.b32.xlu0 %v3049, 64
        %v3120 = vpop.permute.xlu0 %3119
        %3121 = vrot.lane.b32.xlu0 %v3050, 64
        %v3122 = vpop.permute.xlu0 %3121
        %3123 = vrot.lane.b32.xlu0 %v3051, 64
        %v3124 = vpop.permute.xlu0 %3123
        %3125 = vrot.lane.b32.xlu0 %v3052, 64
        %v3126 = vpop.permute.xlu0 %3125
        %3127 = vrot.lane.b32.xlu0 %v3053, 64
        %v3128 = vpop.permute.xlu0 %3127
        %3129 = vrot.lane.b32.xlu0 %v3054, 64
        %v3130 = vpop.permute.xlu0 %3129
        %3131 = vrot.lane.b32.xlu0 %v3055, 64
        %v3132 = vpop.permute.xlu0 %3131
        %3133 = vrot.lane.b32.xlu0 %v3056, 64
        %v3134 = vpop.permute.xlu0 %3133
        %3135 = vrot.lane.b32.xlu0 %v3057, 64
        %v3136 = vpop.permute.xlu0 %3135
        %3137 = vrot.lane.b32.xlu0 %v3058, 64
        %v3138 = vpop.permute.xlu0 %3137
        %3139 = vrot.lane.b32.xlu0 %v3059, 64
        %v3140 = vpop.permute.xlu0 %3139
        %3141 = vrot.lane.b32.xlu0 %v3060, 64
        %v3142 = vpop.permute.xlu0 %3141
        %3143 = vrot.lane.b32.xlu0 %v3061, 64
        %v3144 = vpop.permute.xlu0 %3143
        %3145 = vrot.lane.b32.xlu0 %v3062, 64
        %v3146 = vpop.permute.xlu0 %3145
        %3147 = vrot.lane.b32.xlu0 %v3063, 64
        %v3148 = vpop.permute.xlu0 %3147
        %3149 = vrot.lane.b32.xlu0 %v3064, 64
        %v3150 = vpop.permute.xlu0 %3149
        %3151 = vrot.lane.b32.xlu0 %v3065, 64
        %v3152 = vpop.permute.xlu0 %3151
        %3153 = vrot.lane.b32.xlu0 %v3066, 64
        %v3154 = vpop.permute.xlu0 %3153
        %3155 = vrot.lane.b32.xlu0 %v3067, 64
        %v3156 = vpop.permute.xlu0 %3155
        %3157 = vrot.lane.b32.xlu0 %v3068, 64
        %v3158 = vpop.permute.xlu0 %3157
        %3159 = vrot.lane.b32.xlu0 %v3069, 64
        %v3160 = vpop.permute.xlu0 %3159
        %3161 = vrot.lane.b32.xlu0 %v3070, 64
        %v3162 = vpop.permute.xlu0 %3161
        %3163 = vrot.lane.b32.xlu0 %v3071, 64
        %v3164 = vpop.permute.xlu0 %3163
        %3165 = vrot.lane.b32.xlu0 %v3072, 64
        %v3166 = vpop.permute.xlu0 %3165
        %3167 = vrot.lane.b32.xlu0 %v3073, 64
        %v3168 = vpop.permute.xlu0 %3167
        %3169 = vrot.lane.b32.xlu0 %v3074, 64
        %v3170 = vpop.permute.xlu0 %3169
        %3203 = vst.msk [vmem:[#allocation4 + $0x8] sm:$0xff] %vm2560, %v3108
        %3204 = vst.msk [vmem:[#allocation4 + $0x20] sm:$0xff] %vm2560, %v3110
        %3205 = vst.msk [vmem:[#allocation4 + $0x38] sm:$0xff] %vm2560, %v3112
        %3206 = vst.msk [vmem:[#allocation4 + $0x50] sm:$0xff] %vm2560, %v3114
        %3207 = vst.msk [vmem:[#allocation4 + $0x68] sm:$0xff] %vm2560, %v3116
        %3208 = vst.msk [vmem:[#allocation4 + $0x80] sm:$0xff] %vm2560, %v3118
        %3209 = vst.msk [vmem:[#allocation4 + $0x98] sm:$0xff] %vm2560, %v3120
        %3210 = vst.msk [vmem:[#allocation4 + $0xb0] sm:$0xff] %vm2560, %v3122
        %3211 = vst.msk [vmem:[#allocation4 + $0xc8] sm:$0xff] %vm2560, %v3124
        %3212 = vst.msk [vmem:[#allocation4 + $0xe0] sm:$0xff] %vm2560, %v3126
        %3213 = vst.msk [vmem:[#allocation4 + $0xf8] sm:$0xff] %vm2560, %v3128
        %3214 = vst.msk [vmem:[#allocation4 + $0x110] sm:$0xff] %vm2560, %v3130
        %3215 = vst.msk [vmem:[#allocation4 + $0x128] sm:$0xff] %vm2560, %v3132
        %3216 = vst.msk [vmem:[#allocation4 + $0x140] sm:$0xff] %vm2560, %v3134
        %3217 = vst.msk [vmem:[#allocation4 + $0x158] sm:$0xff] %vm2560, %v3136
        %3218 = vst.msk [vmem:[#allocation4 + $0x170] sm:$0xff] %vm2560, %v3138
        %3219 = vst.msk [vmem:[#allocation4 + $0x188] sm:$0xff] %vm2560, %v3140
        %3220 = vst.msk [vmem:[#allocation4 + $0x1a0] sm:$0xff] %vm2560, %v3142
        %3221 = vst.msk [vmem:[#allocation4 + $0x1b8] sm:$0xff] %vm2560, %v3144
        %3222 = vst.msk [vmem:[#allocation4 + $0x1d0] sm:$0xff] %vm2560, %v3146
        %3223 = vst.msk [vmem:[#allocation4 + $0x1e8] sm:$0xff] %vm2560, %v3148
        %3224 = vst.msk [vmem:[#allocation4 + $0x200] sm:$0xff] %vm2560, %v3150
        %3225 = vst.msk [vmem:[#allocation4 + $0x218] sm:$0xff] %vm2560, %v3152
        %3226 = vst.msk [vmem:[#allocation4 + $0x230] sm:$0xff] %vm2560, %v3154
        %3227 = vst.msk [vmem:[#allocation4 + $0x248] sm:$0xff] %vm2560, %v3156
        %3228 = vst.msk [vmem:[#allocation4 + $0x260] sm:$0xff] %vm2560, %v3158
        %3229 = vst.msk [vmem:[#allocation4 + $0x278] sm:$0xff] %vm2560, %v3160
        %3230 = vst.msk [vmem:[#allocation4 + $0x290] sm:$0xff] %vm2560, %v3162
        %3231 = vst.msk [vmem:[#allocation4 + $0x2a8] sm:$0xff] %vm2560, %v3164
        %3232 = vst.msk [vmem:[#allocation4 + $0x2c0] sm:$0xff] %vm2560, %v3166
        %3233 = vst.msk [vmem:[#allocation4 + $0x2d8] sm:$0xff] %vm2560, %v3168
        %3234 = vst.msk [vmem:[#allocation4 + $0x2f0] sm:$0xff] %vm2560, %v3170
        %v3235 = vld [vmem:[%s3042 + $0x1] sm:$0xff]
        %v3236 = vld [vmem:[%s3042 + $0x9] sm:$0xff]
        %v3237 = vld [vmem:[%s3042 + $0x19] sm:$0xff]
        %v3238 = vld [vmem:[%s3042 + $0x21] sm:$0xff]
        %v3239 = vld [vmem:[%s3042 + $0x31] sm:$0xff]
        %v3240 = vld [vmem:[%s3042 + $0x39] sm:$0xff]
        %v3241 = vld [vmem:[%s3042 + $0x49] sm:$0xff]
        %v3242 = vld [vmem:[%s3042 + $0x51] sm:$0xff]
        %v3243 = vld [vmem:[%s3042 + $0x61] sm:$0xff]
        %v3244 = vld [vmem:[%s3042 + $0x69] sm:$0xff]
        %v3245 = vld [vmem:[%s3042 + $0x79] sm:$0xff]
        %v3246 = vld [vmem:[%s3042 + $0x81] sm:$0xff]
        %v3247 = vld [vmem:[%s3042 + $0x91] sm:$0xff]
        %v3248 = vld [vmem:[%s3042 + $0x99] sm:$0xff]
        %v3249 = vld [vmem:[%s3042 + $0xa9] sm:$0xff]
        %v3250 = vld [vmem:[%s3042 + $0xb1] sm:$0xff]
        %v3251 = vld [vmem:[%s3042 + $0xc1] sm:$0xff]
        %v3252 = vld [vmem:[%s3042 + $0xc9] sm:$0xff]
        %v3253 = vld [vmem:[%s3042 + $0xd9] sm:$0xff]
        %v3254 = vld [vmem:[%s3042 + $0xe1] sm:$0xff]
        %v3255 = vld [vmem:[%s3042 + $0xf1] sm:$0xff]
        %v3256 = vld [vmem:[%s3042 + $0xf9] sm:$0xff]
        %v3257 = vld [vmem:[%s3042 + $0x109] sm:$0xff]
        %v3258 = vld [vmem:[%s3042 + $0x111] sm:$0xff]
        %v3259 = vld [vmem:[%s3042 + $0x121] sm:$0xff]
        %v3260 = vld [vmem:[%s3042 + $0x129] sm:$0xff]
        %v3261 = vld [vmem:[%s3042 + $0x139] sm:$0xff]
        %v3262 = vld [vmem:[%s3042 + $0x141] sm:$0xff]
        %v3263 = vld [vmem:[%s3042 + $0x151] sm:$0xff]
        %v3264 = vld [vmem:[%s3042 + $0x159] sm:$0xff]
        %v3265 = vld [vmem:[%s3042 + $0x169] sm:$0xff]
        %v3266 = vld [vmem:[%s3042 + $0x171] sm:$0xff]
        %3299 = vrot.lane.b32.xlu0 %v3235, 96
        %v3300 = vpop.permute.xlu0 %3299
        %3301 = vrot.lane.b32.xlu0 %v3236, 96
        %v3302 = vpop.permute.xlu0 %3301
        %3303 = vrot.lane.b32.xlu0 %v3237, 96
        %v3304 = vpop.permute.xlu0 %3303
        %3305 = vrot.lane.b32.xlu0 %v3238, 96
        %v3306 = vpop.permute.xlu0 %3305
        %3307 = vrot.lane.b32.xlu0 %v3239, 96
        %v3308 = vpop.permute.xlu0 %3307
        %3309 = vrot.lane.b32.xlu0 %v3240, 96
        %v3310 = vpop.permute.xlu0 %3309
        %3311 = vrot.lane.b32.xlu0 %v3241, 96
        %v3312 = vpop.permute.xlu0 %3311
        %3313 = vrot.lane.b32.xlu0 %v3242, 96
        %v3314 = vpop.permute.xlu0 %3313
        %3315 = vrot.lane.b32.xlu0 %v3243, 96
        %v3316 = vpop.permute.xlu0 %3315
        %3317 = vrot.lane.b32.xlu0 %v3244, 96
        %v3318 = vpop.permute.xlu0 %3317
        %3319 = vrot.lane.b32.xlu0 %v3245, 96
        %v3320 = vpop.permute.xlu0 %3319
        %3321 = vrot.lane.b32.xlu0 %v3246, 96
        %v3322 = vpop.permute.xlu0 %3321
        %3323 = vrot.lane.b32.xlu0 %v3247, 96
        %v3324 = vpop.permute.xlu0 %3323
        %3325 = vrot.lane.b32.xlu0 %v3248, 96
        %v3326 = vpop.permute.xlu0 %3325
        %3327 = vrot.lane.b32.xlu0 %v3249, 96
        %v3328 = vpop.permute.xlu0 %3327
        %3329 = vrot.lane.b32.xlu0 %v3250, 96
        %v3330 = vpop.permute.xlu0 %3329
        %3331 = vrot.lane.b32.xlu0 %v3251, 96
        %v3332 = vpop.permute.xlu0 %3331
        %3333 = vrot.lane.b32.xlu0 %v3252, 96
        %v3334 = vpop.permute.xlu0 %3333
        %3335 = vrot.lane.b32.xlu0 %v3253, 96
        %v3336 = vpop.permute.xlu0 %3335
        %3337 = vrot.lane.b32.xlu0 %v3254, 96
        %v3338 = vpop.permute.xlu0 %3337
        %3339 = vrot.lane.b32.xlu0 %v3255, 96
        %v3340 = vpop.permute.xlu0 %3339
        %3341 = vrot.lane.b32.xlu0 %v3256, 96
        %v3342 = vpop.permute.xlu0 %3341
        %3343 = vrot.lane.b32.xlu0 %v3257, 96
        %v3344 = vpop.permute.xlu0 %3343
        %3345 = vrot.lane.b32.xlu0 %v3258, 96
        %v3346 = vpop.permute.xlu0 %3345
        %3347 = vrot.lane.b32.xlu0 %v3259, 96
        %v3348 = vpop.permute.xlu0 %3347
        %3349 = vrot.lane.b32.xlu0 %v3260, 96
        %v3350 = vpop.permute.xlu0 %3349
        %3351 = vrot.lane.b32.xlu0 %v3261, 96
        %v3352 = vpop.permute.xlu0 %3351
        %3353 = vrot.lane.b32.xlu0 %v3262, 96
        %v3354 = vpop.permute.xlu0 %3353
        %3355 = vrot.lane.b32.xlu0 %v3263, 96
        %v3356 = vpop.permute.xlu0 %3355
        %3357 = vrot.lane.b32.xlu0 %v3264, 96
        %v3358 = vpop.permute.xlu0 %3357
        %3359 = vrot.lane.b32.xlu0 %v3265, 96
        %v3360 = vpop.permute.xlu0 %3359
        %3361 = vrot.lane.b32.xlu0 %v3266, 96
        %v3362 = vpop.permute.xlu0 %3361
        %3395 = vst.msk [vmem:[#allocation4 + $0x8] sm:$0xff] %vm2753, %v3300
        %3396 = vst.msk [vmem:[#allocation4 + $0x20] sm:$0xff] %vm2753, %v3302
        %3397 = vst.msk [vmem:[#allocation4 + $0x38] sm:$0xff] %vm2753, %v3304
        %3398 = vst.msk [vmem:[#allocation4 + $0x50] sm:$0xff] %vm2753, %v3306
        %3399 = vst.msk [vmem:[#allocation4 + $0x68] sm:$0xff] %vm2753, %v3308
        %3400 = vst.msk [vmem:[#allocation4 + $0x80] sm:$0xff] %vm2753, %v3310
        %3401 = vst.msk [vmem:[#allocation4 + $0x98] sm:$0xff] %vm2753, %v3312
        %3402 = vst.msk [vmem:[#allocation4 + $0xb0] sm:$0xff] %vm2753, %v3314
        %3403 = vst.msk [vmem:[#allocation4 + $0xc8] sm:$0xff] %vm2753, %v3316
        %3404 = vst.msk [vmem:[#allocation4 + $0xe0] sm:$0xff] %vm2753, %v3318
        %3405 = vst.msk [vmem:[#allocation4 + $0xf8] sm:$0xff] %vm2753, %v3320
        %3406 = vst.msk [vmem:[#allocation4 + $0x110] sm:$0xff] %vm2753, %v3322
        %3407 = vst.msk [vmem:[#allocation4 + $0x128] sm:$0xff] %vm2753, %v3324
        %3408 = vst.msk [vmem:[#allocation4 + $0x140] sm:$0xff] %vm2753, %v3326
        %3409 = vst.msk [vmem:[#allocation4 + $0x158] sm:$0xff] %vm2753, %v3328
        %3410 = vst.msk [vmem:[#allocation4 + $0x170] sm:$0xff] %vm2753, %v3330
        %3411 = vst.msk [vmem:[#allocation4 + $0x188] sm:$0xff] %vm2753, %v3332
        %3412 = vst.msk [vmem:[#allocation4 + $0x1a0] sm:$0xff] %vm2753, %v3334
        %3413 = vst.msk [vmem:[#allocation4 + $0x1b8] sm:$0xff] %vm2753, %v3336
        %3414 = vst.msk [vmem:[#allocation4 + $0x1d0] sm:$0xff] %vm2753, %v3338
        %3415 = vst.msk [vmem:[#allocation4 + $0x1e8] sm:$0xff] %vm2753, %v3340
        %3416 = vst.msk [vmem:[#allocation4 + $0x200] sm:$0xff] %vm2753, %v3342
        %3417 = vst.msk [vmem:[#allocation4 + $0x218] sm:$0xff] %vm2753, %v3344
        %3418 = vst.msk [vmem:[#allocation4 + $0x230] sm:$0xff] %vm2753, %v3346
        %3419 = vst.msk [vmem:[#allocation4 + $0x248] sm:$0xff] %vm2753, %v3348
        %3420 = vst.msk [vmem:[#allocation4 + $0x260] sm:$0xff] %vm2753, %v3350
        %3421 = vst.msk [vmem:[#allocation4 + $0x278] sm:$0xff] %vm2753, %v3352
        %3422 = vst.msk [vmem:[#allocation4 + $0x290] sm:$0xff] %vm2753, %v3354
        %3423 = vst.msk [vmem:[#allocation4 + $0x2a8] sm:$0xff] %vm2753, %v3356
        %3424 = vst.msk [vmem:[#allocation4 + $0x2c0] sm:$0xff] %vm2753, %v3358
        %3425 = vst.msk [vmem:[#allocation4 + $0x2d8] sm:$0xff] %vm2753, %v3360
        %3426 = vst.msk [vmem:[#allocation4 + $0x2f0] sm:$0xff] %vm2753, %v3362
        %v3427 = vld [vmem:[%s3042 + $0x2] sm:$0xff]
        %v3428 = vld [vmem:[%s3042 + $0xa] sm:$0xff]
        %v3429 = vld [vmem:[%s3042 + $0x1a] sm:$0xff]
        %v3430 = vld [vmem:[%s3042 + $0x22] sm:$0xff]
        %v3431 = vld [vmem:[%s3042 + $0x32] sm:$0xff]
        %v3432 = vld [vmem:[%s3042 + $0x3a] sm:$0xff]
        %v3433 = vld [vmem:[%s3042 + $0x4a] sm:$0xff]
        %v3434 = vld [vmem:[%s3042 + $0x52] sm:$0xff]
        %v3435 = vld [vmem:[%s3042 + $0x62] sm:$0xff]
        %v3436 = vld [vmem:[%s3042 + $0x6a] sm:$0xff]
        %v3437 = vld [vmem:[%s3042 + $0x7a] sm:$0xff]
        %v3438 = vld [vmem:[%s3042 + $0x82] sm:$0xff]
        %v3439 = vld [vmem:[%s3042 + $0x92] sm:$0xff]
        %v3440 = vld [vmem:[%s3042 + $0x9a] sm:$0xff]
        %v3441 = vld [vmem:[%s3042 + $0xaa] sm:$0xff]
        %v3442 = vld [vmem:[%s3042 + $0xb2] sm:$0xff]
        %v3443 = vld [vmem:[%s3042 + $0xc2] sm:$0xff]
        %v3444 = vld [vmem:[%s3042 + $0xca] sm:$0xff]
        %v3445 = vld [vmem:[%s3042 + $0xda] sm:$0xff]
        %v3446 = vld [vmem:[%s3042 + $0xe2] sm:$0xff]
        %v3447 = vld [vmem:[%s3042 + $0xf2] sm:$0xff]
        %v3448 = vld [vmem:[%s3042 + $0xfa] sm:$0xff]
        %v3449 = vld [vmem:[%s3042 + $0x10a] sm:$0xff]
        %v3450 = vld [vmem:[%s3042 + $0x112] sm:$0xff]
        %v3451 = vld [vmem:[%s3042 + $0x122] sm:$0xff]
        %v3452 = vld [vmem:[%s3042 + $0x12a] sm:$0xff]
        %v3453 = vld [vmem:[%s3042 + $0x13a] sm:$0xff]
        %v3454 = vld [vmem:[%s3042 + $0x142] sm:$0xff]
        %v3455 = vld [vmem:[%s3042 + $0x152] sm:$0xff]
        %v3456 = vld [vmem:[%s3042 + $0x15a] sm:$0xff]
        %v3457 = vld [vmem:[%s3042 + $0x16a] sm:$0xff]
        %v3458 = vld [vmem:[%s3042 + $0x172] sm:$0xff]
        %3459 = vst.msk [vmem:[#allocation4 + $0x10] sm:$0xff] %vm386, %v3427
        %3460 = vst.msk [vmem:[#allocation4 + $0x28] sm:$0xff] %vm386, %v3428
        %3461 = vst.msk [vmem:[#allocation4 + $0x40] sm:$0xff] %vm386, %v3429
        %3462 = vst.msk [vmem:[#allocation4 + $0x58] sm:$0xff] %vm386, %v3430
        %3463 = vst.msk [vmem:[#allocation4 + $0x70] sm:$0xff] %vm386, %v3431
        %3464 = vst.msk [vmem:[#allocation4 + $0x88] sm:$0xff] %vm386, %v3432
        %3465 = vst.msk [vmem:[#allocation4 + $0xa0] sm:$0xff] %vm386, %v3433
        %3466 = vst.msk [vmem:[#allocation4 + $0xb8] sm:$0xff] %vm386, %v3434
        %3467 = vst.msk [vmem:[#allocation4 + $0xd0] sm:$0xff] %vm386, %v3435
        %3468 = vst.msk [vmem:[#allocation4 + $0xe8] sm:$0xff] %vm386, %v3436
        %3469 = vst.msk [vmem:[#allocation4 + $0x100] sm:$0xff] %vm386, %v3437
        %3470 = vst.msk [vmem:[#allocation4 + $0x118] sm:$0xff] %vm386, %v3438
        %3471 = vst.msk [vmem:[#allocation4 + $0x130] sm:$0xff] %vm386, %v3439
        %3472 = vst.msk [vmem:[#allocation4 + $0x148] sm:$0xff] %vm386, %v3440
        %3473 = vst.msk [vmem:[#allocation4 + $0x160] sm:$0xff] %vm386, %v3441
        %3474 = vst.msk [vmem:[#allocation4 + $0x178] sm:$0xff] %vm386, %v3442
        %3475 = vst.msk [vmem:[#allocation4 + $0x190] sm:$0xff] %vm386, %v3443
        %3476 = vst.msk [vmem:[#allocation4 + $0x1a8] sm:$0xff] %vm386, %v3444
        %3477 = vst.msk [vmem:[#allocation4 + $0x1c0] sm:$0xff] %vm386, %v3445
        %3478 = vst.msk [vmem:[#allocation4 + $0x1d8] sm:$0xff] %vm386, %v3446
        %3479 = vst.msk [vmem:[#allocation4 + $0x1f0] sm:$0xff] %vm386, %v3447
        %3480 = vst.msk [vmem:[#allocation4 + $0x208] sm:$0xff] %vm386, %v3448
        %3481 = vst.msk [vmem:[#allocation4 + $0x220] sm:$0xff] %vm386, %v3449
        %3482 = vst.msk [vmem:[#allocation4 + $0x238] sm:$0xff] %vm386, %v3450
        %3483 = vst.msk [vmem:[#allocation4 + $0x250] sm:$0xff] %vm386, %v3451
        %3484 = vst.msk [vmem:[#allocation4 + $0x268] sm:$0xff] %vm386, %v3452
        %3485 = vst.msk [vmem:[#allocation4 + $0x280] sm:$0xff] %vm386, %v3453
        %3486 = vst.msk [vmem:[#allocation4 + $0x298] sm:$0xff] %vm386, %v3454
        %3487 = vst.msk [vmem:[#allocation4 + $0x2b0] sm:$0xff] %vm386, %v3455
        %3488 = vst.msk [vmem:[#allocation4 + $0x2c8] sm:$0xff] %vm386, %v3456
        %3489 = vst.msk [vmem:[#allocation4 + $0x2e0] sm:$0xff] %vm386, %v3457
        %3490 = vst.msk [vmem:[#allocation4 + $0x2f8] sm:$0xff] %vm386, %v3458
        %v3491 = vld [vmem:[#allocation4] sm:$0xff]
        %v3492 = vld [vmem:[#allocation4 + $0x8] sm:$0xff]
        %v3493 = vld [vmem:[#allocation4 + $0x10] sm:$0xff]
        %v3494 = vld [vmem:[#allocation4 + $0x18] sm:$0xff]
        %v3495 = vld [vmem:[#allocation4 + $0x20] sm:$0xff]
        %v3496 = vld [vmem:[#allocation4 + $0x28] sm:$0xff]
        %v3497 = vld [vmem:[#allocation4 + $0x30] sm:$0xff]
        %v3498 = vld [vmem:[#allocation4 + $0x38] sm:$0xff]
        %v3499 = vld [vmem:[#allocation4 + $0x40] sm:$0xff]
        %v3500 = vld [vmem:[#allocation4 + $0x48] sm:$0xff]
        %v3501 = vld [vmem:[#allocation4 + $0x50] sm:$0xff]
        %v3502 = vld [vmem:[#allocation4 + $0x58] sm:$0xff]
        %v3503 = vld [vmem:[#allocation4 + $0x60] sm:$0xff]
        %v3504 = vld [vmem:[#allocation4 + $0x68] sm:$0xff]
        %v3505 = vld [vmem:[#allocation4 + $0x70] sm:$0xff]
        %v3506 = vld [vmem:[#allocation4 + $0x78] sm:$0xff]
        %v3507 = vld [vmem:[#allocation4 + $0x80] sm:$0xff]
        %v3508 = vld [vmem:[#allocation4 + $0x88] sm:$0xff]
        %v3509 = vld [vmem:[#allocation4 + $0x90] sm:$0xff]
        %v3510 = vld [vmem:[#allocation4 + $0x98] sm:$0xff]
        %v3511 = vld [vmem:[#allocation4 + $0xa0] sm:$0xff]
        %v3512 = vld [vmem:[#allocation4 + $0xa8] sm:$0xff]
        %v3513 = vld [vmem:[#allocation4 + $0xb0] sm:$0xff]
        %v3514 = vld [vmem:[#allocation4 + $0xb8] sm:$0xff]
        %v3515 = vld [vmem:[#allocation4 + $0xc0] sm:$0xff]
        %v3516 = vld [vmem:[#allocation4 + $0xc8] sm:$0xff]
        %v3517 = vld [vmem:[#allocation4 + $0xd0] sm:$0xff]
        %v3518 = vld [vmem:[#allocation4 + $0xd8] sm:$0xff]
        %v3519 = vld [vmem:[#allocation4 + $0xe0] sm:$0xff]
        %v3520 = vld [vmem:[#allocation4 + $0xe8] sm:$0xff]
        %v3521 = vld [vmem:[#allocation4 + $0xf0] sm:$0xff]
        %v3522 = vld [vmem:[#allocation4 + $0xf8] sm:$0xff]
        %v3523 = vld [vmem:[#allocation4 + $0x100] sm:$0xff]
        %v3524 = vld [vmem:[#allocation4 + $0x108] sm:$0xff]
        %v3525 = vld [vmem:[#allocation4 + $0x110] sm:$0xff]
        %v3526 = vld [vmem:[#allocation4 + $0x118] sm:$0xff]
        %v3527 = vld [vmem:[#allocation4 + $0x120] sm:$0xff]
        %v3528 = vld [vmem:[#allocation4 + $0x128] sm:$0xff]
        %v3529 = vld [vmem:[#allocation4 + $0x130] sm:$0xff]
        %v3530 = vld [vmem:[#allocation4 + $0x138] sm:$0xff]
        %v3531 = vld [vmem:[#allocation4 + $0x140] sm:$0xff]
        %v3532 = vld [vmem:[#allocation4 + $0x148] sm:$0xff]
        %v3533 = vld [vmem:[#allocation4 + $0x150] sm:$0xff]
        %v3534 = vld [vmem:[#allocation4 + $0x158] sm:$0xff]
        %v3535 = vld [vmem:[#allocation4 + $0x160] sm:$0xff]
        %v3536 = vld [vmem:[#allocation4 + $0x168] sm:$0xff]
        %v3537 = vld [vmem:[#allocation4 + $0x170] sm:$0xff]
        %v3538 = vld [vmem:[#allocation4 + $0x178] sm:$0xff]
        %v3539 = vld [vmem:[#allocation4 + $0x180] sm:$0xff]
        %v3540 = vld [vmem:[#allocation4 + $0x188] sm:$0xff]
        %v3541 = vld [vmem:[#allocation4 + $0x190] sm:$0xff]
        %v3542 = vld [vmem:[#allocation4 + $0x198] sm:$0xff]
        %v3543 = vld [vmem:[#allocation4 + $0x1a0] sm:$0xff]
        %v3544 = vld [vmem:[#allocation4 + $0x1a8] sm:$0xff]
        %v3545 = vld [vmem:[#allocation4 + $0x1b0] sm:$0xff]
        %v3546 = vld [vmem:[#allocation4 + $0x1b8] sm:$0xff]
        %v3547 = vld [vmem:[#allocation4 + $0x1c0] sm:$0xff]
        %v3548 = vld [vmem:[#allocation4 + $0x1c8] sm:$0xff]
        %v3549 = vld [vmem:[#allocation4 + $0x1d0] sm:$0xff]
        %v3550 = vld [vmem:[#allocation4 + $0x1d8] sm:$0xff]
        %v3551 = vld [vmem:[#allocation4 + $0x1e0] sm:$0xff]
        %v3552 = vld [vmem:[#allocation4 + $0x1e8] sm:$0xff]
        %v3553 = vld [vmem:[#allocation4 + $0x1f0] sm:$0xff]
        %v3554 = vld [vmem:[#allocation4 + $0x1f8] sm:$0xff]
        %v3555 = vld [vmem:[#allocation4 + $0x200] sm:$0xff]
        %v3556 = vld [vmem:[#allocation4 + $0x208] sm:$0xff]
        %v3557 = vld [vmem:[#allocation4 + $0x210] sm:$0xff]
        %v3558 = vld [vmem:[#allocation4 + $0x218] sm:$0xff]
        %v3559 = vld [vmem:[#allocation4 + $0x220] sm:$0xff]
        %v3560 = vld [vmem:[#allocation4 + $0x228] sm:$0xff]
        %v3561 = vld [vmem:[#allocation4 + $0x230] sm:$0xff]
        %v3562 = vld [vmem:[#allocation4 + $0x238] sm:$0xff]
        %v3563 = vld [vmem:[#allocation4 + $0x240] sm:$0xff]
        %v3564 = vld [vmem:[#allocation4 + $0x248] sm:$0xff]
        %v3565 = vld [vmem:[#allocation4 + $0x250] sm:$0xff]
        %v3566 = vld [vmem:[#allocation4 + $0x258] sm:$0xff]
        %v3567 = vld [vmem:[#allocation4 + $0x260] sm:$0xff]
        %v3568 = vld [vmem:[#allocation4 + $0x268] sm:$0xff]
        %v3569 = vld [vmem:[#allocation4 + $0x270] sm:$0xff]
        %v3570 = vld [vmem:[#allocation4 + $0x278] sm:$0xff]
        %v3571 = vld [vmem:[#allocation4 + $0x280] sm:$0xff]
        %v3572 = vld [vmem:[#allocation4 + $0x288] sm:$0xff]
        %v3573 = vld [vmem:[#allocation4 + $0x290] sm:$0xff]
        %v3574 = vld [vmem:[#allocation4 + $0x298] sm:$0xff]
        %v3575 = vld [vmem:[#allocation4 + $0x2a0] sm:$0xff]
        %v3576 = vld [vmem:[#allocation4 + $0x2a8] sm:$0xff]
        %v3577 = vld [vmem:[#allocation4 + $0x2b0] sm:$0xff]
        %v3578 = vld [vmem:[#allocation4 + $0x2b8] sm:$0xff]
        %v3579 = vld [vmem:[#allocation4 + $0x2c0] sm:$0xff]
        %v3580 = vld [vmem:[#allocation4 + $0x2c8] sm:$0xff]
        %v3581 = vld [vmem:[#allocation4 + $0x2d0] sm:$0xff]
        %v3582 = vld [vmem:[#allocation4 + $0x2d8] sm:$0xff]
        %v3583 = vld [vmem:[#allocation4 + $0x2e0] sm:$0xff]
        %v3584 = vld [vmem:[#allocation4 + $0x2e8] sm:$0xff]
        %v3585 = vld [vmem:[#allocation4 + $0x2f0] sm:$0xff]
        %v3586 = vld [vmem:[#allocation4 + $0x2f8] sm:$0xff]
        %v3587 = vld [vmem:[%s3] sm:$0xff]
        %v3588 = vld [vmem:[%s3 + $0x8] sm:$0xff]
        %v3589 = vld [vmem:[%s3 + $0x10] sm:$0xff]
        %v3590 = vld [vmem:[%s3 + $0x18] sm:$0xff]
        %v3591 = vld [vmem:[%s3 + $0x20] sm:$0xff]
        %v3592 = vld [vmem:[%s3 + $0x28] sm:$0xff]
        %v3593 = vld [vmem:[%s3 + $0x30] sm:$0xff]
        %v3594 = vld [vmem:[%s3 + $0x38] sm:$0xff]
        %v3595 = vld [vmem:[%s3 + $0x40] sm:$0xff]
        %v3596 = vld [vmem:[%s3 + $0x48] sm:$0xff]
        %v3597 = vld [vmem:[%s3 + $0x50] sm:$0xff]
        %v3598 = vld [vmem:[%s3 + $0x58] sm:$0xff]
        %v3599 = vld [vmem:[%s3 + $0x60] sm:$0xff]
        %v3600 = vld [vmem:[%s3 + $0x68] sm:$0xff]
        %v3601 = vld [vmem:[%s3 + $0x70] sm:$0xff]
        %v3602 = vld [vmem:[%s3 + $0x78] sm:$0xff]
        %v3603 = vld [vmem:[%s3 + $0x80] sm:$0xff]
        %v3604 = vld [vmem:[%s3 + $0x88] sm:$0xff]
        %v3605 = vld [vmem:[%s3 + $0x90] sm:$0xff]
        %v3606 = vld [vmem:[%s3 + $0x98] sm:$0xff]
        %v3607 = vld [vmem:[%s3 + $0xa0] sm:$0xff]
        %v3608 = vld [vmem:[%s3 + $0xa8] sm:$0xff]
        %v3609 = vld [vmem:[%s3 + $0xb0] sm:$0xff]
        %v3610 = vld [vmem:[%s3 + $0xb8] sm:$0xff]
        %v3611 = vld [vmem:[%s3 + $0xc0] sm:$0xff]
        %v3612 = vld [vmem:[%s3 + $0xc8] sm:$0xff]
        %v3613 = vld [vmem:[%s3 + $0xd0] sm:$0xff]
        %v3614 = vld [vmem:[%s3 + $0xd8] sm:$0xff]
        %v3615 = vld [vmem:[%s3 + $0xe0] sm:$0xff]
        %v3616 = vld [vmem:[%s3 + $0xe8] sm:$0xff]
        %v3617 = vld [vmem:[%s3 + $0xf0] sm:$0xff]
        %v3618 = vld [vmem:[%s3 + $0xf8] sm:$0xff]
        %v3619 = vld [vmem:[%s3 + $0x100] sm:$0xff]
        %v3620 = vld [vmem:[%s3 + $0x108] sm:$0xff]
        %v3621 = vld [vmem:[%s3 + $0x110] sm:$0xff]
        %v3622 = vld [vmem:[%s3 + $0x118] sm:$0xff]
        %v3623 = vld [vmem:[%s4] sm:$0x1]
        %v3625 = vlaneseq
        %v3626 = vshrl.u32 %v3625, 7
        %v3627 = vsub.s32 0, %v3626
        %v3628 = vrot.slane %v3623, %v3627
        %v3631 = vsel %vm386, %v3493, 0
        %v3634 = vsel %vm386, %v3496, 0
        %v3637 = vsel %vm386, %v3499, 0
        %v3640 = vsel %vm386, %v3502, 0
        %v3643 = vsel %vm386, %v3505, 0
        %v3646 = vsel %vm386, %v3508, 0
        %v3649 = vsel %vm386, %v3511, 0
        %v3652 = vsel %vm386, %v3514, 0
        %v3655 = vsel %vm386, %v3517, 0
        %v3658 = vsel %vm386, %v3520, 0
        %v3661 = vsel %vm386, %v3523, 0
        %v3664 = vsel %vm386, %v3526, 0
        %v3667 = vsel %vm386, %v3529, 0
        %v3670 = vsel %vm386, %v3532, 0
        %v3673 = vsel %vm386, %v3535, 0
        %v3676 = vsel %vm386, %v3538, 0
        %v3679 = vsel %vm386, %v3541, 0
        %v3682 = vsel %vm386, %v3544, 0
        %v3685 = vsel %vm386, %v3547, 0
        %v3688 = vsel %vm386, %v3550, 0
        %v3691 = vsel %vm386, %v3553, 0
        %v3694 = vsel %vm386, %v3556, 0
        %v3697 = vsel %vm386, %v3559, 0
        %v3700 = vsel %vm386, %v3562, 0
        %v3703 = vsel %vm386, %v3565, 0
        %v3706 = vsel %vm386, %v3568, 0
        %v3709 = vsel %vm386, %v3571, 0
        %v3712 = vsel %vm386, %v3574, 0
        %v3715 = vsel %vm386, %v3577, 0
        %v3718 = vsel %vm386, %v3580, 0
        %v3721 = vsel %vm386, %v3583, 0
        %v3724 = vsel %vm386, %v3586, 0
        %3726 = vmatprep.subr.mxu0 0.0
        %3727 = vmatpush1.msra.mxu0 %v3587
        %3728 = vmatprep.subr.mxu0 0.0
        %3729 = vmatpush1.msra.mxu0 %v3588
        %3730 = vmatprep.subr.mxu0 0.0
        %3731 = vmatpush1.msra.mxu0 %v3589
        %3732 = vmatprep.subr.mxu0 0.0
        %3733 = vmatpush1.msra.mxu0 %v3590
        %3734 = vmatprep.subr.mxu0 0.0
        %3735 = vmatpush1.msra.mxu0 %v3591
        %3736 = vmatprep.subr.mxu0 0.0
        %3737 = vmatpush1.msra.mxu0 %v3592
        %3738 = vmatprep.subr.mxu0 0.0
        %3739 = vmatpush1.msra.mxu0 %v3593
        %3740 = vmatprep.subr.mxu0 0.0
        %3741 = vmatpush1.msra.mxu0 %v3594
        %3742 = vmatprep.subr.mxu0 0.0
        %3743 = vmatpush1.msra.mxu0 %v3595
        %3744 = vmatprep.subr.mxu0 0.0
        %3745 = vmatpush1.msra.mxu0 %v3596
        %3746 = vmatprep.subr.mxu0 0.0
        %3747 = vmatpush1.msra.mxu0 %v3597
        %3748 = vmatprep.subr.mxu0 0.0
        %3749 = vmatpush1.msra.mxu0 %v3598
        %3750 = vmatprep.subr.mxu0 0.0
        %3751 = vmatpush1.msra.mxu0 %v3599
        %3752 = vmatprep.subr.mxu0 0.0
        %3753 = vmatpush1.msra.mxu0 %v3600
        %3754 = vmatprep.subr.mxu0 0.0
        %3755 = vmatpush1.msra.mxu0 %v3601
        %3756 = vmatprep.subr.mxu0 0.0
        %3757 = vmatpush1.msra.mxu0 %v3602
        %3758 = vmatprep.subr.mxu0 0.0
        %3759 = vmatpush1.msra.mxu0 %v3603
        %3760 = vmatprep.subr.mxu0 0.0
        %3761 = vmatpush1.msra.mxu0 %v3604
        %3762 = vmatprep.subr.mxu0 0.0
        %3763 = vmatpush1.msra.mxu0 %v3605
        %3764 = vmatprep.subr.mxu0 0.0
        %3765 = vmatpush1.msra.mxu0 %v3606
        %3766 = vmatprep.subr.mxu0 0.0
        %3767 = vmatpush1.msra.mxu0 %v3607
        %3768 = vmatprep.subr.mxu0 0.0
        %3769 = vmatpush1.msra.mxu0 %v3608
        %3770 = vmatprep.subr.mxu0 0.0
        %3771 = vmatpush1.msra.mxu0 %v3609
        %3772 = vmatprep.subr.mxu0 0.0
        %3773 = vmatpush1.msra.mxu0 %v3610
        %3774 = vmatprep.subr.mxu0 0.0
        %3775 = vmatpush1.msra.mxu0 %v3611
        %3776 = vmatprep.subr.mxu0 0.0
        %3777 = vmatpush1.msra.mxu0 %v3612
        %3778 = vmatprep.subr.mxu0 0.0
        %3779 = vmatpush1.msra.mxu0 %v3613
        %3780 = vmatprep.subr.mxu0 0.0
        %3781 = vmatpush1.msra.mxu0 %v3614
        %3782 = vmatprep.subr.mxu0 0.0
        %3783 = vmatpush1.msra.mxu0 %v3615
        %3784 = vmatprep.subr.mxu0 0.0
        %3785 = vmatpush1.msra.mxu0 %v3616
        %3786 = vmatprep.subr.mxu0 0.0
        %3787 = vmatpush1.msra.mxu0 %v3617
        %3788 = vmatprep.subr.mxu0 0.0
        %3789 = vmatpush1.msra.mxu0 %v3618
        %3790 = vmatprep.mubr.f32.mxu0 %v3492
        %3791 = vmatmul.mubr.f32.gmra.mrb[0].mxu0 %v3491
        %v3792 = vpop.f32.mrb[0].mxu0
        %v3793 = vadd.f32 %v3628, %v3792
        %v3794 = vpop.f32.mrb[0].mxu0
        %3795 = vmatprep.mubr.f32.mxu0 %v3495
        %3796 = vmatmul.mubr.f32.gmra.mrb[0].mxu0 %v3494
        %v3797 = vpop.f32.mrb[0].mxu0
        %v3798 = vadd.f32 %v3628, %v3797
        %v3799 = vpop.f32.mrb[0].mxu0
        %3800 = vmatprep.mubr.f32.mxu0 %v3498
        %3801 = vmatmul.mubr.f32.gmra.mrb[0].mxu0 %v3497
        %v3802 = vpop.f32.mrb[0].mxu0
        %v3803 = vadd.f32 %v3628, %v3802
        %v3804 = vpop.f32.mrb[0].mxu0
        %3805 = vmatprep.mubr.f32.mxu0 %v3501
        %3806 = vmatmul.mubr.f32.gmra.mrb[0].mxu0 %v3500
        %v3807 = vpop.f32.mrb[0].mxu0
        %v3808 = vadd.f32 %v3628, %v3807
        %v3809 = vpop.f32.mrb[0].mxu0
        %3810 = vmatprep.mubr.f32.mxu0 %v3504
        %3811 = vmatmul.mubr.f32.gmra.mrb[0].mxu0 %v3503
        %v3812 = vpop.f32.mrb[0].mxu0
        %v3813 = vadd.f32 %v3628, %v3812
        %v3814 = vpop.f32.mrb[0].mxu0
        %3815 = vmatprep.mubr.f32.mxu0 %v3507
        %3816 = vmatmul.mubr.f32.gmra.mrb[0].mxu0 %v3506
        %v3817 = vpop.f32.mrb[0].mxu0
        %v3818 = vadd.f32 %v3628, %v3817
        %v3819 = vpop.f32.mrb[0].mxu0
        %3820 = vmatprep.mubr.f32.mxu0 %v3510
        %3821 = vmatmul.mubr.f32.gmra.mrb[0].mxu0 %v3509
        %v3822 = vpop.f32.mrb[0].mxu0
        %v3823 = vadd.f32 %v3628, %v3822
        %v3824 = vpop.f32.mrb[0].mxu0
        %3825 = vmatprep.mubr.f32.mxu0 %v3513
        %3826 = vmatmul.mubr.f32.gmra.mrb[0].mxu0 %v3512
        %v3827 = vpop.f32.mrb[0].mxu0
        %v3828 = vadd.f32 %v3628, %v3827
        %v3829 = vpop.f32.mrb[0].mxu0
        %3830 = vmatprep.mubr.f32.mxu0 %v3516
        %3831 = vmatmul.mubr.f32.gmra.mrb[0].mxu0 %v3515
        %v3832 = vpop.f32.mrb[0].mxu0
        %v3833 = vadd.f32 %v3628, %v3832
        %v3834 = vpop.f32.mrb[0].mxu0
        %3835 = vmatprep.mubr.f32.mxu0 %v3519
        %3836 = vmatmul.mubr.f32.gmra.mrb[0].mxu0 %v3518
        %v3837 = vpop.f32.mrb[0].mxu0
        %v3838 = vadd.f32 %v3628, %v3837
        %v3839 = vpop.f32.mrb[0].mxu0
        %3840 = vmatprep.mubr.f32.mxu0 %v3522
        %3841 = vmatmul.mubr.f32.gmra.mrb[0].mxu0 %v3521
        %v3842 = vpop.f32.mrb[0].mxu0
        %v3843 = vadd.f32 %v3628, %v3842
        %v3844 = vpop.f32.mrb[0].mxu0
        %3845 = vmatprep.mubr.f32.mxu0 %v3525
        %3846 = vmatmul.mubr.f32.gmra.mrb[0].mxu0 %v3524
        %v3847 = vpop.f32.mrb[0].mxu0
        %v3848 = vadd.f32 %v3628, %v3847
        %v3849 = vpop.f32.mrb[0].mxu0
        %3850 = vmatprep.mubr.f32.mxu0 %v3528
        %3851 = vmatmul.mubr.f32.gmra.mrb[0].mxu0 %v3527
        %v3852 = vpop.f32.mrb[0].mxu0
        %v3853 = vadd.f32 %v3628, %v3852
        %v3854 = vpop.f32.mrb[0].mxu0
        %3855 = vmatprep.mubr.f32.mxu0 %v3531
        %3856 = vmatmul.mubr.f32.gmra.mrb[0].mxu0 %v3530
        %v3857 = vpop.f32.mrb[0].mxu0
        %v3858 = vadd.f32 %v3628, %v3857
        %v3859 = vpop.f32.mrb[0].mxu0
        %3860 = vmatprep.mubr.f32.mxu0 %v3534
        %3861 = vmatmul.mubr.f32.gmra.mrb[0].mxu0 %v3533
        %v3862 = vpop.f32.mrb[0].mxu0
        %v3863 = vadd.f32 %v3628, %v3862
        %v3864 = vpop.f32.mrb[0].mxu0
        %3865 = vmatprep.mubr.f32.mxu0 %v3537
        %3866 = vmatmul.mubr.f32.gmra.mrb[0].mxu0 %v3536
        %v3867 = vpop.f32.mrb[0].mxu0
        %v3868 = vadd.f32 %v3628, %v3867
        %v3869 = vpop.f32.mrb[0].mxu0
        %3870 = vmatprep.mubr.f32.mxu0 %v3540
        %3871 = vmatmul.mubr.f32.gmra.mrb[0].mxu0 %v3539
        %v3872 = vpop.f32.mrb[0].mxu0
        %v3873 = vadd.f32 %v3628, %v3872
        %v3874 = vpop.f32.mrb[0].mxu0
        %3875 = vmatprep.mubr.f32.mxu0 %v3543
        %3876 = vmatmul.mubr.f32.gmra.mrb[0].mxu0 %v3542
        %v3877 = vpop.f32.mrb[0].mxu0
        %v3878 = vadd.f32 %v3628, %v3877
        %v3879 = vpop.f32.mrb[0].mxu0
        %3880 = vmatprep.mubr.f32.mxu0 %v3546
        %3881 = vmatmul.mubr.f32.gmra.mrb[0].mxu0 %v3545
        %v3882 = vpop.f32.mrb[0].mxu0
        %v3883 = vadd.f32 %v3628, %v3882
        %v3884 = vpop.f32.mrb[0].mxu0
        %3885 = vmatprep.mubr.f32.mxu0 %v3549
        %3886 = vmatmul.mubr.f32.gmra.mrb[0].mxu0 %v3548
        %v3887 = vpop.f32.mrb[0].mxu0
        %v3888 = vadd.f32 %v3628, %v3887
        %v3889 = vpop.f32.mrb[0].mxu0
        %3890 = vmatprep.mubr.f32.mxu0 %v3552
        %3891 = vmatmul.mubr.f32.gmra.mrb[0].mxu0 %v3551
        %v3892 = vpop.f32.mrb[0].mxu0
        %v3893 = vadd.f32 %v3628, %v3892
        %v3894 = vpop.f32.mrb[0].mxu0
        %3895 = vmatprep.mubr.f32.mxu0 %v3555
        %3896 = vmatmul.mubr.f32.gmra.mrb[0].mxu0 %v3554
        %v3897 = vpop.f32.mrb[0].mxu0
        %v3898 = vadd.f32 %v3628, %v3897
        %v3899 = vpop.f32.mrb[0].mxu0
        %3900 = vmatprep.mubr.f32.mxu0 %v3558
        %3901 = vmatmul.mubr.f32.gmra.mrb[0].mxu0 %v3557
        %v3902 = vpop.f32.mrb[0].mxu0
        %v3903 = vadd.f32 %v3628, %v3902
        %v3904 = vpop.f32.mrb[0].mxu0
        %3905 = vmatprep.mubr.f32.mxu0 %v3561
        %3906 = vmatmul.mubr.f32.gmra.mrb[0].mxu0 %v3560
        %v3907 = vpop.f32.mrb[0].mxu0
        %v3908 = vadd.f32 %v3628, %v3907
        %v3909 = vpop.f32.mrb[0].mxu0
        %3910 = vmatprep.mubr.f32.mxu0 %v3564
        %3911 = vmatmul.mubr.f32.gmra.mrb[0].mxu0 %v3563
        %v3912 = vpop.f32.mrb[0].mxu0
        %v3913 = vadd.f32 %v3628, %v3912
        %v3914 = vpop.f32.mrb[0].mxu0
        %3915 = vmatprep.mubr.f32.mxu0 %v3567
        %3916 = vmatmul.mubr.f32.gmra.mrb[0].mxu0 %v3566
        %v3917 = vpop.f32.mrb[0].mxu0
        %v3918 = vadd.f32 %v3628, %v3917
        %v3919 = vpop.f32.mrb[0].mxu0
        %3920 = vmatprep.mubr.f32.mxu0 %v3570
        %3921 = vmatmul.mubr.f32.gmra.mrb[0].mxu0 %v3569
        %v3922 = vpop.f32.mrb[0].mxu0
        %v3923 = vadd.f32 %v3628, %v3922
        %v3924 = vpop.f32.mrb[0].mxu0
        %3925 = vmatprep.mubr.f32.mxu0 %v3573
        %3926 = vmatmul.mubr.f32.gmra.mrb[0].mxu0 %v3572
        %v3927 = vpop.f32.mrb[0].mxu0
        %v3928 = vadd.f32 %v3628, %v3927
        %v3929 = vpop.f32.mrb[0].mxu0
        %3930 = vmatprep.mubr.f32.mxu0 %v3576
        %3931 = vmatmul.mubr.f32.gmra.mrb[0].mxu0 %v3575
        %v3932 = vpop.f32.mrb[0].mxu0
        %v3933 = vadd.f32 %v3628, %v3932
        %v3934 = vpop.f32.mrb[0].mxu0
        %3935 = vmatprep.mubr.f32.mxu0 %v3579
        %3936 = vmatmul.mubr.f32.gmra.mrb[0].mxu0 %v3578
        %v3937 = vpop.f32.mrb[0].mxu0
        %v3938 = vadd.f32 %v3628, %v3937
        %v3939 = vpop.f32.mrb[0].mxu0
        %3940 = vmatprep.mubr.f32.mxu0 %v3582
        %3941 = vmatmul.mubr.f32.gmra.mrb[0].mxu0 %v3581
        %v3942 = vpop.f32.mrb[0].mxu0
        %v3943 = vadd.f32 %v3628, %v3942
        %v3944 = vpop.f32.mrb[0].mxu0
        %3945 = vmatprep.mubr.f32.mxu0 %v3585
        %3946 = vmatmul.mubr.f32.gmra.mrb[0].mxu0 %v3584
        %v3947 = vpop.f32.mrb[0].mxu0
        %v3948 = vadd.f32 %v3628, %v3947
        %v3949 = vpop.f32.mrb[0].mxu0
        %3950 = vdwg.mxu0
        %3951 = vmatprep.subr.mxu0 0.0
        %3952 = vmatpush1.msra.mxu0 %v3619
        %3953 = vmatprep.subr.mxu0 0.0
        %3954 = vmatpush1.msra.mxu0 %v3620
        %3955 = vmatprep.subr.mxu0 0.0
        %3956 = vmatpush1.msra.mxu0 %v3621
        %3957 = vmatprep.subr.mxu0 0.0
        %3958 = vmatpush1.msra.mxu0 %v3622
        %3959 = vmatprep.subr.mxu0 0.0
        %3960 = vmatpush1.msra.mxu0 0.0
        %3961 = vmatprep.subr.mxu0 0.0
        %3962 = vmatpush1.msra.mxu0 0.0
        %3963 = vmatprep.subr.mxu0 0.0
        %3964 = vmatpush1.msra.mxu0 0.0
        %3965 = vmatprep.subr.mxu0 0.0
        %3966 = vmatpush1.msra.mxu0 0.0
        %3967 = vmatprep.subr.mxu0 0.0
        %3968 = vmatpush1.msra.mxu0 0.0
        %3969 = vmatprep.subr.mxu0 0.0
        %3970 = vmatpush1.msra.mxu0 0.0
        %3971 = vmatprep.subr.mxu0 0.0
        %3972 = vmatpush1.msra.mxu0 0.0
        %3973 = vmatprep.subr.mxu0 0.0
        %3974 = vmatpush1.msra.mxu0 0.0
        %3975 = vmatprep.subr.mxu0 0.0
        %3976 = vmatpush1.msra.mxu0 0.0
        %3977 = vmatprep.subr.mxu0 0.0
        %3978 = vmatpush1.msra.mxu0 0.0
        %3979 = vmatprep.subr.mxu0 0.0
        %3980 = vmatpush1.msra.mxu0 0.0
        %3981 = vmatprep.subr.mxu0 0.0
        %3982 = vmatpush1.msra.mxu0 0.0
        %3983 = vmatprep.subr.mxu0 0.0
        %3984 = vmatpush1.msra.mxu0 0.0
        %3985 = vmatprep.subr.mxu0 0.0
        %3986 = vmatpush1.msra.mxu0 0.0
        %3987 = vmatprep.subr.mxu0 0.0
        %3988 = vmatpush1.msra.mxu0 0.0
        %3989 = vmatprep.subr.mxu0 0.0
        %3990 = vmatpush1.msra.mxu0 0.0
        %3991 = vmatprep.subr.mxu0 0.0
        %3992 = vmatpush1.msra.mxu0 0.0
        %3993 = vmatprep.subr.mxu0 0.0
        %3994 = vmatpush1.msra.mxu0 0.0
        %3995 = vmatprep.subr.mxu0 0.0
        %3996 = vmatpush1.msra.mxu0 0.0
        %3997 = vmatprep.subr.mxu0 0.0
        %3998 = vmatpush1.msra.mxu0 0.0
        %3999 = vmatprep.subr.mxu0 0.0
        %4000 = vmatpush1.msra.mxu0 0.0
        %4001 = vmatprep.subr.mxu0 0.0
        %4002 = vmatpush1.msra.mxu0 0.0
        %4003 = vmatprep.subr.mxu0 0.0
        %4004 = vmatpush1.msra.mxu0 0.0
        %4005 = vmatprep.subr.mxu0 0.0
        %4006 = vmatpush1.msra.mxu0 0.0
        %4007 = vmatprep.subr.mxu0 0.0
        %4008 = vmatpush1.msra.mxu0 0.0
        %4009 = vmatprep.subr.mxu0 0.0
        %4010 = vmatpush1.msra.mxu0 0.0
        %4011 = vmatprep.subr.mxu0 0.0
        %4012 = vmatpush1.msra.mxu0 0.0
        %4013 = vmatprep.subr.mxu0 0.0
        %4014 = vmatpush1.msra.mxu0 0.0
        %4015 = vmatprep.mubr.f32.mxu0 0.0
        %4016 = vmatmul.mubr.f32.gmra.mrb[0].mxu0 %v3631
        %v4017 = vpop.f32.mrb[0].mxu0
        %v4018 = vadd.f32 %v3793, %v4017
        %v4019 = vpop.f32.mrb[0].mxu0
        %4020 = vmatprep.mubr.f32.mxu0 0.0
        %4021 = vmatmul.mubr.f32.gmra.mrb[0].mxu0 %v3634
        %v4022 = vpop.f32.mrb[0].mxu0
        %v4023 = vadd.f32 %v3798, %v4022
        %v4024 = vpop.f32.mrb[0].mxu0
        %4025 = vmatprep.mubr.f32.mxu0 0.0
        %4026 = vmatmul.mubr.f32.gmra.mrb[0].mxu0 %v3637
        %v4027 = vpop.f32.mrb[0].mxu0
        %v4028 = vadd.f32 %v3803, %v4027
        %v4029 = vpop.f32.mrb[0].mxu0
        %4030 = vmatprep.mubr.f32.mxu0 0.0
        %4031 = vmatmul.mubr.f32.gmra.mrb[0].mxu0 %v3640
        %v4032 = vpop.f32.mrb[0].mxu0
        %v4033 = vadd.f32 %v3808, %v4032
        %v4034 = vpop.f32.mrb[0].mxu0
        %4035 = vmatprep.mubr.f32.mxu0 0.0
        %4036 = vmatmul.mubr.f32.gmra.mrb[0].mxu0 %v3643
        %v4037 = vpop.f32.mrb[0].mxu0
        %v4038 = vadd.f32 %v3813, %v4037
        %v4039 = vpop.f32.mrb[0].mxu0
        %4040 = vmatprep.mubr.f32.mxu0 0.0
        %4041 = vmatmul.mubr.f32.gmra.mrb[0].mxu0 %v3646
        %v4042 = vpop.f32.mrb[0].mxu0
        %v4043 = vadd.f32 %v3818, %v4042
        %v4044 = vpop.f32.mrb[0].mxu0
        %4045 = vmatprep.mubr.f32.mxu0 0.0
        %4046 = vmatmul.mubr.f32.gmra.mrb[0].mxu0 %v3649
        %v4047 = vpop.f32.mrb[0].mxu0
        %v4048 = vadd.f32 %v3823, %v4047
        %v4049 = vpop.f32.mrb[0].mxu0
        %4050 = vmatprep.mubr.f32.mxu0 0.0
        %4051 = vmatmul.mubr.f32.gmra.mrb[0].mxu0 %v3652
        %v4052 = vpop.f32.mrb[0].mxu0
        %v4053 = vadd.f32 %v3828, %v4052
        %v4054 = vpop.f32.mrb[0].mxu0
        %4055 = vmatprep.mubr.f32.mxu0 0.0
        %4056 = vmatmul.mubr.f32.gmra.mrb[0].mxu0 %v3655
        %v4057 = vpop.f32.mrb[0].mxu0
        %v4058 = vadd.f32 %v3833, %v4057
        %v4059 = vpop.f32.mrb[0].mxu0
        %4060 = vmatprep.mubr.f32.mxu0 0.0
        %4061 = vmatmul.mubr.f32.gmra.mrb[0].mxu0 %v3658
        %v4062 = vpop.f32.mrb[0].mxu0
        %v4063 = vadd.f32 %v3838, %v4062
        %v4064 = vpop.f32.mrb[0].mxu0
        %4065 = vmatprep.mubr.f32.mxu0 0.0
        %4066 = vmatmul.mubr.f32.gmra.mrb[0].mxu0 %v3661
        %v4067 = vpop.f32.mrb[0].mxu0
        %v4068 = vadd.f32 %v3843, %v4067
        %v4069 = vpop.f32.mrb[0].mxu0
        %4070 = vmatprep.mubr.f32.mxu0 0.0
        %4071 = vmatmul.mubr.f32.gmra.mrb[0].mxu0 %v3664
        %v4072 = vpop.f32.mrb[0].mxu0
        %v4073 = vadd.f32 %v3848, %v4072
        %v4074 = vpop.f32.mrb[0].mxu0
        %4075 = vmatprep.mubr.f32.mxu0 0.0
        %4076 = vmatmul.mubr.f32.gmra.mrb[0].mxu0 %v3667
        %v4077 = vpop.f32.mrb[0].mxu0
        %v4078 = vadd.f32 %v3853, %v4077
        %v4079 = vpop.f32.mrb[0].mxu0
        %4080 = vmatprep.mubr.f32.mxu0 0.0
        %4081 = vmatmul.mubr.f32.gmra.mrb[0].mxu0 %v3670
        %v4082 = vpop.f32.mrb[0].mxu0
        %v4083 = vadd.f32 %v3858, %v4082
        %v4084 = vpop.f32.mrb[0].mxu0
        %4085 = vmatprep.mubr.f32.mxu0 0.0
        %4086 = vmatmul.mubr.f32.gmra.mrb[0].mxu0 %v3673
        %v4087 = vpop.f32.mrb[0].mxu0
        %v4088 = vadd.f32 %v3863, %v4087
        %v4089 = vpop.f32.mrb[0].mxu0
        %4090 = vmatprep.mubr.f32.mxu0 0.0
        %4091 = vmatmul.mubr.f32.gmra.mrb[0].mxu0 %v3676
        %v4092 = vpop.f32.mrb[0].mxu0
        %v4093 = vadd.f32 %v3868, %v4092
        %v4094 = vpop.f32.mrb[0].mxu0
        %4095 = vmatprep.mubr.f32.mxu0 0.0
        %4096 = vmatmul.mubr.f32.gmra.mrb[0].mxu0 %v3679
        %v4097 = vpop.f32.mrb[0].mxu0
        %v4098 = vadd.f32 %v3873, %v4097
        %v4099 = vpop.f32.mrb[0].mxu0
        %4100 = vmatprep.mubr.f32.mxu0 0.0
        %4101 = vmatmul.mubr.f32.gmra.mrb[0].mxu0 %v3682
        %v4102 = vpop.f32.mrb[0].mxu0
        %v4103 = vadd.f32 %v3878, %v4102
        %v4104 = vpop.f32.mrb[0].mxu0
        %4105 = vmatprep.mubr.f32.mxu0 0.0
        %4106 = vmatmul.mubr.f32.gmra.mrb[0].mxu0 %v3685
        %v4107 = vpop.f32.mrb[0].mxu0
        %v4108 = vadd.f32 %v3883, %v4107
        %v4109 = vpop.f32.mrb[0].mxu0
        %4110 = vmatprep.mubr.f32.mxu0 0.0
        %4111 = vmatmul.mubr.f32.gmra.mrb[0].mxu0 %v3688
        %v4112 = vpop.f32.mrb[0].mxu0
        %v4113 = vadd.f32 %v3888, %v4112
        %v4114 = vpop.f32.mrb[0].mxu0
        %4115 = vmatprep.mubr.f32.mxu0 0.0
        %4116 = vmatmul.mubr.f32.gmra.mrb[0].mxu0 %v3691
        %v4117 = vpop.f32.mrb[0].mxu0
        %v4118 = vadd.f32 %v3893, %v4117
        %v4119 = vpop.f32.mrb[0].mxu0
        %4120 = vmatprep.mubr.f32.mxu0 0.0
        %4121 = vmatmul.mubr.f32.gmra.mrb[0].mxu0 %v3694
        %v4122 = vpop.f32.mrb[0].mxu0
        %v4123 = vadd.f32 %v3898, %v4122
        %v4124 = vpop.f32.mrb[0].mxu0
        %4125 = vmatprep.mubr.f32.mxu0 0.0
        %4126 = vmatmul.mubr.f32.gmra.mrb[0].mxu0 %v3697
        %v4127 = vpop.f32.mrb[0].mxu0
        %v4128 = vadd.f32 %v3903, %v4127
        %v4129 = vpop.f32.mrb[0].mxu0
        %4130 = vmatprep.mubr.f32.mxu0 0.0
        %4131 = vmatmul.mubr.f32.gmra.mrb[0].mxu0 %v3700
        %v4132 = vpop.f32.mrb[0].mxu0
        %v4133 = vadd.f32 %v3908, %v4132
        %v4134 = vpop.f32.mrb[0].mxu0
        %4135 = vmatprep.mubr.f32.mxu0 0.0
        %4136 = vmatmul.mubr.f32.gmra.mrb[0].mxu0 %v3703
        %v4137 = vpop.f32.mrb[0].mxu0
        %v4138 = vadd.f32 %v3913, %v4137
        %v4139 = vpop.f32.mrb[0].mxu0
        %4140 = vmatprep.mubr.f32.mxu0 0.0
        %4141 = vmatmul.mubr.f32.gmra.mrb[0].mxu0 %v3706
        %v4142 = vpop.f32.mrb[0].mxu0
        %v4143 = vadd.f32 %v3918, %v4142
        %v4144 = vpop.f32.mrb[0].mxu0
        %4145 = vmatprep.mubr.f32.mxu0 0.0
        %4146 = vmatmul.mubr.f32.gmra.mrb[0].mxu0 %v3709
        %v4147 = vpop.f32.mrb[0].mxu0
        %v4148 = vadd.f32 %v3923, %v4147
        %v4149 = vpop.f32.mrb[0].mxu0
        %4150 = vmatprep.mubr.f32.mxu0 0.0
        %4151 = vmatmul.mubr.f32.gmra.mrb[0].mxu0 %v3712
        %v4152 = vpop.f32.mrb[0].mxu0
        %v4153 = vadd.f32 %v3928, %v4152
        %v4154 = vpop.f32.mrb[0].mxu0
        %4155 = vmatprep.mubr.f32.mxu0 0.0
        %4156 = vmatmul.mubr.f32.gmra.mrb[0].mxu0 %v3715
        %v4157 = vpop.f32.mrb[0].mxu0
        %v4158 = vadd.f32 %v3933, %v4157
        %v4159 = vpop.f32.mrb[0].mxu0
        %4160 = vmatprep.mubr.f32.mxu0 0.0
        %4161 = vmatmul.mubr.f32.gmra.mrb[0].mxu0 %v3718
        %v4162 = vpop.f32.mrb[0].mxu0
        %v4163 = vadd.f32 %v3938, %v4162
        %v4164 = vpop.f32.mrb[0].mxu0
        %4165 = vmatprep.mubr.f32.mxu0 0.0
        %4166 = vmatmul.mubr.f32.gmra.mrb[0].mxu0 %v3721
        %v4167 = vpop.f32.mrb[0].mxu0
        %v4168 = vadd.f32 %v3943, %v4167
        %v4169 = vpop.f32.mrb[0].mxu0
        %4170 = vmatprep.mubr.f32.mxu0 0.0
        %4171 = vmatmul.mubr.f32.gmra.mrb[0].mxu0 %v3724
        %v4172 = vpop.f32.mrb[0].mxu0
        %v4173 = vadd.f32 %v3948, %v4172
        %v4174 = vpop.f32.mrb[0].mxu0
        %4175 = vdwg.mxu0
        %v4176 = vmax.f32 %v4018, 0.0
        %v4177 = vmax.f32 %v4023, 0.0
        %v4178 = vmax.f32 %v4028, 0.0
        %v4179 = vmax.f32 %v4033, 0.0
        %v4180 = vmax.f32 %v4038, 0.0
        %v4181 = vmax.f32 %v4043, 0.0
        %v4182 = vmax.f32 %v4048, 0.0
        %v4183 = vmax.f32 %v4053, 0.0
        %v4184 = vmax.f32 %v4058, 0.0
        %v4185 = vmax.f32 %v4063, 0.0
        %v4186 = vmax.f32 %v4068, 0.0
        %v4187 = vmax.f32 %v4073, 0.0
        %v4188 = vmax.f32 %v4078, 0.0
        %v4189 = vmax.f32 %v4083, 0.0
        %v4190 = vmax.f32 %v4088, 0.0
        %v4191 = vmax.f32 %v4093, 0.0
        %v4192 = vmax.f32 %v4098, 0.0
        %v4193 = vmax.f32 %v4103, 0.0
        %v4194 = vmax.f32 %v4108, 0.0
        %v4195 = vmax.f32 %v4113, 0.0
        %v4196 = vmax.f32 %v4118, 0.0
        %v4197 = vmax.f32 %v4123, 0.0
        %v4198 = vmax.f32 %v4128, 0.0
        %v4199 = vmax.f32 %v4133, 0.0
        %v4200 = vmax.f32 %v4138, 0.0
        %v4201 = vmax.f32 %v4143, 0.0
        %v4202 = vmax.f32 %v4148, 0.0
        %v4203 = vmax.f32 %v4153, 0.0
        %v4204 = vmax.f32 %v4158, 0.0
        %v4205 = vmax.f32 %v4163, 0.0
        %v4206 = vmax.f32 %v4168, 0.0
        %v4207 = vmax.f32 %v4173, 0.0
        %v4208 = vmax.f32 %v4176, %v4178
        %v4209 = vmax.f32 %v4177, %v4179
        %v4210 = vmax.f32 %v4180, %v4182
        %v4211 = vmax.f32 %v4181, %v4183
        %v4212 = vmax.f32 %v4184, %v4186
        %v4213 = vmax.f32 %v4185, %v4187
        %v4214 = vmax.f32 %v4188, %v4190
        %v4215 = vmax.f32 %v4189, %v4191
        %v4216 = vmax.f32 %v4192, %v4194
        %v4217 = vmax.f32 %v4193, %v4195
        %v4218 = vmax.f32 %v4196, %v4198
        %v4219 = vmax.f32 %v4197, %v4199
        %v4220 = vmax.f32 %v4200, %v4202
        %v4221 = vmax.f32 %v4201, %v4203
        %v4222 = vmax.f32 %v4204, %v4206
        %v4223 = vmax.f32 %v4205, %v4207
        %4224 = vst.msk [vmem:[#allocation7] sm:$0xff] %vm442, %v4208
        %4225 = vst.msk [vmem:[#allocation7 + $0x8] sm:$0xff] %vm442, %v4209
        %4226 = vst.msk [vmem:[#allocation7 + $0x10] sm:$0xff] %vm442, %v4210
        %4227 = vst.msk [vmem:[#allocation7 + $0x18] sm:$0xff] %vm442, %v4211
        %4228 = vst.msk [vmem:[#allocation7 + $0x20] sm:$0xff] %vm442, %v4212
        %4229 = vst.msk [vmem:[#allocation7 + $0x28] sm:$0xff] %vm442, %v4213
        %4230 = vst.msk [vmem:[#allocation7 + $0x30] sm:$0xff] %vm442, %v4214
        %4231 = vst.msk [vmem:[#allocation7 + $0x38] sm:$0xff] %vm442, %v4215
        %4232 = vst.msk [vmem:[#allocation7 + $0x40] sm:$0xff] %vm442, %v4216
        %4233 = vst.msk [vmem:[#allocation7 + $0x48] sm:$0xff] %vm442, %v4217
        %4234 = vst.msk [vmem:[#allocation7 + $0x50] sm:$0xff] %vm442, %v4218
        %4235 = vst.msk [vmem:[#allocation7 + $0x58] sm:$0xff] %vm442, %v4219
        %4236 = vst.msk [vmem:[#allocation7 + $0x60] sm:$0xff] %vm442, %v4220
        %4237 = vst.msk [vmem:[#allocation7 + $0x68] sm:$0xff] %vm442, %v4221
        %4238 = vst.msk [vmem:[#allocation7 + $0x70] sm:$0xff] %vm442, %v4222
        %4239 = vst.msk [vmem:[#allocation7 + $0x78] sm:$0xff] %vm442, %v4223
        %v4240 = vld [vmem:[#allocation7] ss:$2 sm:$0xff]
        %s4241 = scalar_lea.vmem [#allocation7], 16
        %v4242 = vld [vmem:[%s4241] ss:$2 sm:$0xff]
        %s4243 = scalar_lea.vmem [#allocation7], 32
        %v4244 = vld [vmem:[%s4243] ss:$2 sm:$0xff]
        %s4245 = scalar_lea.vmem [#allocation7], 48
        %v4246 = vld [vmem:[%s4245] ss:$2 sm:$0xff]
        %s4247 = scalar_lea.vmem [#allocation7], 64
        %v4248 = vld [vmem:[%s4247] ss:$2 sm:$0xff]
        %s4249 = scalar_lea.vmem [#allocation7], 80
        %v4250 = vld [vmem:[%s4249] ss:$2 sm:$0xff]
        %s4251 = scalar_lea.vmem [#allocation7], 96
        %v4252 = vld [vmem:[%s4251] ss:$2 sm:$0xff]
        %s4253 = scalar_lea.vmem [#allocation7], 112
        %v4254 = vld [vmem:[%s4253] ss:$2 sm:$0xff]
        %s4255 = scalar_lea.vmem [#allocation7], 1
        %v4256 = vld [vmem:[%s4255] ss:$2 sm:$0xff]
        %s4257 = scalar_lea.vmem [#allocation7], 17
        %v4258 = vld [vmem:[%s4257] ss:$2 sm:$0xff]
        %s4259 = scalar_lea.vmem [#allocation7], 33
        %v4260 = vld [vmem:[%s4259] ss:$2 sm:$0xff]
        %s4261 = scalar_lea.vmem [#allocation7], 49
        %v4262 = vld [vmem:[%s4261] ss:$2 sm:$0xff]
        %s4263 = scalar_lea.vmem [#allocation7], 65
        %v4264 = vld [vmem:[%s4263] ss:$2 sm:$0xff]
        %s4265 = scalar_lea.vmem [#allocation7], 81
        %v4266 = vld [vmem:[%s4265] ss:$2 sm:$0xff]
        %s4267 = scalar_lea.vmem [#allocation7], 97
        %v4268 = vld [vmem:[%s4267] ss:$2 sm:$0xff]
        %s4269 = scalar_lea.vmem [#allocation7], 113
        %v4270 = vld [vmem:[%s4269] ss:$2 sm:$0xff]
        %v4271 = vmax.f32 %v4240, %v4256
        %v4272 = vmax.f32 %v4242, %v4258
        %v4273 = vmax.f32 %v4244, %v4260
        %v4274 = vmax.f32 %v4246, %v4262
        %v4275 = vmax.f32 %v4248, %v4264
        %v4276 = vmax.f32 %v4250, %v4266
        %v4277 = vmax.f32 %v4252, %v4268
        %v4278 = vmax.f32 %v4254, %v4270
        %s4279 = scalar_lea.vmem [#allocation3], 16
        %4280 = vst.msk [vmem:[%s4279 + $0x1] sm:$0xff] %vm442, %v4271
        %4281 = vst.msk [vmem:[%s4279 + $0x11] sm:$0xff] %vm442, %v4272
        %4282 = vst.msk [vmem:[%s4279 + $0x21] sm:$0xff] %vm442, %v4273
        %4283 = vst.msk [vmem:[%s4279 + $0x31] sm:$0xff] %vm442, %v4274
        %4284 = vst.msk [vmem:[%s4279 + $0x41] sm:$0xff] %vm442, %v4275
        %4285 = vst.msk [vmem:[%s4279 + $0x51] sm:$0xff] %vm442, %v4276
        %4286 = vst.msk [vmem:[%s4279 + $0x61] sm:$0xff] %vm442, %v4277
        %4287 = vst.msk [vmem:[%s4279 + $0x71] sm:$0xff] %vm442, %v4278
        %v4288 = vld [vmem:[#allocation3] sm:$0xff]
        %v4289 = vld [vmem:[#allocation3 + $0x10] sm:$0xff]
        %v4290 = vld [vmem:[#allocation3 + $0x20] sm:$0xff]
        %v4291 = vld [vmem:[#allocation3 + $0x30] sm:$0xff]
        %v4292 = vld [vmem:[#allocation3 + $0x40] sm:$0xff]
        %v4293 = vld [vmem:[#allocation3 + $0x50] sm:$0xff]
        %v4294 = vld [vmem:[#allocation3 + $0x60] sm:$0xff]
        %v4295 = vld [vmem:[#allocation3 + $0x70] sm:$0xff]
        %4296 = vst.msk [vmem:[#allocation5] sm:$0xff] %vm442, %v4288
        %4297 = vst.msk [vmem:[#allocation5 + $0x28] sm:$0xff] %vm442, %v4289
        %4298 = vst.msk [vmem:[#allocation5 + $0x50] sm:$0xff] %vm442, %v4290
        %4299 = vst.msk [vmem:[#allocation5 + $0x78] sm:$0xff] %vm442, %v4291
        %4300 = vst.msk [vmem:[#allocation5 + $0xa0] sm:$0xff] %vm442, %v4292
        %4301 = vst.msk [vmem:[#allocation5 + $0xc8] sm:$0xff] %vm442, %v4293
        %4302 = vst.msk [vmem:[#allocation5 + $0xf0] sm:$0xff] %vm442, %v4294
        %4303 = vst.msk [vmem:[#allocation5 + $0x118] sm:$0xff] %vm442, %v4295
        %v4304 = vld [vmem:[#allocation3 + $0x1] sm:$0xff]
        %v4305 = vld [vmem:[#allocation3 + $0x11] sm:$0xff]
        %v4306 = vld [vmem:[#allocation3 + $0x21] sm:$0xff]
        %v4307 = vld [vmem:[#allocation3 + $0x31] sm:$0xff]
        %v4308 = vld [vmem:[#allocation3 + $0x41] sm:$0xff]
        %v4309 = vld [vmem:[#allocation3 + $0x51] sm:$0xff]
        %v4310 = vld [vmem:[#allocation3 + $0x61] sm:$0xff]
        %v4311 = vld [vmem:[#allocation3 + $0x71] sm:$0xff]
        %4320 = vrot.lane.b32.xlu0 %v4304, 64
        %v4321 = vpop.permute.xlu0 %4320
        %4322 = vrot.lane.b32.xlu0 %v4305, 64
        %v4323 = vpop.permute.xlu0 %4322
        %4324 = vrot.lane.b32.xlu0 %v4306, 64
        %v4325 = vpop.permute.xlu0 %4324
        %4326 = vrot.lane.b32.xlu0 %v4307, 64
        %v4327 = vpop.permute.xlu0 %4326
        %4328 = vrot.lane.b32.xlu0 %v4308, 64
        %v4329 = vpop.permute.xlu0 %4328
        %4330 = vrot.lane.b32.xlu0 %v4309, 64
        %v4331 = vpop.permute.xlu0 %4330
        %4332 = vrot.lane.b32.xlu0 %v4310, 64
        %v4333 = vpop.permute.xlu0 %4332
        %4334 = vrot.lane.b32.xlu0 %v4311, 64
        %v4335 = vpop.permute.xlu0 %4334
        %vm4344 = vcmask 1048064
        %4345 = vst.msk [vmem:[#allocation5] sm:$0xff] %vm4344, %v4321
        %4346 = vst.msk [vmem:[#allocation5 + $0x28] sm:$0xff] %vm4344, %v4323
        %4347 = vst.msk [vmem:[#allocation5 + $0x50] sm:$0xff] %vm4344, %v4325
        %4348 = vst.msk [vmem:[#allocation5 + $0x78] sm:$0xff] %vm4344, %v4327
        %4349 = vst.msk [vmem:[#allocation5 + $0xa0] sm:$0xff] %vm4344, %v4329
        %4350 = vst.msk [vmem:[#allocation5 + $0xc8] sm:$0xff] %vm4344, %v4331
        %4351 = vst.msk [vmem:[#allocation5 + $0xf0] sm:$0xff] %vm4344, %v4333
        %4352 = vst.msk [vmem:[#allocation5 + $0x118] sm:$0xff] %vm4344, %v4335
        %v4353 = vld [vmem:[#allocation3 + $0x2] sm:$0xff]
        %v4354 = vld [vmem:[#allocation3 + $0x12] sm:$0xff]
        %v4355 = vld [vmem:[#allocation3 + $0x22] sm:$0xff]
        %v4356 = vld [vmem:[#allocation3 + $0x32] sm:$0xff]
        %v4357 = vld [vmem:[#allocation3 + $0x42] sm:$0xff]
        %v4358 = vld [vmem:[#allocation3 + $0x52] sm:$0xff]
        %v4359 = vld [vmem:[#allocation3 + $0x62] sm:$0xff]
        %v4360 = vld [vmem:[#allocation3 + $0x72] sm:$0xff]
        %4361 = vst.msk [vmem:[#allocation5 + $0x8] sm:$0xff] %vm442, %v4353
        %4362 = vst.msk [vmem:[#allocation5 + $0x30] sm:$0xff] %vm442, %v4354
        %4363 = vst.msk [vmem:[#allocation5 + $0x58] sm:$0xff] %vm442, %v4355
        %4364 = vst.msk [vmem:[#allocation5 + $0x80] sm:$0xff] %vm442, %v4356
        %4365 = vst.msk [vmem:[#allocation5 + $0xa8] sm:$0xff] %vm442, %v4357
        %4366 = vst.msk [vmem:[#allocation5 + $0xd0] sm:$0xff] %vm442, %v4358
        %4367 = vst.msk [vmem:[#allocation5 + $0xf8] sm:$0xff] %vm442, %v4359
        %4368 = vst.msk [vmem:[#allocation5 + $0x120] sm:$0xff] %vm442, %v4360
        %v4369 = vld [vmem:[%s4279] sm:$0xff]
        %v4370 = vld [vmem:[%s4279 + $0x10] sm:$0xff]
        %v4371 = vld [vmem:[%s4279 + $0x20] sm:$0xff]
        %v4372 = vld [vmem:[%s4279 + $0x30] sm:$0xff]
        %v4373 = vld [vmem:[%s4279 + $0x40] sm:$0xff]
        %v4374 = vld [vmem:[%s4279 + $0x50] sm:$0xff]
        %v4375 = vld [vmem:[%s4279 + $0x60] sm:$0xff]
        %v4376 = vld [vmem:[%s4279 + $0x70] sm:$0xff]
        %4385 = vrot.lane.b32.xlu0 %v4369, 64
        %v4386 = vpop.permute.xlu0 %4385
        %4387 = vrot.lane.b32.xlu0 %v4370, 64
        %v4388 = vpop.permute.xlu0 %4387
        %4389 = vrot.lane.b32.xlu0 %v4371, 64
        %v4390 = vpop.permute.xlu0 %4389
        %4391 = vrot.lane.b32.xlu0 %v4372, 64
        %v4392 = vpop.permute.xlu0 %4391
        %4393 = vrot.lane.b32.xlu0 %v4373, 64
        %v4394 = vpop.permute.xlu0 %4393
        %4395 = vrot.lane.b32.xlu0 %v4374, 64
        %v4396 = vpop.permute.xlu0 %4395
        %4397 = vrot.lane.b32.xlu0 %v4375, 64
        %v4398 = vpop.permute.xlu0 %4397
        %4399 = vrot.lane.b32.xlu0 %v4376, 64
        %v4400 = vpop.permute.xlu0 %4399
        %4409 = vst.msk [vmem:[#allocation5 + $0x8] sm:$0xff] %vm4344, %v4386
        %4410 = vst.msk [vmem:[#allocation5 + $0x30] sm:$0xff] %vm4344, %v4388
        %4411 = vst.msk [vmem:[#allocation5 + $0x58] sm:$0xff] %vm4344, %v4390
        %4412 = vst.msk [vmem:[#allocation5 + $0x80] sm:$0xff] %vm4344, %v4392
        %4413 = vst.msk [vmem:[#allocation5 + $0xa8] sm:$0xff] %vm4344, %v4394
        %4414 = vst.msk [vmem:[#allocation5 + $0xd0] sm:$0xff] %vm4344, %v4396
        %4415 = vst.msk [vmem:[#allocation5 + $0xf8] sm:$0xff] %vm4344, %v4398
        %4416 = vst.msk [vmem:[#allocation5 + $0x120] sm:$0xff] %vm4344, %v4400
        %v4417 = vld [vmem:[%s4279 + $0x1] sm:$0xff]
        %v4418 = vld [vmem:[%s4279 + $0x11] sm:$0xff]
        %v4419 = vld [vmem:[%s4279 + $0x21] sm:$0xff]
        %v4420 = vld [vmem:[%s4279 + $0x31] sm:$0xff]
        %v4421 = vld [vmem:[%s4279 + $0x41] sm:$0xff]
        %v4422 = vld [vmem:[%s4279 + $0x51] sm:$0xff]
        %v4423 = vld [vmem:[%s4279 + $0x61] sm:$0xff]
        %v4424 = vld [vmem:[%s4279 + $0x71] sm:$0xff]
        %4425 = vst.msk [vmem:[#allocation5 + $0x10] sm:$0xff] %vm442, %v4417
        %4426 = vst.msk [vmem:[#allocation5 + $0x38] sm:$0xff] %vm442, %v4418
        %4427 = vst.msk [vmem:[#allocation5 + $0x60] sm:$0xff] %vm442, %v4419
        %4428 = vst.msk [vmem:[#allocation5 + $0x88] sm:$0xff] %vm442, %v4420
        %4429 = vst.msk [vmem:[#allocation5 + $0xb0] sm:$0xff] %vm442, %v4421
        %4430 = vst.msk [vmem:[#allocation5 + $0xd8] sm:$0xff] %vm442, %v4422
        %4431 = vst.msk [vmem:[#allocation5 + $0x100] sm:$0xff] %vm442, %v4423
        %4432 = vst.msk [vmem:[#allocation5 + $0x128] sm:$0xff] %vm442, %v4424
        %v4433 = vld [vmem:[%s4279 + $0x2] sm:$0xff]
        %v4434 = vld [vmem:[%s4279 + $0x12] sm:$0xff]
        %v4435 = vld [vmem:[%s4279 + $0x22] sm:$0xff]
        %v4436 = vld [vmem:[%s4279 + $0x32] sm:$0xff]
        %v4437 = vld [vmem:[%s4279 + $0x42] sm:$0xff]
        %v4438 = vld [vmem:[%s4279 + $0x52] sm:$0xff]
        %v4439 = vld [vmem:[%s4279 + $0x62] sm:$0xff]
        %v4440 = vld [vmem:[%s4279 + $0x72] sm:$0xff]
        %4449 = vrot.lane.b32.xlu0 %v4433, 64
        %v4450 = vpop.permute.xlu0 %4449
        %4451 = vrot.lane.b32.xlu0 %v4434, 64
        %v4452 = vpop.permute.xlu0 %4451
        %4453 = vrot.lane.b32.xlu0 %v4435, 64
        %v4454 = vpop.permute.xlu0 %4453
        %4455 = vrot.lane.b32.xlu0 %v4436, 64
        %v4456 = vpop.permute.xlu0 %4455
        %4457 = vrot.lane.b32.xlu0 %v4437, 64
        %v4458 = vpop.permute.xlu0 %4457
        %4459 = vrot.lane.b32.xlu0 %v4438, 64
        %v4460 = vpop.permute.xlu0 %4459
        %4461 = vrot.lane.b32.xlu0 %v4439, 64
        %v4462 = vpop.permute.xlu0 %4461
        %4463 = vrot.lane.b32.xlu0 %v4440, 64
        %v4464 = vpop.permute.xlu0 %4463
        %4473 = vst.msk [vmem:[#allocation5 + $0x10] sm:$0xff] %vm4344, %v4450
        %4474 = vst.msk [vmem:[#allocation5 + $0x38] sm:$0xff] %vm4344, %v4452
        %4475 = vst.msk [vmem:[#allocation5 + $0x60] sm:$0xff] %vm4344, %v4454
        %4476 = vst.msk [vmem:[#allocation5 + $0x88] sm:$0xff] %vm4344, %v4456
        %4477 = vst.msk [vmem:[#allocation5 + $0xb0] sm:$0xff] %vm4344, %v4458
        %4478 = vst.msk [vmem:[#allocation5 + $0xd8] sm:$0xff] %vm4344, %v4460
        %4479 = vst.msk [vmem:[#allocation5 + $0x100] sm:$0xff] %vm4344, %v4462
        %4480 = vst.msk [vmem:[#allocation5 + $0x128] sm:$0xff] %vm4344, %v4464
        %s4481 = scalar_lea.vmem [#allocation3], 32
        %v4482 = vld [vmem:[%s4481] sm:$0xff]
        %v4483 = vld [vmem:[%s4481 + $0x10] sm:$0xff]
        %v4484 = vld [vmem:[%s4481 + $0x20] sm:$0xff]
        %v4485 = vld [vmem:[%s4481 + $0x30] sm:$0xff]
        %v4486 = vld [vmem:[%s4481 + $0x40] sm:$0xff]
        %v4487 = vld [vmem:[%s4481 + $0x50] sm:$0xff]
        %v4488 = vld [vmem:[%s4481 + $0x60] sm:$0xff]
        %v4489 = vld [vmem:[%s4481 + $0x70] sm:$0xff]
        %4490 = vst.msk [vmem:[#allocation5 + $0x18] sm:$0xff] %vm442, %v4482
        %4491 = vst.msk [vmem:[#allocation5 + $0x40] sm:$0xff] %vm442, %v4483
        %4492 = vst.msk [vmem:[#allocation5 + $0x68] sm:$0xff] %vm442, %v4484
        %4493 = vst.msk [vmem:[#allocation5 + $0x90] sm:$0xff] %vm442, %v4485
        %4494 = vst.msk [vmem:[#allocation5 + $0xb8] sm:$0xff] %vm442, %v4486
        %4495 = vst.msk [vmem:[#allocation5 + $0xe0] sm:$0xff] %vm442, %v4487
        %4496 = vst.msk [vmem:[#allocation5 + $0x108] sm:$0xff] %vm442, %v4488
        %4497 = vst.msk [vmem:[#allocation5 + $0x130] sm:$0xff] %vm442, %v4489
        %v4498 = vld [vmem:[%s4481 + $0x1] sm:$0xff]
        %v4499 = vld [vmem:[%s4481 + $0x11] sm:$0xff]
        %v4500 = vld [vmem:[%s4481 + $0x21] sm:$0xff]
        %v4501 = vld [vmem:[%s4481 + $0x31] sm:$0xff]
        %v4502 = vld [vmem:[%s4481 + $0x41] sm:$0xff]
        %v4503 = vld [vmem:[%s4481 + $0x51] sm:$0xff]
        %v4504 = vld [vmem:[%s4481 + $0x61] sm:$0xff]
        %v4505 = vld [vmem:[%s4481 + $0x71] sm:$0xff]
        %4514 = vrot.lane.b32.xlu0 %v4498, 64
        %v4515 = vpop.permute.xlu0 %4514
        %4516 = vrot.lane.b32.xlu0 %v4499, 64
        %v4517 = vpop.permute.xlu0 %4516
        %4518 = vrot.lane.b32.xlu0 %v4500, 64
        %v4519 = vpop.permute.xlu0 %4518
        %4520 = vrot.lane.b32.xlu0 %v4501, 64
        %v4521 = vpop.permute.xlu0 %4520
        %4522 = vrot.lane.b32.xlu0 %v4502, 64
        %v4523 = vpop.permute.xlu0 %4522
        %4524 = vrot.lane.b32.xlu0 %v4503, 64
        %v4525 = vpop.permute.xlu0 %4524
        %4526 = vrot.lane.b32.xlu0 %v4504, 64
        %v4527 = vpop.permute.xlu0 %4526
        %4528 = vrot.lane.b32.xlu0 %v4505, 64
        %v4529 = vpop.permute.xlu0 %4528
        %4538 = vst.msk [vmem:[#allocation5 + $0x18] sm:$0xff] %vm4344, %v4515
        %4539 = vst.msk [vmem:[#allocation5 + $0x40] sm:$0xff] %vm4344, %v4517
        %4540 = vst.msk [vmem:[#allocation5 + $0x68] sm:$0xff] %vm4344, %v4519
        %4541 = vst.msk [vmem:[#allocation5 + $0x90] sm:$0xff] %vm4344, %v4521
        %4542 = vst.msk [vmem:[#allocation5 + $0xb8] sm:$0xff] %vm4344, %v4523
        %4543 = vst.msk [vmem:[#allocation5 + $0xe0] sm:$0xff] %vm4344, %v4525
        %4544 = vst.msk [vmem:[#allocation5 + $0x108] sm:$0xff] %vm4344, %v4527
        %4545 = vst.msk [vmem:[#allocation5 + $0x130] sm:$0xff] %vm4344, %v4529
        %v4546 = vld [vmem:[%s4481 + $0x2] sm:$0xff]
        %v4547 = vld [vmem:[%s4481 + $0x12] sm:$0xff]
        %v4548 = vld [vmem:[%s4481 + $0x22] sm:$0xff]
        %v4549 = vld [vmem:[%s4481 + $0x32] sm:$0xff]
        %v4550 = vld [vmem:[%s4481 + $0x42] sm:$0xff]
        %v4551 = vld [vmem:[%s4481 + $0x52] sm:$0xff]
        %v4552 = vld [vmem:[%s4481 + $0x62] sm:$0xff]
        %v4553 = vld [vmem:[%s4481 + $0x72] sm:$0xff]
        %4554 = vst.msk [vmem:[#allocation5 + $0x20] sm:$0xff] %vm442, %v4546
        %4555 = vst.msk [vmem:[#allocation5 + $0x48] sm:$0xff] %vm442, %v4547
        %4556 = vst.msk [vmem:[#allocation5 + $0x70] sm:$0xff] %vm442, %v4548
        %4557 = vst.msk [vmem:[#allocation5 + $0x98] sm:$0xff] %vm442, %v4549
        %4558 = vst.msk [vmem:[#allocation5 + $0xc0] sm:$0xff] %vm442, %v4550
        %4559 = vst.msk [vmem:[#allocation5 + $0xe8] sm:$0xff] %vm442, %v4551
        %4560 = vst.msk [vmem:[#allocation5 + $0x110] sm:$0xff] %vm442, %v4552
        %4561 = vst.msk [vmem:[#allocation5 + $0x138] sm:$0xff] %vm442, %v4553
        %v4562 = vld [vmem:[#allocation5] sm:$0xff]
        %v4563 = vld [vmem:[#allocation5 + $0x8] sm:$0xff]
        %v4564 = vld [vmem:[#allocation5 + $0x10] sm:$0xff]
        %v4565 = vld [vmem:[#allocation5 + $0x18] sm:$0xff]
        %v4566 = vld [vmem:[#allocation5 + $0x20] sm:$0xff]
        %v4567 = vld [vmem:[#allocation5 + $0x28] sm:$0xff]
        %v4568 = vld [vmem:[#allocation5 + $0x30] sm:$0xff]
        %v4569 = vld [vmem:[#allocation5 + $0x38] sm:$0xff]
        %v4570 = vld [vmem:[#allocation5 + $0x40] sm:$0xff]
        %v4571 = vld [vmem:[#allocation5 + $0x48] sm:$0xff]
        %v4572 = vld [vmem:[#allocation5 + $0x50] sm:$0xff]
        %v4573 = vld [vmem:[#allocation5 + $0x58] sm:$0xff]
        %v4574 = vld [vmem:[#allocation5 + $0x60] sm:$0xff]
        %v4575 = vld [vmem:[#allocation5 + $0x68] sm:$0xff]
        %v4576 = vld [vmem:[#allocation5 + $0x70] sm:$0xff]
        %v4577 = vld [vmem:[#allocation5 + $0x78] sm:$0xff]
        %v4578 = vld [vmem:[#allocation5 + $0x80] sm:$0xff]
        %v4579 = vld [vmem:[#allocation5 + $0x88] sm:$0xff]
        %v4580 = vld [vmem:[#allocation5 + $0x90] sm:$0xff]
        %v4581 = vld [vmem:[#allocation5 + $0x98] sm:$0xff]
        %v4582 = vld [vmem:[#allocation5 + $0xa0] sm:$0xff]
        %v4583 = vld [vmem:[#allocation5 + $0xa8] sm:$0xff]
        %v4584 = vld [vmem:[#allocation5 + $0xb0] sm:$0xff]
        %v4585 = vld [vmem:[#allocation5 + $0xb8] sm:$0xff]
        %v4586 = vld [vmem:[#allocation5 + $0xc0] sm:$0xff]
        %v4587 = vld [vmem:[#allocation5 + $0xc8] sm:$0xff]
        %v4588 = vld [vmem:[#allocation5 + $0xd0] sm:$0xff]
        %v4589 = vld [vmem:[#allocation5 + $0xd8] sm:$0xff]
        %v4590 = vld [vmem:[#allocation5 + $0xe0] sm:$0xff]
        %v4591 = vld [vmem:[#allocation5 + $0xe8] sm:$0xff]
        %v4592 = vld [vmem:[#allocation5 + $0xf0] sm:$0xff]
        %v4593 = vld [vmem:[#allocation5 + $0xf8] sm:$0xff]
        %v4594 = vld [vmem:[#allocation5 + $0x100] sm:$0xff]
        %v4595 = vld [vmem:[#allocation5 + $0x108] sm:$0xff]
        %v4596 = vld [vmem:[#allocation5 + $0x110] sm:$0xff]
        %v4597 = vld [vmem:[#allocation5 + $0x118] sm:$0xff]
        %v4598 = vld [vmem:[#allocation5 + $0x120] sm:$0xff]
        %v4599 = vld [vmem:[#allocation5 + $0x128] sm:$0xff]
        %v4600 = vld [vmem:[#allocation5 + $0x130] sm:$0xff]
        %v4601 = vld [vmem:[#allocation5 + $0x138] sm:$0xff]
        %v4602 = vld [vmem:[%s5] sm:$0xff]
        %v4603 = vld [vmem:[%s5 + $0x8] sm:$0xff]
        %v4604 = vld [vmem:[%s5 + $0x10] sm:$0xff]
        %v4605 = vld [vmem:[%s5 + $0x18] sm:$0xff]
        %v4606 = vld [vmem:[%s5 + $0x20] sm:$0xff]
        %v4607 = vld [vmem:[%s5 + $0x28] sm:$0xff]
        %v4608 = vld [vmem:[%s5 + $0x30] sm:$0xff]
        %v4609 = vld [vmem:[%s5 + $0x38] sm:$0xff]
        %v4610 = vld [vmem:[%s5 + $0x40] sm:$0xff]
        %v4611 = vld [vmem:[%s5 + $0x48] sm:$0xff]
        %v4612 = vld [vmem:[%s5 + $0x50] sm:$0xff]
        %v4613 = vld [vmem:[%s5 + $0x58] sm:$0xff]
        %v4614 = vld [vmem:[%s5 + $0x60] sm:$0xff]
        %v4615 = vld [vmem:[%s5 + $0x68] sm:$0xff]
        %v4616 = vld [vmem:[%s5 + $0x70] sm:$0xff]
        %v4617 = vld [vmem:[%s5 + $0x78] sm:$0xff]
        %v4618 = vld [vmem:[%s5 + $0x80] sm:$0xff]
        %v4619 = vld [vmem:[%s5 + $0x88] sm:$0xff]
        %v4620 = vld [vmem:[%s5 + $0x90] sm:$0xff]
        %v4621 = vld [vmem:[%s5 + $0x98] sm:$0xff]
        %v4622 = vld [vmem:[%s5 + $0xa0] sm:$0xff]
        %v4623 = vld [vmem:[%s5 + $0xa8] sm:$0xff]
        %v4624 = vld [vmem:[%s5 + $0xb0] sm:$0xff]
        %v4625 = vld [vmem:[%s5 + $0xb8] sm:$0xff]
        %v4626 = vld [vmem:[%s5 + $0xc0] sm:$0xff]
        %v4627 = vld [vmem:[%s5 + $0xc8] sm:$0xff]
        %v4628 = vld [vmem:[%s5 + $0xd0] sm:$0xff]
        %v4629 = vld [vmem:[%s5 + $0xd8] sm:$0xff]
        %v4630 = vld [vmem:[%s5 + $0xe0] sm:$0xff]
        %v4631 = vld [vmem:[%s5 + $0xe8] sm:$0xff]
        %v4632 = vld [vmem:[%s5 + $0xf0] sm:$0xff]
        %v4633 = vld [vmem:[%s5 + $0xf8] sm:$0xff]
        %v4634 = vld [vmem:[%s5 + $0x100] sm:$0xff]
        %v4635 = vld [vmem:[%s5 + $0x108] sm:$0xff]
        %v4636 = vld [vmem:[%s5 + $0x110] sm:$0xff]
        %v4637 = vld [vmem:[%s5 + $0x118] sm:$0xff]
        %v4638 = vld [vmem:[%s5 + $0x120] sm:$0xff]
        %v4639 = vld [vmem:[%s5 + $0x128] sm:$0xff]
        %v4640 = vld [vmem:[%s5 + $0x130] sm:$0xff]
        %v4641 = vld [vmem:[%s5 + $0x138] sm:$0xff]
        %v4642 = vld [vmem:[%s5 + $0x140] sm:$0xff]
        %v4643 = vld [vmem:[%s5 + $0x148] sm:$0xff]
        %v4644 = vld [vmem:[%s5 + $0x150] sm:$0xff]
        %v4645 = vld [vmem:[%s5 + $0x158] sm:$0xff]
        %v4646 = vld [vmem:[%s5 + $0x160] sm:$0xff]
        %v4647 = vld [vmem:[%s5 + $0x168] sm:$0xff]
        %v4648 = vld [vmem:[%s5 + $0x170] sm:$0xff]
        %v4649 = vld [vmem:[%s5 + $0x178] sm:$0xff]
        %v4650 = vld [vmem:[%s5 + $0x180] sm:$0xff]
        %v4651 = vld [vmem:[%s5 + $0x188] sm:$0xff]
        %v4652 = vld [vmem:[%s5 + $0x190] sm:$0xff]
        %v4653 = vld [vmem:[%s5 + $0x198] sm:$0xff]
        %v4654 = vld [vmem:[%s5 + $0x1a0] sm:$0xff]
        %v4655 = vld [vmem:[%s5 + $0x1a8] sm:$0xff]
        %v4656 = vld [vmem:[%s5 + $0x1b0] sm:$0xff]
        %v4657 = vld [vmem:[%s5 + $0x1b8] sm:$0xff]
        %v4658 = vld [vmem:[%s5 + $0x1c0] sm:$0xff]
        %v4659 = vld [vmem:[%s5 + $0x1c8] sm:$0xff]
        %v4660 = vld [vmem:[%s5 + $0x1d0] sm:$0xff]
        %v4661 = vld [vmem:[%s5 + $0x1d8] sm:$0xff]
        %v4662 = vld [vmem:[%s5 + $0x1e0] sm:$0xff]
        %v4663 = vld [vmem:[%s5 + $0x1e8] sm:$0xff]
        %v4664 = vld [vmem:[%s5 + $0x1f0] sm:$0xff]
        %v4665 = vld [vmem:[%s5 + $0x1f8] sm:$0xff]
        %v4666 = vld [vmem:[%s5 + $0x200] sm:$0xff]
        %v4667 = vld [vmem:[%s5 + $0x208] sm:$0xff]
        %v4668 = vld [vmem:[%s5 + $0x210] sm:$0xff]
        %v4669 = vld [vmem:[%s5 + $0x218] sm:$0xff]
        %v4670 = vld [vmem:[%s5 + $0x220] sm:$0xff]
        %v4671 = vld [vmem:[%s5 + $0x228] sm:$0xff]
        %v4672 = vld [vmem:[%s5 + $0x230] sm:$0xff]
        %v4673 = vld [vmem:[%s5 + $0x238] sm:$0xff]
        %v4674 = vld [vmem:[%s6] sm:$0x1]
        %v4676 = vlaneseq
        %v4677 = vshrl.u32 %v4676, 7
        %v4678 = vsub.s32 0, %v4677
        %v4679 = vrot.slane %v4674, %v4678
        %v4682 = vsel %vm442, %v4566, 0
        %v4685 = vsel %vm442, %v4571, 0
        %v4688 = vsel %vm442, %v4576, 0
        %v4691 = vsel %vm442, %v4581, 0
        %v4694 = vsel %vm442, %v4586, 0
        %v4697 = vsel %vm442, %v4591, 0
        %v4700 = vsel %vm442, %v4596, 0
        %v4703 = vsel %vm442, %v4601, 0
        %4705 = vmatprep.subr.mxu0 0.0
        %4706 = vmatpush1.msra.mxu0 %v4602
        %4707 = vmatprep.subr.mxu0 0.0
        %4708 = vmatpush1.msra.mxu0 %v4603
        %4709 = vmatprep.subr.mxu0 0.0
        %4710 = vmatpush1.msra.mxu0 %v4604
        %4711 = vmatprep.subr.mxu0 0.0
        %4712 = vmatpush1.msra.mxu0 %v4605
        %4713 = vmatprep.subr.mxu0 0.0
        %4714 = vmatpush1.msra.mxu0 %v4606
        %4715 = vmatprep.subr.mxu0 0.0
        %4716 = vmatpush1.msra.mxu0 %v4607
        %4717 = vmatprep.subr.mxu0 0.0
        %4718 = vmatpush1.msra.mxu0 %v4608
        %4719 = vmatprep.subr.mxu0 0.0
        %4720 = vmatpush1.msra.mxu0 %v4609
        %4721 = vmatprep.subr.mxu0 0.0
        %4722 = vmatpush1.msra.mxu0 %v4610
        %4723 = vmatprep.subr.mxu0 0.0
        %4724 = vmatpush1.msra.mxu0 %v4611
        %4725 = vmatprep.subr.mxu0 0.0
        %4726 = vmatpush1.msra.mxu0 %v4612
        %4727 = vmatprep.subr.mxu0 0.0
        %4728 = vmatpush1.msra.mxu0 %v4613
        %4729 = vmatprep.subr.mxu0 0.0
        %4730 = vmatpush1.msra.mxu0 %v4614
        %4731 = vmatprep.subr.mxu0 0.0
        %4732 = vmatpush1.msra.mxu0 %v4615
        %4733 = vmatprep.subr.mxu0 0.0
        %4734 = vmatpush1.msra.mxu0 %v4616
        %4735 = vmatprep.subr.mxu0 0.0
        %4736 = vmatpush1.msra.mxu0 %v4617
        %4737 = vmatprep.subr.mxu0 0.0
        %4738 = vmatpush1.msra.mxu0 %v4618
        %4739 = vmatprep.subr.mxu0 0.0
        %4740 = vmatpush1.msra.mxu0 %v4619
        %4741 = vmatprep.subr.mxu0 0.0
        %4742 = vmatpush1.msra.mxu0 %v4620
        %4743 = vmatprep.subr.mxu0 0.0
        %4744 = vmatpush1.msra.mxu0 %v4621
        %4745 = vmatprep.subr.mxu0 0.0
        %4746 = vmatpush1.msra.mxu0 %v4622
        %4747 = vmatprep.subr.mxu0 0.0
        %4748 = vmatpush1.msra.mxu0 %v4623
        %4749 = vmatprep.subr.mxu0 0.0
        %4750 = vmatpush1.msra.mxu0 %v4624
        %4751 = vmatprep.subr.mxu0 0.0
        %4752 = vmatpush1.msra.mxu0 %v4625
        %4753 = vmatprep.subr.mxu0 0.0
        %4754 = vmatpush1.msra.mxu0 %v4626
        %4755 = vmatprep.subr.mxu0 0.0
        %4756 = vmatpush1.msra.mxu0 %v4627
        %4757 = vmatprep.subr.mxu0 0.0
        %4758 = vmatpush1.msra.mxu0 %v4628
        %4759 = vmatprep.subr.mxu0 0.0
        %4760 = vmatpush1.msra.mxu0 %v4629
        %4761 = vmatprep.subr.mxu0 0.0
        %4762 = vmatpush1.msra.mxu0 %v4630
        %4763 = vmatprep.subr.mxu0 0.0
        %4764 = vmatpush1.msra.mxu0 %v4631
        %4765 = vmatprep.subr.mxu0 0.0
        %4766 = vmatpush1.msra.mxu0 %v4632
        %4767 = vmatprep.subr.mxu0 0.0
        %4768 = vmatpush1.msra.mxu0 %v4633
        %4769 = vmatprep.mubr.f32.mxu0 %v4563
        %4770 = vmatmul.mubr.f32.gmra.mrb[0].mxu0 %v4562
        %v4771 = vpop.f32.mrb[0].mxu0
        %v4772 = vadd.f32 %v4679, %v4771
        %v4773 = vpop.f32.mrb[0].mxu0
        %4774 = vmatprep.mubr.f32.mxu0 %v4568
        %4775 = vmatmul.mubr.f32.gmra.mrb[0].mxu0 %v4567
        %v4776 = vpop.f32.mrb[0].mxu0
        %v4777 = vadd.f32 %v4679, %v4776
        %v4778 = vpop.f32.mrb[0].mxu0
        %4779 = vmatprep.mubr.f32.mxu0 %v4573
        %4780 = vmatmul.mubr.f32.gmra.mrb[0].mxu0 %v4572
        %v4781 = vpop.f32.mrb[0].mxu0
        %v4782 = vadd.f32 %v4679, %v4781
        %v4783 = vpop.f32.mrb[0].mxu0
        %4784 = vmatprep.mubr.f32.mxu0 %v4578
        %4785 = vmatmul.mubr.f32.gmra.mrb[0].mxu0 %v4577
        %v4786 = vpop.f32.mrb[0].mxu0
        %v4787 = vadd.f32 %v4679, %v4786
        %v4788 = vpop.f32.mrb[0].mxu0
        %4789 = vmatprep.mubr.f32.mxu0 %v4583
        %4790 = vmatmul.mubr.f32.gmra.mrb[0].mxu0 %v4582
        %v4791 = vpop.f32.mrb[0].mxu0
        %v4792 = vadd.f32 %v4679, %v4791
        %v4793 = vpop.f32.mrb[0].mxu0
        %4794 = vmatprep.mubr.f32.mxu0 %v4588
        %4795 = vmatmul.mubr.f32.gmra.mrb[0].mxu0 %v4587
        %v4796 = vpop.f32.mrb[0].mxu0
        %v4797 = vadd.f32 %v4679, %v4796
        %v4798 = vpop.f32.mrb[0].mxu0
        %4799 = vmatprep.mubr.f32.mxu0 %v4593
        %4800 = vmatmul.mubr.f32.gmra.mrb[0].mxu0 %v4592
        %v4801 = vpop.f32.mrb[0].mxu0
        %v4802 = vadd.f32 %v4679, %v4801
        %v4803 = vpop.f32.mrb[0].mxu0
        %4804 = vmatprep.mubr.f32.mxu0 %v4598
        %4805 = vmatmul.mubr.f32.gmra.mrb[0].mxu0 %v4597
        %v4806 = vpop.f32.mrb[0].mxu0
        %v4807 = vadd.f32 %v4679, %v4806
        %v4808 = vpop.f32.mrb[0].mxu0
        %4809 = vdwg.mxu0
        %4810 = vmatprep.subr.mxu0 0.0
        %4811 = vmatpush1.msra.mxu0 %v4634
        %4812 = vmatprep.subr.mxu0 0.0
        %4813 = vmatpush1.msra.mxu0 %v4635
        %4814 = vmatprep.subr.mxu0 0.0
        %4815 = vmatpush1.msra.mxu0 %v4636
        %4816 = vmatprep.subr.mxu0 0.0
        %4817 = vmatpush1.msra.mxu0 %v4637
        %4818 = vmatprep.subr.mxu0 0.0
        %4819 = vmatpush1.msra.mxu0 %v4638
        %4820 = vmatprep.subr.mxu0 0.0
        %4821 = vmatpush1.msra.mxu0 %v4639
        %4822 = vmatprep.subr.mxu0 0.0
        %4823 = vmatpush1.msra.mxu0 %v4640
        %4824 = vmatprep.subr.mxu0 0.0
        %4825 = vmatpush1.msra.mxu0 %v4641
        %4826 = vmatprep.subr.mxu0 0.0
        %4827 = vmatpush1.msra.mxu0 %v4642
        %4828 = vmatprep.subr.mxu0 0.0
        %4829 = vmatpush1.msra.mxu0 %v4643
        %4830 = vmatprep.subr.mxu0 0.0
        %4831 = vmatpush1.msra.mxu0 %v4644
        %4832 = vmatprep.subr.mxu0 0.0
        %4833 = vmatpush1.msra.mxu0 %v4645
        %4834 = vmatprep.subr.mxu0 0.0
        %4835 = vmatpush1.msra.mxu0 %v4646
        %4836 = vmatprep.subr.mxu0 0.0
        %4837 = vmatpush1.msra.mxu0 %v4647
        %4838 = vmatprep.subr.mxu0 0.0
        %4839 = vmatpush1.msra.mxu0 %v4648
        %4840 = vmatprep.subr.mxu0 0.0
        %4841 = vmatpush1.msra.mxu0 %v4649
        %4842 = vmatprep.subr.mxu0 0.0
        %4843 = vmatpush1.msra.mxu0 %v4650
        %4844 = vmatprep.subr.mxu0 0.0
        %4845 = vmatpush1.msra.mxu0 %v4651
        %4846 = vmatprep.subr.mxu0 0.0
        %4847 = vmatpush1.msra.mxu0 %v4652
        %4848 = vmatprep.subr.mxu0 0.0
        %4849 = vmatpush1.msra.mxu0 %v4653
        %4850 = vmatprep.subr.mxu0 0.0
        %4851 = vmatpush1.msra.mxu0 %v4654
        %4852 = vmatprep.subr.mxu0 0.0
        %4853 = vmatpush1.msra.mxu0 %v4655
        %4854 = vmatprep.subr.mxu0 0.0
        %4855 = vmatpush1.msra.mxu0 %v4656
        %4856 = vmatprep.subr.mxu0 0.0
        %4857 = vmatpush1.msra.mxu0 %v4657
        %4858 = vmatprep.subr.mxu0 0.0
        %4859 = vmatpush1.msra.mxu0 %v4658
        %4860 = vmatprep.subr.mxu0 0.0
        %4861 = vmatpush1.msra.mxu0 %v4659
        %4862 = vmatprep.subr.mxu0 0.0
        %4863 = vmatpush1.msra.mxu0 %v4660
        %4864 = vmatprep.subr.mxu0 0.0
        %4865 = vmatpush1.msra.mxu0 %v4661
        %4866 = vmatprep.subr.mxu0 0.0
        %4867 = vmatpush1.msra.mxu0 %v4662
        %4868 = vmatprep.subr.mxu0 0.0
        %4869 = vmatpush1.msra.mxu0 %v4663
        %4870 = vmatprep.subr.mxu0 0.0
        %4871 = vmatpush1.msra.mxu0 %v4664
        %4872 = vmatprep.subr.mxu0 0.0
        %4873 = vmatpush1.msra.mxu0 %v4665
        %4874 = vmatprep.mubr.f32.mxu0 %v4565
        %4875 = vmatmul.mubr.f32.gmra.mrb[0].mxu0 %v4564
        %v4876 = vpop.f32.mrb[0].mxu0
        %v4877 = vadd.f32 %v4772, %v4876
        %v4878 = vpop.f32.mrb[0].mxu0
        %4879 = vmatprep.mubr.f32.mxu0 %v4570
        %4880 = vmatmul.mubr.f32.gmra.mrb[0].mxu0 %v4569
        %v4881 = vpop.f32.mrb[0].mxu0
        %v4882 = vadd.f32 %v4777, %v4881
        %v4883 = vpop.f32.mrb[0].mxu0
        %4884 = vmatprep.mubr.f32.mxu0 %v4575
        %4885 = vmatmul.mubr.f32.gmra.mrb[0].mxu0 %v4574
        %v4886 = vpop.f32.mrb[0].mxu0
        %v4887 = vadd.f32 %v4782, %v4886
        %v4888 = vpop.f32.mrb[0].mxu0
        %4889 = vmatprep.mubr.f32.mxu0 %v4580
        %4890 = vmatmul.mubr.f32.gmra.mrb[0].mxu0 %v4579
        %v4891 = vpop.f32.mrb[0].mxu0
        %v4892 = vadd.f32 %v4787, %v4891
        %v4893 = vpop.f32.mrb[0].mxu0
        %4894 = vmatprep.mubr.f32.mxu0 %v4585
        %4895 = vmatmul.mubr.f32.gmra.mrb[0].mxu0 %v4584
        %v4896 = vpop.f32.mrb[0].mxu0
        %v4897 = vadd.f32 %v4792, %v4896
        %v4898 = vpop.f32.mrb[0].mxu0
        %4899 = vmatprep.mubr.f32.mxu0 %v4590
        %4900 = vmatmul.mubr.f32.gmra.mrb[0].mxu0 %v4589
        %v4901 = vpop.f32.mrb[0].mxu0
        %v4902 = vadd.f32 %v4797, %v4901
        %v4903 = vpop.f32.mrb[0].mxu0
        %4904 = vmatprep.mubr.f32.mxu0 %v4595
        %4905 = vmatmul.mubr.f32.gmra.mrb[0].mxu0 %v4594
        %v4906 = vpop.f32.mrb[0].mxu0
        %v4907 = vadd.f32 %v4802, %v4906
        %v4908 = vpop.f32.mrb[0].mxu0
        %4909 = vmatprep.mubr.f32.mxu0 %v4600
        %4910 = vmatmul.mubr.f32.gmra.mrb[0].mxu0 %v4599
        %v4911 = vpop.f32.mrb[0].mxu0
        %v4912 = vadd.f32 %v4807, %v4911
        %v4913 = vpop.f32.mrb[0].mxu0
        %4914 = vdwg.mxu0
        %4915 = vmatprep.subr.mxu0 0.0
        %4916 = vmatpush1.msra.mxu0 %v4666
        %4917 = vmatprep.subr.mxu0 0.0
        %4918 = vmatpush1.msra.mxu0 %v4667
        %4919 = vmatprep.subr.mxu0 0.0
        %4920 = vmatpush1.msra.mxu0 %v4668
        %4921 = vmatprep.subr.mxu0 0.0
        %4922 = vmatpush1.msra.mxu0 %v4669
        %4923 = vmatprep.subr.mxu0 0.0
        %4924 = vmatpush1.msra.mxu0 %v4670
        %4925 = vmatprep.subr.mxu0 0.0
        %4926 = vmatpush1.msra.mxu0 %v4671
        %4927 = vmatprep.subr.mxu0 0.0
        %4928 = vmatpush1.msra.mxu0 %v4672
        %4929 = vmatprep.subr.mxu0 0.0
        %4930 = vmatpush1.msra.mxu0 %v4673
        %4931 = vmatprep.subr.mxu0 0.0
        %4932 = vmatpush1.msra.mxu0 0.0
        %4933 = vmatprep.subr.mxu0 0.0
        %4934 = vmatpush1.msra.mxu0 0.0
        %4935 = vmatprep.subr.mxu0 0.0
        %4936 = vmatpush1.msra.mxu0 0.0
        %4937 = vmatprep.subr.mxu0 0.0
        %4938 = vmatpush1.msra.mxu0 0.0
        %4939 = vmatprep.subr.mxu0 0.0
        %4940 = vmatpush1.msra.mxu0 0.0
        %4941 = vmatprep.subr.mxu0 0.0
        %4942 = vmatpush1.msra.mxu0 0.0
        %4943 = vmatprep.subr.mxu0 0.0
        %4944 = vmatpush1.msra.mxu0 0.0
        %4945 = vmatprep.subr.mxu0 0.0
        %4946 = vmatpush1.msra.mxu0 0.0
        %4947 = vmatprep.subr.mxu0 0.0
        %4948 = vmatpush1.msra.mxu0 0.0
        %4949 = vmatprep.subr.mxu0 0.0
        %4950 = vmatpush1.msra.mxu0 0.0
        %4951 = vmatprep.subr.mxu0 0.0
        %4952 = vmatpush1.msra.mxu0 0.0
        %4953 = vmatprep.subr.mxu0 0.0
        %4954 = vmatpush1.msra.mxu0 0.0
        %4955 = vmatprep.subr.mxu0 0.0
        %4956 = vmatpush1.msra.mxu0 0.0
        %4957 = vmatprep.subr.mxu0 0.0
        %4958 = vmatpush1.msra.mxu0 0.0
        %4959 = vmatprep.subr.mxu0 0.0
        %4960 = vmatpush1.msra.mxu0 0.0
        %4961 = vmatprep.subr.mxu0 0.0
        %4962 = vmatpush1.msra.mxu0 0.0
        %4963 = vmatprep.subr.mxu0 0.0
        %4964 = vmatpush1.msra.mxu0 0.0
        %4965 = vmatprep.subr.mxu0 0.0
        %4966 = vmatpush1.msra.mxu0 0.0
        %4967 = vmatprep.subr.mxu0 0.0
        %4968 = vmatpush1.msra.mxu0 0.0
        %4969 = vmatprep.subr.mxu0 0.0
        %4970 = vmatpush1.msra.mxu0 0.0
        %4971 = vmatprep.subr.mxu0 0.0
        %4972 = vmatpush1.msra.mxu0 0.0
        %4973 = vmatprep.subr.mxu0 0.0
        %4974 = vmatpush1.msra.mxu0 0.0
        %4975 = vmatprep.subr.mxu0 0.0
        %4976 = vmatpush1.msra.mxu0 0.0
        %4977 = vmatprep.subr.mxu0 0.0
        %4978 = vmatpush1.msra.mxu0 0.0
        %4979 = vmatprep.mubr.f32.mxu0 0.0
        %4980 = vmatmul.mubr.f32.gmra.mrb[0].mxu0 %v4682
        %v4981 = vpop.f32.mrb[0].mxu0
        %v4982 = vadd.f32 %v4877, %v4981
        %v4983 = vpop.f32.mrb[0].mxu0
        %4984 = vmatprep.mubr.f32.mxu0 0.0
        %4985 = vmatmul.mubr.f32.gmra.mrb[0].mxu0 %v4685
        %v4986 = vpop.f32.mrb[0].mxu0
        %v4987 = vadd.f32 %v4882, %v4986
        %v4988 = vpop.f32.mrb[0].mxu0
        %4989 = vmatprep.mubr.f32.mxu0 0.0
        %4990 = vmatmul.mubr.f32.gmra.mrb[0].mxu0 %v4688
        %v4991 = vpop.f32.mrb[0].mxu0
        %v4992 = vadd.f32 %v4887, %v4991
        %v4993 = vpop.f32.mrb[0].mxu0
        %4994 = vmatprep.mubr.f32.mxu0 0.0
        %4995 = vmatmul.mubr.f32.gmra.mrb[0].mxu0 %v4691
        %v4996 = vpop.f32.mrb[0].mxu0
        %v4997 = vadd.f32 %v4892, %v4996
        %v4998 = vpop.f32.mrb[0].mxu0
        %4999 = vmatprep.mubr.f32.mxu0 0.0
        %5000 = vmatmul.mubr.f32.gmra.mrb[0].mxu0 %v4694
        %v5001 = vpop.f32.mrb[0].mxu0
        %v5002 = vadd.f32 %v4897, %v5001
        %v5003 = vpop.f32.mrb[0].mxu0
        %5004 = vmatprep.mubr.f32.mxu0 0.0
        %5005 = vmatmul.mubr.f32.gmra.mrb[0].mxu0 %v4697
        %v5006 = vpop.f32.mrb[0].mxu0
        %v5007 = vadd.f32 %v4902, %v5006
        %v5008 = vpop.f32.mrb[0].mxu0
        %5009 = vmatprep.mubr.f32.mxu0 0.0
        %5010 = vmatmul.mubr.f32.gmra.mrb[0].mxu0 %v4700
        %v5011 = vpop.f32.mrb[0].mxu0
        %v5012 = vadd.f32 %v4907, %v5011
        %v5013 = vpop.f32.mrb[0].mxu0
        %5014 = vmatprep.mubr.f32.mxu0 0.0
        %5015 = vmatmul.mubr.f32.gmra.mrb[0].mxu0 %v4703
        %v5016 = vpop.f32.mrb[0].mxu0
        %v5017 = vadd.f32 %v4912, %v5016
        %v5018 = vpop.f32.mrb[0].mxu0
        %5019 = vdwg.mxu0
        %v5020 = vmax.f32 %v4982, 0.0
        %v5021 = vmax.f32 %v4987, 0.0
        %v5022 = vmax.f32 %v4992, 0.0
        %v5023 = vmax.f32 %v4997, 0.0
        %v5024 = vmax.f32 %v5002, 0.0
        %v5025 = vmax.f32 %v5007, 0.0
        %v5026 = vmax.f32 %v5012, 0.0
        %v5027 = vmax.f32 %v5017, 0.0
        %v5028 = vmax.f32 %v5020, %v5021
        %v5029 = vmax.f32 %v5022, %v5023
        %v5030 = vmax.f32 %v5024, %v5025
        %v5031 = vmax.f32 %v5026, %v5027
        %5032 = vst [vmem:[#allocation8] sm:$0xff] %v5028
        %5033 = vst [vmem:[#allocation8 + $0x8] sm:$0xff] %v5029
        %5034 = vst [vmem:[#allocation8 + $0x10] sm:$0xff] %v5030
        %5035 = vst [vmem:[#allocation8 + $0x18] sm:$0xff] %v5031
        %v5036 = vld [vmem:[#allocation8] ss:$2 sm:$0xff]
        %s5037 = scalar_lea.vmem [#allocation8], 16
        %v5038 = vld [vmem:[%s5037] ss:$2 sm:$0xff]
        %s5039 = scalar_lea.vmem [#allocation8], 1
        %v5040 = vld [vmem:[%s5039] ss:$2 sm:$0xff]
        %s5041 = scalar_lea.vmem [#allocation8], 17
        %v5042 = vld [vmem:[%s5041] ss:$2 sm:$0xff]
        %v5043 = vmax.f32 %v5036, %v5040
        %v5044 = vmax.f32 %v5038, %v5042
        %v5045 = vadd.f32 %v5043, %v5044
        %v5046 = vrot.slane %v5045, 4
        %v5047 = vadd.f32 %v5045, %v5046
        %v5048 = vrot.slane %v5047, 2
        %v5049 = vadd.f32 %v5047, %v5048
        %v5050 = vrot.slane %v5049, 1
        %v5051 = vadd.f32 %v5049, %v5050
        %v5052 = vrcp.pop 16.0
        %v5053 = vmul.f32 %v5051, %v5052
        %v5054 = vld [vmem:[%s7] sm:$0xff]
        %v5055 = vld [vmem:[%s7 + $0x8] sm:$0xff]
        %v5056 = vld [vmem:[%s7 + $0x10] sm:$0xff]
        %v5057 = vld [vmem:[%s7 + $0x18] sm:$0xff]
        %v5058 = vld [vmem:[%s7 + $0x20] sm:$0xff]
        %v5059 = vld [vmem:[%s7 + $0x28] sm:$0xff]
        %v5060 = vld [vmem:[%s7 + $0x30] sm:$0xff]
        %v5061 = vld [vmem:[%s7 + $0x38] sm:$0xff]
        %v5062 = vld [vmem:[%s7 + $0x40] sm:$0xff]
        %v5063 = vld [vmem:[%s7 + $0x48] sm:$0xff]
        %v5064 = vld [vmem:[%s7 + $0x50] sm:$0xff]
        %v5065 = vld [vmem:[%s7 + $0x58] sm:$0xff]
        %v5066 = vld [vmem:[%s7 + $0x60] sm:$0xff]
        %v5067 = vld [vmem:[%s7 + $0x68] sm:$0xff]
        %v5068 = vld [vmem:[%s7 + $0x70] sm:$0xff]
        %v5069 = vld [vmem:[%s7 + $0x78] sm:$0xff]
        %v5070 = vld [vmem:[%s8] sm:$0x1]
        %5071 = vmatprep.subr.mxu0 0.0
        %5072 = vmatpush1.msra.mxu0 %v5054
        %5073 = vmatprep.subr.mxu0 0.0
        %5074 = vmatpush1.msra.mxu0 %v5055
        %5075 = vmatprep.subr.mxu0 0.0
        %5076 = vmatpush1.msra.mxu0 %v5056
        %5077 = vmatprep.subr.mxu0 0.0
        %5078 = vmatpush1.msra.mxu0 %v5057
        %5079 = vmatprep.subr.mxu0 0.0
        %5080 = vmatpush1.msra.mxu0 %v5058
        %5081 = vmatprep.subr.mxu0 0.0
        %5082 = vmatpush1.msra.mxu0 %v5059
        %5083 = vmatprep.subr.mxu0 0.0
        %5084 = vmatpush1.msra.mxu0 %v5060
        %5085 = vmatprep.subr.mxu0 0.0
        %5086 = vmatpush1.msra.mxu0 %v5061
        %5087 = vmatprep.subr.mxu0 0.0
        %5088 = vmatpush1.msra.mxu0 %v5062
        %5089 = vmatprep.subr.mxu0 0.0
        %5090 = vmatpush1.msra.mxu0 %v5063
        %5091 = vmatprep.subr.mxu0 0.0
        %5092 = vmatpush1.msra.mxu0 %v5064
        %5093 = vmatprep.subr.mxu0 0.0
        %5094 = vmatpush1.msra.mxu0 %v5065
        %5095 = vmatprep.subr.mxu0 0.0
        %5096 = vmatpush1.msra.mxu0 %v5066
        %5097 = vmatprep.subr.mxu0 0.0
        %5098 = vmatpush1.msra.mxu0 %v5067
        %5099 = vmatprep.subr.mxu0 0.0
        %5100 = vmatpush1.msra.mxu0 %v5068
        %5101 = vmatprep.subr.mxu0 0.0
        %5102 = vmatpush1.msra.mxu0 %v5069
        %5103 = vmatprep.subr.mxu0 0.0
        %5104 = vmatpush1.msra.mxu0 0.0
        %5105 = vmatprep.subr.mxu0 0.0
        %5106 = vmatpush1.msra.mxu0 0.0
        %5107 = vmatprep.subr.mxu0 0.0
        %5108 = vmatpush1.msra.mxu0 0.0
        %5109 = vmatprep.subr.mxu0 0.0
        %5110 = vmatpush1.msra.mxu0 0.0
        %5111 = vmatprep.subr.mxu0 0.0
        %5112 = vmatpush1.msra.mxu0 0.0
        %5113 = vmatprep.subr.mxu0 0.0
        %5114 = vmatpush1.msra.mxu0 0.0
        %5115 = vmatprep.subr.mxu0 0.0
        %5116 = vmatpush1.msra.mxu0 0.0
        %5117 = vmatprep.subr.mxu0 0.0
        %5118 = vmatpush1.msra.mxu0 0.0
        %5119 = vmatprep.subr.mxu0 0.0
        %5120 = vmatpush1.msra.mxu0 0.0
        %5121 = vmatprep.subr.mxu0 0.0
        %5122 = vmatpush1.msra.mxu0 0.0
        %5123 = vmatprep.subr.mxu0 0.0
        %5124 = vmatpush1.msra.mxu0 0.0
        %5125 = vmatprep.subr.mxu0 0.0
        %5126 = vmatpush1.msra.mxu0 0.0
        %5127 = vmatprep.subr.mxu0 0.0
        %5128 = vmatpush1.msra.mxu0 0.0
        %5129 = vmatprep.subr.mxu0 0.0
        %5130 = vmatpush1.msra.mxu0 0.0
        %5131 = vmatprep.subr.mxu0 0.0
        %5132 = vmatpush1.msra.mxu0 0.0
        %5133 = vmatprep.subr.mxu0 0.0
        %5134 = vmatpush1.msra.mxu0 0.0
        %5135 = vmatprep.mubr.f32.mxu0 0.0
        %5136 = vmatmul.mubr.f32.gmra.mrb[0].mxu0 %v5053
        %v5137 = vpop.f32.mrb[0].mxu0
        %v5138 = vadd.f32 %v5070, %v5137
        %v5139 = vpop.f32.mrb[0].mxu0
        %5140 = vdwg.mxu0
        %v5141 = vmax.f32 %v5138, 0.0
        %v5142 = vld [vmem:[%s9] sm:$0xff]
        %v5143 = vld [vmem:[%s9 + $0x8] sm:$0xff]
        %v5144 = vld [vmem:[%s9 + $0x10] sm:$0xff]
        %v5145 = vld [vmem:[%s9 + $0x18] sm:$0xff]
        %v5146 = vld [vmem:[%s9 + $0x20] sm:$0xff]
        %v5147 = vld [vmem:[%s9 + $0x28] sm:$0xff]
        %v5148 = vld [vmem:[%s9 + $0x30] sm:$0xff]
        %v5149 = vld [vmem:[%s9 + $0x38] sm:$0xff]
        %v5150 = vld [vmem:[%s10] sm:$0x1]
        %v5152 = vsel %vm442, %v5141, 0
        %5154 = vmatprep.subr.mxu0 0.0
        %5155 = vmatpush1.msra.mxu0 %v5142
        %5156 = vmatprep.subr.mxu0 0.0
        %5157 = vmatpush1.msra.mxu0 %v5143
        %5158 = vmatprep.subr.mxu0 0.0
        %5159 = vmatpush1.msra.mxu0 %v5144
        %5160 = vmatprep.subr.mxu0 0.0
        %5161 = vmatpush1.msra.mxu0 %v5145
        %5162 = vmatprep.subr.mxu0 0.0
        %5163 = vmatpush1.msra.mxu0 %v5146
        %5164 = vmatprep.subr.mxu0 0.0
        %5165 = vmatpush1.msra.mxu0 %v5147
        %5166 = vmatprep.subr.mxu0 0.0
        %5167 = vmatpush1.msra.mxu0 %v5148
        %5168 = vmatprep.subr.mxu0 0.0
        %5169 = vmatpush1.msra.mxu0 %v5149
        %5170 = vmatprep.subr.mxu0 0.0
        %5171 = vmatpush1.msra.mxu0 0.0
        %5172 = vmatprep.subr.mxu0 0.0
        %5173 = vmatpush1.msra.mxu0 0.0
        %5174 = vmatprep.subr.mxu0 0.0
        %5175 = vmatpush1.msra.mxu0 0.0
        %5176 = vmatprep.subr.mxu0 0.0
        %5177 = vmatpush1.msra.mxu0 0.0
        %5178 = vmatprep.subr.mxu0 0.0
        %5179 = vmatpush1.msra.mxu0 0.0
        %5180 = vmatprep.subr.mxu0 0.0
        %5181 = vmatpush1.msra.mxu0 0.0
        %5182 = vmatprep.subr.mxu0 0.0
        %5183 = vmatpush1.msra.mxu0 0.0
        %5184 = vmatprep.subr.mxu0 0.0
        %5185 = vmatpush1.msra.mxu0 0.0
        %5186 = vmatprep.subr.mxu0 0.0
        %5187 = vmatpush1.msra.mxu0 0.0
        %5188 = vmatprep.subr.mxu0 0.0
        %5189 = vmatpush1.msra.mxu0 0.0
        %5190 = vmatprep.subr.mxu0 0.0
        %5191 = vmatpush1.msra.mxu0 0.0
        %5192 = vmatprep.subr.mxu0 0.0
        %5193 = vmatpush1.msra.mxu0 0.0
        %5194 = vmatprep.subr.mxu0 0.0
        %5195 = vmatpush1.msra.mxu0 0.0
        %5196 = vmatprep.subr.mxu0 0.0
        %5197 = vmatpush1.msra.mxu0 0.0
        %5198 = vmatprep.subr.mxu0 0.0
        %5199 = vmatpush1.msra.mxu0 0.0
        %5200 = vmatprep.subr.mxu0 0.0
        %5201 = vmatpush1.msra.mxu0 0.0
        %5202 = vmatprep.subr.mxu0 0.0
        %5203 = vmatpush1.msra.mxu0 0.0
        %5204 = vmatprep.subr.mxu0 0.0
        %5205 = vmatpush1.msra.mxu0 0.0
        %5206 = vmatprep.subr.mxu0 0.0
        %5207 = vmatpush1.msra.mxu0 0.0
        %5208 = vmatprep.subr.mxu0 0.0
        %5209 = vmatpush1.msra.mxu0 0.0
        %5210 = vmatprep.subr.mxu0 0.0
        %5211 = vmatpush1.msra.mxu0 0.0
        %5212 = vmatprep.subr.mxu0 0.0
        %5213 = vmatpush1.msra.mxu0 0.0
        %5214 = vmatprep.subr.mxu0 0.0
        %5215 = vmatpush1.msra.mxu0 0.0
        %5216 = vmatprep.subr.mxu0 0.0
        %5217 = vmatpush1.msra.mxu0 0.0
        %5218 = vmatprep.mubr.f32.mxu0 0.0
        %5219 = vmatmul.mubr.f32.gmra.mrb[0].mxu0 %v5152
        %v5220 = vpop.f32.mrb[0].mxu0
        %v5221 = vadd.f32 %v5150, %v5220
        %v5222 = vpop.f32.mrb[0].mxu0
        %5223 = vdwg.mxu0
        %vm5224 = vcmask 24576
        %5225 = vst.msk [vmem:[%s379] sm:$0x1] %vm5224, %v5221
        %s5226 = sand.u32 %s269, 1
        %s5227 = scalar_lea.sflag [#allocation10], %s5226
        %s5228 = sand.u32 %s269, 1
        %s5229 = scalar_lea.vmem [#allocation9], %s5228
        // Predicated region
        $region65: #{ecg_cnn_forward.1} parent=63 // pred_check
          %p5230 = pneg %p279
        $region66: #{ecg_cnn_forward.1} parent=63 // pred_check_branch
          %5232 = sbr.rel (%p5230) target = $region68
        $region67: #{ecg_cnn_forward.1} parent=63 // pred_region
          %s5234 = ssub.s32 16, 16
          %5235 = vsyncadd %s5227, %s5234
          %s5236 = smul.addr %s25, 16
          %s5237 = scalar_lea.hbm %s11, %s5236
          %s5239 = sshll.u32 %s5229, 4
          %s5240 = int_to_ptr.vmem [resolvable:$true] %s5239
          %5242 = dma.vmem_to_hbm [thread:$0]  %s5240, 16, %s5237, %s5227
        $region68: #{ecg_cnn_forward.1} parent=63 // pred_fallthru
          _
      $region64: #{ecg_cnn_forward.1} parent=5 // pred_fallthru
        _
      %p5243 = scmp.le.s32.totalorder 2, %s20
      // Predicated region
      $region69: #{ecg_cnn_forward.1} parent=5 // pred_check
        %p5244 = pneg %p5243
      $region70: #{ecg_cnn_forward.1} parent=5 // pred_check_branch
        %5246 = sbr.rel (%p5244) target = $region72
      $region71: #{ecg_cnn_forward.1} parent=5 // pred_region
        %s5247 = ssub.s32 %s20, 2
        // Predicated region
        $region73: #{ecg_cnn_forward.1} parent=71 // pred_check
          %p5248 = pneg %p285
        $region74: #{ecg_cnn_forward.1} parent=71 // pred_check_branch
          %5250 = sbr.rel (%p5248) target = $region76
        $region75: #{ecg_cnn_forward.1} parent=71 // pred_region
          %s5251 = sand.u32 %s270, 1
          %s5252 = scalar_lea.sflag [#allocation10], %s5251
          %s5253 = sand.u32 %s270, 1
          %s5254 = scalar_lea.vmem [#allocation9], %s5253
          %5255 = dma.done %s5252, 16
        $region76: #{ecg_cnn_forward.1} parent=71 // pred_fallthru
          _
      $region72: #{ecg_cnn_forward.1} parent=5 // pred_fallthru
        _
    $region6: #{ecg_cnn_forward.1} parent=1 // loop_footer
      %s24 = sadd.s32 1, %s20
    $region7: #{ecg_cnn_forward.1} parent=1 // loop_footer_branch
      %19 = sbr.rel target = $region3
    $region8: #{ecg_cnn_forward.1} parent=1 // loop_exit
      _
    %5256 = vsyncpa [#allocation10], 1
    %s5257 = scalar_lea.sflag [#allocation10], 1
    %5258 = vsyncpa %s5257, 1

</llo_original>
